<compile_context>
chip_gen: v6e
topology: v6e:2x2x1
jax: 0.10.0
libtpu: 0.0.40
codegen_flags: <defaults>
</compile_context>

<pallas_src>
import functools
import math

import numpy as np
import jax
import jax.numpy as jnp
from jax.experimental import pallas as pl
from jax.experimental.pallas import tpu as pltpu

OUT_PAD = 128  # lane-dense output width (multiple of 128 -> unmasked stores)


# ----------------------------------------------------------------------------
# Fused Pallas kernel: backbone matmul -> conv1 -> ROI gather -> attention ->
# attention bmm -> fused cls/reg head -> reg_proposals (padded to 128 lanes).
# ----------------------------------------------------------------------------
def _laneatt_fused_kernel(patches_ref, wb_ref, bb_ref, w1_ref, b1_ref,
                          gsel_ref, watt_ref, batt_ref,
                          whead_ref, bhead_ref, anchors_ref, out_ref,
                          *, B, P, fh, fw):
    # ---- backbone stand-in: stride-32 patchify conv + ReLU (MXU, f32 acc) ----
    feat = jnp.dot(patches_ref[...], wb_ref[...],
                   preferred_element_type=jnp.float32)
    feat = jnp.maximum(feat + bb_ref[...], 0.0)                 # (B*fh*fw, Cb) f32

    # ---- conv1 (1x1) as a pointwise matmul ----
    feat = jnp.dot(feat.astype(jnp.bfloat16), w1_ref[...],
                   preferred_element_type=jnp.float32) + b1_ref[...]  # (B*fh*fw, afc)

    # Hoisted constants (shared by the unrolled batch loop).
    rows_i = jax.lax.broadcasted_iota(jnp.int32, (P, P), 0)
    cols_i = jax.lax.broadcasted_iota(jnp.int32, (P, P), 1)
    zcol = jnp.zeros((P, 1), jnp.float32)

    fhw = fh * fw
    for b in range(B):  # B is tiny and static -> unrolled, still one launch
        fb = feat[b * fhw:(b + 1) * fhw].astype(jnp.bfloat16)   # (fh*fw, afc)

        # ---- ROI gather: one static one-hot matmul per feature-map row y
        #      (invalid mask already folded into the selection matrices) ----
        parts = [jnp.dot(gsel_ref[y], fb, preferred_element_type=jnp.float32)
                 for y in range(fh)]                            # each (P, afc)
        feat_rows = jnp.concatenate(parts, axis=1)              # (P, D), D idx = y*afc + c
        fr16 = feat_rows.astype(jnp.bfloat16)

        # ---- attention scores + row softmax (f32 VPU math, EUP reciprocal) ----
        scores = jnp.dot(fr16, watt_ref[...],
                         preferred_element_type=jnp.float32) + batt_ref[...]
        m = jnp.max(scores, axis=1, keepdims=True)
        e = jnp.exp(scores - m)
        att = e * pl.reciprocal(jnp.sum(e, axis=1, keepdims=True), approx=True)

        # ---- off-diagonal scatter into the (P, P) attention matrix ----
        left = jnp.concatenate([att, zcol], axis=1)             # used where q < p
        right = jnp.concatenate([zcol, att], axis=1)            # used where q > p
        att_mat = jnp.where(cols_i < rows_i, left,
                            jnp.where(cols_i > rows_i, right, 0.0))

        # ---- attention features = att_mat @ feat_rows ----
        att_feat = jnp.dot(att_mat.astype(jnp.bfloat16), fr16,
                           preferred_element_type=jnp.float32)  # (P, D)

        # ---- fused cls+reg head (single matmul, lane-dense 128-wide output)
        #      plus anchor offsets -> reg_proposals rows directly ----
        cat = jnp.concatenate([att_feat.astype(jnp.bfloat16), fr16], axis=1)  # (P, 2D)
        head = jnp.dot(cat, whead_ref[...], preferred_element_type=jnp.float32)
        out_ref[b] = head + bhead_ref[...] + anchors_ref[...]


# ----------------------------------------------------------------------------
# LaneATT (small synthetic configuration)
# ----------------------------------------------------------------------------
class LaneATTPallas:
    def __init__(self, S=8, img_w=128, img_h=64, anchor_feat_channels=8,
                 backbone_channels=32, lateral_n=2, bottom_n=2, seed=0):
        # TODO(synk): ResNet18 backbone replaced by a single stride-32 patchify
        # conv stand-in (same stride / channel contract, synthetic weights).
        self.stride = 32
        self.img_w = img_w
        self.n_strips = S - 1
        self.n_offsets = S
        self.fmap_h = img_h // self.stride
        self.fmap_w = img_w // self.stride
        self.afc = anchor_feat_channels
        self.backbone_c = backbone_channels

        self.anchor_ys = np.linspace(1.0, 0.0, self.n_offsets, dtype=np.float64)
        self.anchor_cut_ys = np.linspace(1.0, 0.0, self.fmap_h, dtype=np.float64)

        self.left_angles = [72.0, 60.0, 49.0, 39.0, 30.0, 22.0]
        self.right_angles = [108.0, 120.0, 131.0, 141.0, 150.0, 158.0]
        self.bottom_angles = [165.0, 150.0, 141.0, 131.0, 120.0, 108.0, 100.0,
                              90.0, 80.0, 72.0, 60.0, 49.0, 39.0, 30.0, 15.0]

        anchors, anchors_cut = self._generate_anchors(lateral_n, bottom_n)
        self.anchors = anchors.astype(np.float32)          # [P, 5 + S]
        self.anchors_cut = anchors_cut.astype(np.float32)  # [P, 5 + fmap_h]
        self.n_anchors = self.anchors.shape[0]

        # Anchor cut indices (equivalent to compute_anchor_cut_indices).
        # NOTE: the `> fmap_w` (not >=) comparison intentionally mirrors the
        # PyTorch LaneATT reference: an index exactly equal to fmap_w is kept
        # "valid" and clamped to fmap_w-1.  Do not "fix" — parity matters.
        xs_unclamped = np.flip(
            np.round(self.anchors_cut[:, 5:] / self.stride), axis=1).astype(np.int64)
        self.invalid = (xs_unclamped < 0) | (xs_unclamped > self.fmap_w)   # [P, fmap_h]
        self.xs_idx = np.clip(xs_unclamped, 0, self.fmap_w - 1)            # [P, fmap_h]

        # Deterministic synthetic parameters (PyTorch D ordering: d = c*fh + y).
        key = jax.random.PRNGKey(seed)
        ks = jax.random.split(key, 10)
        st = self.stride
        P = self.n_anchors
        fh, fw, afc = self.fmap_h, self.fmap_w, self.afc
        D = afc * fh
        self.Wb = 0.05 * jax.random.normal(ks[0], (3 * st * st, self.backbone_c), jnp.float32)
        self.bb = 0.01 * jax.random.normal(ks[1], (self.backbone_c,), jnp.float32)
        self.W1 = 0.05 * jax.random.normal(ks[2], (self.backbone_c, afc), jnp.float32)
        self.b1 = 0.01 * jax.random.normal(ks[3], (afc,), jnp.float32)
        self.Watt = 0.05 * jax.random.normal(ks[4], (D, P - 1), jnp.float32)
        self.batt = 0.01 * jax.random.normal(ks[5], (P - 1,), jnp.float32)
        self.Wcls = 0.05 * jax.random.normal(ks[6], (2 * D, 2), jnp.float32)
        self.bcls = 0.01 * jax.random.normal(ks[7], (2,), jnp.float32)
        self.Wreg = 0.05 * jax.random.normal(ks[8], (2 * D, self.n_offsets + 1), jnp.float32)
        self.breg = 0.01 * jax.random.normal(ks[9], (self.n_offsets + 1,), jnp.float32)

        # ----- kernel-side constants (built once, host-side numpy) -----------
        # Permutation mapping in-kernel D ordering (d = y*afc + c) back to the
        # PyTorch ordering (d = c*fh + y): W_kernel = W_pytorch[perm].
        perm = np.arange(D).reshape(afc, fh).T.ravel()

        def permute_half(w):  # (2D, N) -> permute each D-half independently
            w = np.asarray(w)
            return np.concatenate([w[:D][perm], w[D:][perm]], axis=0)

        watt_k = np.asarray(self.Watt)[perm]                       # (D, P-1)
        wcls_k = permute_half(self.Wcls)                           # (2D, 2)
        wreg_k = permute_half(self.Wreg)                           # (2D, S+1)

        # Merged cls+reg head, padded to a lane-dense 128-wide output slab.
        whead = np.zeros((2 * D, OUT_PAD), np.float32)
        whead[:, 0:2] = wcls_k
        whead[:, 4:5 + self.n_offsets] = wreg_k
        bhead = np.zeros((1, OUT_PAD), np.float32)
        bhead[0, 0:2] = np.asarray(self.bcls)
        bhead[0, 4:5 + self.n_offsets] = np.asarray(self.breg)
        # Anchor offsets padded the same way (cols 0,1 are replaced by cls).
        anchors_pad = np.zeros((P, OUT_PAD), np.float32)
        anchors_pad[:, 2:5 + self.n_offsets] = self.anchors[:, 2:]

        # One-hot ROI-selection matrices, invalid mask folded in:
        # gsel[y, p, y*fw + xs_idx[p, y]] = 1 if valid else row stays 0.
        gsel = np.zeros((fh, P, fh * fw), np.float32)
        for y in range(fh):
            for p_ in range(P):
                if not self.invalid[p_, y]:
                    gsel[y, p_, y * fw + int(self.xs_idx[p_, y])] = 1.0

        # Device-resident constants: bf16 for MXU operands, f32 for biases/adds.
        self._wb = jnp.asarray(self.Wb, jnp.bfloat16)
        self._bb = jnp.asarray(self.bb, jnp.float32).reshape(1, -1)
        self._w1 = jnp.asarray(self.W1, jnp.bfloat16)
        self._b1 = jnp.asarray(self.b1, jnp.float32).reshape(1, -1)
        self._gsel = jnp.asarray(gsel, jnp.bfloat16)
        self._watt = jnp.asarray(watt_k, jnp.bfloat16)
        self._batt = jnp.asarray(self.batt, jnp.float32).reshape(1, -1)
        self._whead = jnp.asarray(whead, jnp.bfloat16)
        self._bhead = jnp.asarray(bhead, jnp.float32)
        self._anchors_pad = jnp.asarray(anchors_pad, jnp.float32)

    # ---------------- anchor generation (mirrors the PyTorch code) -----------
    def _generate_anchor(self, start, angle, cut=False):
        if cut:
            anchor_ys = self.anchor_cut_ys
            anchor = np.zeros(2 + 2 + 1 + self.fmap_h, dtype=np.float64)
        else:
            anchor_ys = self.anchor_ys
            anchor = np.zeros(2 + 2 + 1 + self.n_offsets, dtype=np.float64)
        angle = angle * math.pi / 180.0
        start_x, start_y = start
        anchor[2] = 1 - start_y
        anchor[3] = start_x
        anchor[5:] = (start_x + (1 - anchor_ys - 1 + start_y) / math.tan(angle)) * self.img_w
        return anchor

    def _generate_side_anchors(self, angles, nb_origins, x=None, y=None):
        if x is None and y is not None:
            starts = [(xx, y) for xx in np.linspace(1.0, 0.0, nb_origins)]
        elif x is not None and y is None:
            starts = [(x, yy) for yy in np.linspace(1.0, 0.0, nb_origins)]
        else:
            raise Exception("Define exactly one of x or y")
        n_anchors = nb_origins * len(angles)
        anchors = np.zeros((n_anchors, 5 + self.n_offsets), dtype=np.float64)
        anchors_cut = np.zeros((n_anchors, 5 + self.fmap_h), dtype=np.float64)
        for i, start in enumerate(starts):
            for j, angle in enumerate(angles):
                k = i * len(angles) + j
                anchors[k] = self._generate_anchor(start, angle)
                anchors_cut[k] = self._generate_anchor(start, angle, cut=True)
        return anchors, anchors_cut

    def _generate_anchors(self, lateral_n, bottom_n):
        left, left_cut = self._generate_side_anchors(self.left_angles, lateral_n, x=0.0)
        right, right_cut = self._generate_side_anchors(self.right_angles, lateral_n, x=1.0)
        bottom, bottom_cut = self._generate_side_anchors(self.bottom_angles, bottom_n, y=1.0)
        return (np.concatenate([left, bottom, right], axis=0),
                np.concatenate([left_cut, bottom_cut, right_cut], axis=0))

    # ---------------- forward: one fused pallas_call --------------------------
    def forward_features(self, x):
        """x: NCHW float32 [B, 3, img_h, img_w] -> reg_proposals [B, P, 5 + S]."""
        B = x.shape[0]
        fh, fw, st = self.fmap_h, self.fmap_w, self.stride
        P, afc = self.n_anchors, self.afc
        D = afc * fh

        # TODO(synk): the NCHW patch extraction could be folded into the kernel's
        # in-BlockSpec index_map; kept as a tiny XLA transpose here.
        patches = x.reshape(B, 3, fh, st, fw, st)
        patches = jnp.transpose(patches, (0, 2, 4, 1, 3, 5)).reshape(B * fh * fw, 3 * st * st)
        patches = patches.astype(jnp.bfloat16)

        kern = functools.partial(_laneatt_fused_kernel, B=B, P=P, fh=fh, fw=fw)

        def full_spec(shape):
            return pl.BlockSpec(shape, lambda i, _s=shape: (0,) * len(_s))

        out = pl.pallas_call(
            kern,
            out_shape=jax.ShapeDtypeStruct((B, P, OUT_PAD), jnp.float32),
            grid=(1,),
            in_specs=[
                full_spec((B * fh * fw, 3 * st * st)),   # patches
                full_spec((3 * st * st, self.backbone_c)),  # Wb
                full_spec((1, self.backbone_c)),         # bb
                full_spec((self.backbone_c, afc)),       # W1
                full_spec((1, afc)),                     # b1
                full_spec((fh, P, fh * fw)),             # gather selectors
                full_spec((D, P - 1)),                   # Watt (permuted)
                full_spec((1, P - 1)),                   # batt
                full_spec((2 * D, OUT_PAD)),             # merged cls+reg head
                full_spec((1, OUT_PAD)),                 # merged head bias
                full_spec((P, OUT_PAD)),                 # padded anchors
            ],
            out_specs=full_spec((B, P, OUT_PAD)),
            compiler_params=pltpu.CompilerParams(
                dimension_semantics=("arbitrary",)),     # single TC; no split
        )(patches, self._wb, self._bb, self._w1, self._b1,
          self._gsel, self._watt, self._batt,
          self._whead, self._bhead, self._anchors_pad)

        # Slice the lane-dense slab back to the real 5 + S proposal columns.
        return out[:, :, :5 + self.n_offsets]

    # ---------------- NMS (host-side numpy, dynamic shapes) -------------------
    # TODO(synk): dynamic-shape NMS has no clean Pallas equivalent; done on host.
    def nms(self, batch_proposals, nms_thresh, nms_topk, conf_threshold):
        proposals_list = []
        for proposals in batch_proposals:
            logits = proposals[:, :2]
            m = logits.max(axis=1, keepdims=True)
            e = np.exp(logits - m)
            scores = (e / e.sum(axis=1, keepdims=True))[:, 1]
            above = scores > conf_threshold
            props = proposals[above]
            scs = scores[above]
            if props.shape[0] == 0:
                proposals_list.append((props, None, None, None))
                continue
            keep = self._np_nms(props, scs, overlap=nms_thresh, top_k=nms_topk)
            proposals_list.append((keep, None, None, None))
        return proposals_list

    def _np_nms(self, proposals, scores, overlap, top_k):
        order = np.argsort(scores, kind="stable")
        keep = []
        n_cols = proposals.shape[1]
        for _ in range(top_k):
            if order.size == 0:
                break
            idx = int(order[-1])
            keep.append(idx)
            order = order[:-1]
            start1 = int(np.round(proposals[idx, 2] * self.n_strips))
            start2 = np.round(proposals[:, 2] * self.n_strips).astype(np.int64)
            start = np.maximum(start2, start1) + 5
            end1 = start1 + int(np.round(proposals[idx, 4])) - 1
            end2 = start2 + np.round(proposals[:, 4]).astype(np.int64) - 1
            end = np.minimum(np.minimum(end1, end2), self.n_offsets - 1) + 5
            dist = np.abs(proposals - proposals[idx])
            index = np.arange(n_cols)[None, :]
            in_range = (index >= start[:, None]) & (index <= end[:, None])
            dist = np.where(in_range, dist, 0.0)
            mask = dist.sum(axis=1) > overlap * (end - start + 1)
            order = order[mask[order]]
        if keep:
            return proposals[np.array(keep, dtype=np.int64)]
        return proposals[np.array([], dtype=np.int64)]


# ----------------------------------------------------------------------------
if __name__ == "__main__":
    model = LaneATTPallas(S=8, img_w=128, img_h=64, anchor_feat_channels=8,
                          backbone_channels=32, lateral_n=2, bottom_n=2, seed=0)

    key = jax.random.PRNGKey(0)
    x = jax.random.normal(key, (2, 3, 64, 128), dtype=jnp.float32)  # NCHW input

    forward = jax.jit(model.forward_features)
    reg_proposals = forward(x)
    reg_proposals = jax.block_until_ready(reg_proposals)

    proposals_list = model.nms(np.asarray(reg_proposals),
                               nms_thresh=15.0, nms_topk=4, conf_threshold=0.5)
    assert reg_proposals.shape == (2, model.n_anchors, 5 + model.n_offsets)
    assert len(proposals_list) == x.shape[0]
    print("KERNEL_OK")
</pallas_src>

<mosaic_0001>
module attributes {stable_mosaic.version = 11 : i64} {
  func.func @_laneatt_fused_kernel(%arg0: i32, %arg1: memref<16x3072xbf16, #tpu.memory_space<vmem>>, %arg2: memref<3072x32xbf16, #tpu.memory_space<vmem>>, %arg3: memref<1x32xf32, #tpu.memory_space<vmem>>, %arg4: memref<32x8xbf16, #tpu.memory_space<vmem>>, %arg5: memref<1x8xf32, #tpu.memory_space<vmem>>, %arg6: memref<2x54x8xbf16, #tpu.memory_space<vmem>>, %arg7: memref<16x53xbf16, #tpu.memory_space<vmem>>, %arg8: memref<1x53xf32, #tpu.memory_space<vmem>>, %arg9: memref<32x128xbf16, #tpu.memory_space<vmem>>, %arg10: memref<1x128xf32, #tpu.memory_space<vmem>>, %arg11: memref<54x128xf32, #tpu.memory_space<vmem>>, %arg12: memref<2x54x128xf32, #tpu.memory_space<vmem>>) attributes {dimension_semantics = [#tpu.dimension_semantics<arbitrary>], iteration_bounds = array<i64: 1>, scalar_prefetch = 0 : i64, scratch_operands = 0 : i64, tpu.core_type = #tpu.core_type<tc>, window_params = [{pipeline_mode = #tpu.pipeline_mode<synchronous>, transform_indices = @transform_0, window_bounds = array<i64: 16, 3072>}, {pipeline_mode = #tpu.pipeline_mode<synchronous>, transform_indices = @transform_1, window_bounds = array<i64: 3072, 32>}, {pipeline_mode = #tpu.pipeline_mode<synchronous>, transform_indices = @transform_2, window_bounds = array<i64: 1, 32>}, {pipeline_mode = #tpu.pipeline_mode<synchronous>, transform_indices = @transform_3, window_bounds = array<i64: 32, 8>}, {pipeline_mode = #tpu.pipeline_mode<synchronous>, transform_indices = @transform_4, window_bounds = array<i64: 1, 8>}, {pipeline_mode = #tpu.pipeline_mode<synchronous>, transform_indices = @transform_5, window_bounds = array<i64: 2, 54, 8>}, {pipeline_mode = #tpu.pipeline_mode<synchronous>, transform_indices = @transform_6, window_bounds = array<i64: 16, 53>}, {pipeline_mode = #tpu.pipeline_mode<synchronous>, transform_indices = @transform_7, window_bounds = array<i64: 1, 53>}, {pipeline_mode = #tpu.pipeline_mode<synchronous>, transform_indices = @transform_8, window_bounds = array<i64: 32, 128>}, {pipeline_mode = #tpu.pipeline_mode<synchronous>, transform_indices = @transform_9, window_bounds = array<i64: 1, 128>}, {pipeline_mode = #tpu.pipeline_mode<synchronous>, transform_indices = @transform_10, window_bounds = array<i64: 54, 128>}, {pipeline_mode = #tpu.pipeline_mode<synchronous>, transform_indices = @transform_11, window_bounds = array<i64: 2, 54, 128>}]} {
    %c0 = arith.constant 0 : index
    %c0_0 = arith.constant 0 : index
    %0 = vector.load %arg1[%c0, %c0_0] : memref<16x3072xbf16, #tpu.memory_space<vmem>>, vector<16x3072xbf16>
    %c0_1 = arith.constant 0 : index
    %c0_2 = arith.constant 0 : index
    %1 = vector.load %arg2[%c0_1, %c0_2] : memref<3072x32xbf16, #tpu.memory_space<vmem>>, vector<3072x32xbf16>
    %cst = arith.constant dense<0.000000e+00> : vector<16x32xf32>
    %2 = tpu.matmul %0, %1, %cst {dimension_numbers = #tpu.dot_dimension_numbers<[1], [0], [0], [1], [0, 0, 1, 1], [], []>} : vector<16x3072xbf16>, vector<3072x32xbf16>, vector<16x32xf32> -> vector<16x32xf32>
    %c0_3 = arith.constant 0 : index
    %c0_4 = arith.constant 0 : index
    %3 = vector.load %arg3[%c0_3, %c0_4] : memref<1x32xf32, #tpu.memory_space<vmem>>, vector<1x32xf32>
    %4 = vector.broadcast %3 : vector<1x32xf32> to vector<16x32xf32>
    %5 = arith.addf %2, %4 : vector<16x32xf32>
    %cst_5 = arith.constant 0.000000e+00 : f32
    %6 = vector.broadcast %cst_5 : f32 to vector<16x32xf32>
    %7 = arith.maximumf %5, %6 : vector<16x32xf32>
    %8 = arith.truncf %7 : vector<16x32xf32> to vector<16x32xbf16>
    %c0_6 = arith.constant 0 : index
    %c0_7 = arith.constant 0 : index
    %9 = vector.load %arg4[%c0_6, %c0_7] : memref<32x8xbf16, #tpu.memory_space<vmem>>, vector<32x8xbf16>
    %cst_8 = arith.constant dense<0.000000e+00> : vector<16x8xf32>
    %10 = tpu.matmul %8, %9, %cst_8 {dimension_numbers = #tpu.dot_dimension_numbers<[1], [0], [0], [1], [0, 0, 1, 1], [], []>} : vector<16x32xbf16>, vector<32x8xbf16>, vector<16x8xf32> -> vector<16x8xf32>
    %c0_9 = arith.constant 0 : index
    %c0_10 = arith.constant 0 : index
    %11 = vector.load %arg5[%c0_9, %c0_10] : memref<1x8xf32, #tpu.memory_space<vmem>>, vector<1x8xf32>
    %12 = vector.broadcast %11 : vector<1x8xf32> to vector<16x8xf32>
    %13 = arith.addf %10, %12 : vector<16x8xf32>
    %14 = tpu.iota {dimensions = array<i32: 0>} : vector<54x54xi32>
    %15 = tpu.iota {dimensions = array<i32: 1>} : vector<54x54xi32>
    %cst_11 = arith.constant 0.000000e+00 : f32
    %16 = vector.broadcast %cst_11 : f32 to vector<54x1xf32>
    %17 = vector.extract_strided_slice %13 {offsets = [0, 0], sizes = [8, 8], strides = [1, 1]} : vector<16x8xf32> to vector<8x8xf32>
    %18 = arith.truncf %17 : vector<8x8xf32> to vector<8x8xbf16>
    %c0_12 = arith.constant 0 : index
    %c0_13 = arith.constant 0 : index
    %c0_14 = arith.constant 0 : index
    %19 = vector.load %arg6[%c0_12, %c0_13, %c0_14] : memref<2x54x8xbf16, #tpu.memory_space<vmem>>, vector<1x54x8xbf16>
    %20 = vector.shape_cast %19 : vector<1x54x8xbf16> to vector<54x8xbf16>
    %cst_15 = arith.constant dense<0.000000e+00> : vector<54x8xf32>
    %21 = tpu.matmul %20, %18, %cst_15 {dimension_numbers = #tpu.dot_dimension_numbers<[1], [0], [0], [1], [0, 0, 1, 1], [], []>} : vector<54x8xbf16>, vector<8x8xbf16>, vector<54x8xf32> -> vector<54x8xf32>
    %c1 = arith.constant 1 : index
    %c0_16 = arith.constant 0 : index
    %c0_17 = arith.constant 0 : index
    %22 = vector.load %arg6[%c1, %c0_16, %c0_17] : memref<2x54x8xbf16, #tpu.memory_space<vmem>>, vector<1x54x8xbf16>
    %23 = vector.shape_cast %22 : vector<1x54x8xbf16> to vector<54x8xbf16>
    %cst_18 = arith.constant dense<0.000000e+00> : vector<54x8xf32>
    %24 = tpu.matmul %23, %18, %cst_18 {dimension_numbers = #tpu.dot_dimension_numbers<[1], [0], [0], [1], [0, 0, 1, 1], [], []>} : vector<54x8xbf16>, vector<8x8xbf16>, vector<54x8xf32> -> vector<54x8xf32>
    %25 = tpu.concatenate %21, %24 in 1 : vector<54x8xf32>, vector<54x8xf32> -> vector<54x16xf32>
    %26 = arith.truncf %25 : vector<54x16xf32> to vector<54x16xbf16>
    %c0_19 = arith.constant 0 : index
    %c0_20 = arith.constant 0 : index
    %27 = vector.load %arg7[%c0_19, %c0_20] : memref<16x53xbf16, #tpu.memory_space<vmem>>, vector<16x53xbf16>
    %cst_21 = arith.constant dense<0.000000e+00> : vector<54x53xf32>
    %28 = tpu.matmul %26, %27, %cst_21 {dimension_numbers = #tpu.dot_dimension_numbers<[1], [0], [0], [1], [0, 0, 1, 1], [], []>} : vector<54x16xbf16>, vector<16x53xbf16>, vector<54x53xf32> -> vector<54x53xf32>
    %c0_22 = arith.constant 0 : index
    %c0_23 = arith.constant 0 : index
    %29 = vector.load %arg8[%c0_22, %c0_23] : memref<1x53xf32, #tpu.memory_space<vmem>>, vector<1x53xf32>
    %30 = vector.broadcast %29 : vector<1x53xf32> to vector<54x53xf32>
    %31 = arith.addf %28, %30 : vector<54x53xf32>
    %cst_24 = arith.constant dense<0xFF800000> : vector<54xf32>
    %32 = vector.multi_reduction <maximumf>, %31, %cst_24 [1] : vector<54x53xf32> to vector<54xf32>
    %33 = vector.shape_cast %32 : vector<54xf32> to vector<54x1xf32>
    %34 = vector.broadcast %33 : vector<54x1xf32> to vector<54x53xf32>
    %35 = arith.subf %31, %34 : vector<54x53xf32>
    %36 = math.exp %35 : vector<54x53xf32>
    %cst_25 = arith.constant dense<0.000000e+00> : vector<54xf32>
    %37 = vector.multi_reduction <add>, %36, %cst_25 [1] : vector<54x53xf32> to vector<54xf32>
    %38 = vector.shape_cast %37 : vector<54xf32> to vector<54x1xf32>
    %39 = tpu.reciprocal %38 {approx = true} : vector<54x1xf32> -> vector<54x1xf32>
    %40 = vector.broadcast %39 : vector<54x1xf32> to vector<54x53xf32>
    %41 = arith.mulf %36, %40 : vector<54x53xf32>
    %42 = tpu.concatenate %41, %16 in 1 : vector<54x53xf32>, vector<54x1xf32> -> vector<54x54xf32>
    %43 = tpu.concatenate %16, %41 in 1 : vector<54x1xf32>, vector<54x53xf32> -> vector<54x54xf32>
    %44 = arith.cmpi slt, %15, %14 : vector<54x54xi32>
    %45 = arith.cmpi sgt, %15, %14 : vector<54x54xi32>
    %cst_26 = arith.constant 0.000000e+00 : f32
    %46 = vector.broadcast %cst_26 : f32 to vector<54x54xf32>
    %47 = arith.select %45, %43, %46 : vector<54x54xi1>, vector<54x54xf32>
    %48 = arith.select %44, %42, %47 : vector<54x54xi1>, vector<54x54xf32>
    %49 = arith.truncf %48 : vector<54x54xf32> to vector<54x54xbf16>
    %cst_27 = arith.constant dense<0.000000e+00> : vector<54x16xf32>
    %50 = tpu.matmul %49, %26, %cst_27 {dimension_numbers = #tpu.dot_dimension_numbers<[1], [0], [0], [1], [0, 0, 1, 1], [], []>} : vector<54x54xbf16>, vector<54x16xbf16>, vector<54x16xf32> -> vector<54x16xf32>
    %51 = arith.truncf %50 : vector<54x16xf32> to vector<54x16xbf16>
    %52 = tpu.concatenate %51, %26 in 1 : vector<54x16xbf16>, vector<54x16xbf16> -> vector<54x32xbf16>
    %c0_28 = arith.constant 0 : index
    %c0_29 = arith.constant 0 : index
    %53 = vector.load %arg9[%c0_28, %c0_29] : memref<32x128xbf16, #tpu.memory_space<vmem>>, vector<32x128xbf16>
    %cst_30 = arith.constant dense<0.000000e+00> : vector<54x128xf32>
    %54 = tpu.matmul %52, %53, %cst_30 {dimension_numbers = #tpu.dot_dimension_numbers<[1], [0], [0], [1], [0, 0, 1, 1], [], []>} : vector<54x32xbf16>, vector<32x128xbf16>, vector<54x128xf32> -> vector<54x128xf32>
    %c0_31 = arith.constant 0 : index
    %c0_32 = arith.constant 0 : index
    %55 = vector.load %arg10[%c0_31, %c0_32] : memref<1x128xf32, #tpu.memory_space<vmem>>, vector<1x128xf32>
    %56 = vector.broadcast %55 : vector<1x128xf32> to vector<54x128xf32>
    %57 = arith.addf %54, %56 : vector<54x128xf32>
    %c0_33 = arith.constant 0 : index
    %c0_34 = arith.constant 0 : index
    %58 = vector.load %arg11[%c0_33, %c0_34] : memref<54x128xf32, #tpu.memory_space<vmem>>, vector<54x128xf32>
    %59 = arith.addf %57, %58 : vector<54x128xf32>
    %c0_35 = arith.constant 0 : index
    %c0_36 = arith.constant 0 : index
    %c0_37 = arith.constant 0 : index
    %60 = vector.load %arg12[%c0_35, %c0_36, %c0_37] : memref<2x54x128xf32, #tpu.memory_space<vmem>>, vector<1x54x128xf32>
    %61 = vector.shape_cast %60 : vector<1x54x128xf32> to vector<54x128xf32>
    %62 = vector.shape_cast %59 : vector<54x128xf32> to vector<1x54x128xf32>
    tpu.vector_store %arg12[%c0_35, %c0_36, %c0_37], %62 {strides = array<i32>} : memref<2x54x128xf32, #tpu.memory_space<vmem>>, vector<1x54x128xf32>,
    %63 = vector.extract_strided_slice %13 {offsets = [8, 0], sizes = [8, 8], strides = [1, 1]} : vector<16x8xf32> to vector<8x8xf32>
    %64 = arith.truncf %63 : vector<8x8xf32> to vector<8x8xbf16>
    %c0_38 = arith.constant 0 : index
    %c0_39 = arith.constant 0 : index
    %c0_40 = arith.constant 0 : index
    %65 = vector.load %arg6[%c0_38, %c0_39, %c0_40] : memref<2x54x8xbf16, #tpu.memory_space<vmem>>, vector<1x54x8xbf16>
    %66 = vector.shape_cast %65 : vector<1x54x8xbf16> to vector<54x8xbf16>
    %cst_41 = arith.constant dense<0.000000e+00> : vector<54x8xf32>
    %67 = tpu.matmul %66, %64, %cst_41 {dimension_numbers = #tpu.dot_dimension_numbers<[1], [0], [0], [1], [0, 0, 1, 1], [], []>} : vector<54x8xbf16>, vector<8x8xbf16>, vector<54x8xf32> -> vector<54x8xf32>
    %c1_42 = arith.constant 1 : index
    %c0_43 = arith.constant 0 : index
    %c0_44 = arith.constant 0 : index
    %68 = vector.load %arg6[%c1_42, %c0_43, %c0_44] : memref<2x54x8xbf16, #tpu.memory_space<vmem>>, vector<1x54x8xbf16>
    %69 = vector.shape_cast %68 : vector<1x54x8xbf16> to vector<54x8xbf16>
    %cst_45 = arith.constant dense<0.000000e+00> : vector<54x8xf32>
    %70 = tpu.matmul %69, %64, %cst_45 {dimension_numbers = #tpu.dot_dimension_numbers<[1], [0], [0], [1], [0, 0, 1, 1], [], []>} : vector<54x8xbf16>, vector<8x8xbf16>, vector<54x8xf32> -> vector<54x8xf32>
    %71 = tpu.concatenate %67, %70 in 1 : vector<54x8xf32>, vector<54x8xf32> -> vector<54x16xf32>
    %72 = arith.truncf %71 : vector<54x16xf32> to vector<54x16xbf16>
    %c0_46 = arith.constant 0 : index
    %c0_47 = arith.constant 0 : index
    %73 = vector.load %arg7[%c0_46, %c0_47] : memref<16x53xbf16, #tpu.memory_space<vmem>>, vector<16x53xbf16>
    %cst_48 = arith.constant dense<0.000000e+00> : vector<54x53xf32>
    %74 = tpu.matmul %72, %73, %cst_48 {dimension_numbers = #tpu.dot_dimension_numbers<[1], [0], [0], [1], [0, 0, 1, 1], [], []>} : vector<54x16xbf16>, vector<16x53xbf16>, vector<54x53xf32> -> vector<54x53xf32>
    %c0_49 = arith.constant 0 : index
    %c0_50 = arith.constant 0 : index
    %75 = vector.load %arg8[%c0_49, %c0_50] : memref<1x53xf32, #tpu.memory_space<vmem>>, vector<1x53xf32>
    %76 = vector.broadcast %75 : vector<1x53xf32> to vector<54x53xf32>
    %77 = arith.addf %74, %76 : vector<54x53xf32>
    %cst_51 = arith.constant dense<0xFF800000> : vector<54xf32>
    %78 = vector.multi_reduction <maximumf>, %77, %cst_51 [1] : vector<54x53xf32> to vector<54xf32>
    %79 = vector.shape_cast %78 : vector<54xf32> to vector<54x1xf32>
    %80 = vector.broadcast %79 : vector<54x1xf32> to vector<54x53xf32>
    %81 = arith.subf %77, %80 : vector<54x53xf32>
    %82 = math.exp %81 : vector<54x53xf32>
    %cst_52 = arith.constant dense<0.000000e+00> : vector<54xf32>
    %83 = vector.multi_reduction <add>, %82, %cst_52 [1] : vector<54x53xf32> to vector<54xf32>
    %84 = vector.shape_cast %83 : vector<54xf32> to vector<54x1xf32>
    %85 = tpu.reciprocal %84 {approx = true} : vector<54x1xf32> -> vector<54x1xf32>
    %86 = vector.broadcast %85 : vector<54x1xf32> to vector<54x53xf32>
    %87 = arith.mulf %82, %86 : vector<54x53xf32>
    %88 = tpu.concatenate %87, %16 in 1 : vector<54x53xf32>, vector<54x1xf32> -> vector<54x54xf32>
    %89 = tpu.concatenate %16, %87 in 1 : vector<54x1xf32>, vector<54x53xf32> -> vector<54x54xf32>
    %90 = arith.cmpi slt, %15, %14 : vector<54x54xi32>
    %91 = arith.cmpi sgt, %15, %14 : vector<54x54xi32>
    %cst_53 = arith.constant 0.000000e+00 : f32
    %92 = vector.broadcast %cst_53 : f32 to vector<54x54xf32>
    %93 = arith.select %91, %89, %92 : vector<54x54xi1>, vector<54x54xf32>
    %94 = arith.select %90, %88, %93 : vector<54x54xi1>, vector<54x54xf32>
    %95 = arith.truncf %94 : vector<54x54xf32> to vector<54x54xbf16>
    %cst_54 = arith.constant dense<0.000000e+00> : vector<54x16xf32>
    %96 = tpu.matmul %95, %72, %cst_54 {dimension_numbers = #tpu.dot_dimension_numbers<[1], [0], [0], [1], [0, 0, 1, 1], [], []>} : vector<54x54xbf16>, vector<54x16xbf16>, vector<54x16xf32> -> vector<54x16xf32>
    %97 = arith.truncf %96 : vector<54x16xf32> to vector<54x16xbf16>
    %98 = tpu.concatenate %97, %72 in 1 : vector<54x16xbf16>, vector<54x16xbf16> -> vector<54x32xbf16>
    %c0_55 = arith.constant 0 : index
    %c0_56 = arith.constant 0 : index
    %99 = vector.load %arg9[%c0_55, %c0_56] : memref<32x128xbf16, #tpu.memory_space<vmem>>, vector<32x128xbf16>
    %cst_57 = arith.constant dense<0.000000e+00> : vector<54x128xf32>
    %100 = tpu.matmul %98, %99, %cst_57 {dimension_numbers = #tpu.dot_dimension_numbers<[1], [0], [0], [1], [0, 0, 1, 1], [], []>} : vector<54x32xbf16>, vector<32x128xbf16>, vector<54x128xf32> -> vector<54x128xf32>
    %c0_58 = arith.constant 0 : index
    %c0_59 = arith.constant 0 : index
    %101 = vector.load %arg10[%c0_58, %c0_59] : memref<1x128xf32, #tpu.memory_space<vmem>>, vector<1x128xf32>
    %102 = vector.broadcast %101 : vector<1x128xf32> to vector<54x128xf32>
    %103 = arith.addf %100, %102 : vector<54x128xf32>
    %c0_60 = arith.constant 0 : index
    %c0_61 = arith.constant 0 : index
    %104 = vector.load %arg11[%c0_60, %c0_61] : memref<54x128xf32, #tpu.memory_space<vmem>>, vector<54x128xf32>
    %105 = arith.addf %103, %104 : vector<54x128xf32>
    %c1_62 = arith.constant 1 : index
    %c0_63 = arith.constant 0 : index
    %c0_64 = arith.constant 0 : index
    %106 = vector.load %arg12[%c1_62, %c0_63, %c0_64] : memref<2x54x128xf32, #tpu.memory_space<vmem>>, vector<1x54x128xf32>
    %107 = vector.shape_cast %106 : vector<1x54x128xf32> to vector<54x128xf32>
    %108 = vector.shape_cast %105 : vector<54x128xf32> to vector<1x54x128xf32>
    tpu.vector_store %arg12[%c1_62, %c0_63, %c0_64], %108 {strides = array<i32>} : memref<2x54x128xf32, #tpu.memory_space<vmem>>, vector<1x54x128xf32>,
    return
  }
  func.func @transform_0(%arg0: i32) -> (i32, i32) {
    %c0_i32 = arith.constant 0 : i32
    %c0_i32_0 = arith.constant 0 : i32
    %c0_i32_1 = arith.constant 0 : i32
    return %c0_i32, %c0_i32_0 : i32, i32
  }
  func.func @transform_1(%arg0: i32) -> (i32, i32) {
    %c0_i32 = arith.constant 0 : i32
    %c0_i32_0 = arith.constant 0 : i32
    %c0_i32_1 = arith.constant 0 : i32
    return %c0_i32, %c0_i32_0 : i32, i32
  }
  func.func @transform_2(%arg0: i32) -> (i32, i32) {
    %c0_i32 = arith.constant 0 : i32
    %c0_i32_0 = arith.constant 0 : i32
    %c0_i32_1 = arith.constant 0 : i32
    return %c0_i32, %c0_i32_0 : i32, i32
  }
  func.func @transform_3(%arg0: i32) -> (i32, i32) {
    %c0_i32 = arith.constant 0 : i32
    %c0_i32_0 = arith.constant 0 : i32
    %c0_i32_1 = arith.constant 0 : i32
    return %c0_i32, %c0_i32_0 : i32, i32
  }
  func.func @transform_4(%arg0: i32) -> (i32, i32) {
    %c0_i32 = arith.constant 0 : i32
    %c0_i32_0 = arith.constant 0 : i32
    %c0_i32_1 = arith.constant 0 : i32
    return %c0_i32, %c0_i32_0 : i32, i32
  }
  func.func @transform_5(%arg0: i32) -> (i32, i32, i32) {
    %c0_i32 = arith.constant 0 : i32
    %c0_i32_0 = arith.constant 0 : i32
    %c0_i32_1 = arith.constant 0 : i32
    %c0_i32_2 = arith.constant 0 : i32
    return %c0_i32, %c0_i32_0, %c0_i32_1 : i32, i32, i32
  }
  func.func @transform_6(%arg0: i32) -> (i32, i32) {
    %c0_i32 = arith.constant 0 : i32
    %c0_i32_0 = arith.constant 0 : i32
    %c0_i32_1 = arith.constant 0 : i32
    return %c0_i32, %c0_i32_0 : i32, i32
  }
  func.func @transform_7(%arg0: i32) -> (i32, i32) {
    %c0_i32 = arith.constant 0 : i32
    %c0_i32_0 = arith.constant 0 : i32
    %c0_i32_1 = arith.constant 0 : i32
    return %c0_i32, %c0_i32_0 : i32, i32
  }
  func.func @transform_8(%arg0: i32) -> (i32, i32) {
    %c0_i32 = arith.constant 0 : i32
    %c0_i32_0 = arith.constant 0 : i32
    %c0_i32_1 = arith.constant 0 : i32
    return %c0_i32, %c0_i32_0 : i32, i32
  }
  func.func @transform_9(%arg0: i32) -> (i32, i32) {
    %c0_i32 = arith.constant 0 : i32
    %c0_i32_0 = arith.constant 0 : i32
    %c0_i32_1 = arith.constant 0 : i32
    return %c0_i32, %c0_i32_0 : i32, i32
  }
  func.func @transform_10(%arg0: i32) -> (i32, i32) {
    %c0_i32 = arith.constant 0 : i32
    %c0_i32_0 = arith.constant 0 : i32
    %c0_i32_1 = arith.constant 0 : i32
    return %c0_i32, %c0_i32_0 : i32, i32
  }
  func.func @transform_11(%arg0: i32) -> (i32, i32, i32) {
    %c0_i32 = arith.constant 0 : i32
    %c0_i32_0 = arith.constant 0 : i32
    %c0_i32_1 = arith.constant 0 : i32
    %c0_i32_2 = arith.constant 0 : i32
    return %c0_i32, %c0_i32_0, %c0_i32_1 : i32, i32, i32
  }
}

</mosaic_0001>

<llo_original>
// kernel: forward_features.1
$region0: #{forward_features.1}
  #allocation0 [shape = 'u32[]', space=smem, size = 0x4, offset = 0x4, fixed_abs, tag = 'smem constant byte address 0x4 - core index']
  #allocation1 [shape = 'u32[144,128]{1,0:T(1,128)}', space=vmem, size = 0x12000, scoped, tag = 'internal scratch']
  %s0 = inlined_call_operand.vmem [shape: bf16[16,3072], index: 0, kind: input, shape index: {}]
  %s1 = inlined_call_operand.vmem [shape: bf16[3072,32], index: 1, kind: input, shape index: {}]
  %s2 = inlined_call_operand.vmem [shape: f32[1,32], index: 2, kind: input, shape index: {}]
  %s3 = inlined_call_operand.vmem [shape: bf16[32,8], index: 3, kind: input, shape index: {}]
  %s4 = inlined_call_operand.vmem [shape: f32[1,8], index: 4, kind: input, shape index: {}]
  %s5 = inlined_call_operand.vmem [shape: bf16[2,54,8], index: 5, kind: input, shape index: {}]
  %s6 = inlined_call_operand.vmem [shape: bf16[16,53], index: 6, kind: input, shape index: {}]
  %s7 = inlined_call_operand.vmem [shape: f32[1,53], index: 7, kind: input, shape index: {}]
  %s8 = inlined_call_operand.vmem [shape: bf16[32,128], index: 8, kind: input, shape index: {}]
  %s9 = inlined_call_operand.vmem [shape: f32[1,128], index: 9, kind: input, shape index: {}]
  %s10 = inlined_call_operand.vmem [shape: f32[54,128], index: 10, kind: input, shape index: {}]
  %s11 = inlined_call_operand.vmem [shape: f32[2,54,128], index: 11, kind: output, shape index: {}]
  %s12 = sld [smem:[#allocation0]]
  $region54: #{forward_features.1} parent=0
    _
  %s14 = ssub.s32 1, %s12
  %s15 = scalar_select 0, %s14, %s12
  // Predicated region
  $region2: #{forward_features.1} parent=0 // pred_check
    _
  $region3: #{forward_features.1} parent=0 // pred_check_branch
    %17 = sbr.rel (0) target = $region5
  $region4: #{forward_features.1} parent=0 // pred_region
    _
  $region5: #{forward_features.1} parent=0 // pred_fallthru
    _
  // Predicated region
  $region6: #{forward_features.1} parent=0 // pred_check
    _
  $region7: #{forward_features.1} parent=0 // pred_check_branch
    %19 = sbr.rel (0) target = $region9
  $region8: #{forward_features.1} parent=0 // pred_region
    _
  $region9: #{forward_features.1} parent=0 // pred_fallthru
    _
  // Predicated region
  $region10: #{forward_features.1} parent=0 // pred_check
    _
  $region11: #{forward_features.1} parent=0 // pred_check_branch
    %21 = sbr.rel (0) target = $region13
  $region12: #{forward_features.1} parent=0 // pred_region
    _
  $region13: #{forward_features.1} parent=0 // pred_fallthru
    _
  // Predicated region
  $region14: #{forward_features.1} parent=0 // pred_check
    _
  $region15: #{forward_features.1} parent=0 // pred_check_branch
    %23 = sbr.rel (0) target = $region17
  $region16: #{forward_features.1} parent=0 // pred_region
    _
  $region17: #{forward_features.1} parent=0 // pred_fallthru
    _
  // Predicated region
  $region18: #{forward_features.1} parent=0 // pred_check
    _
  $region19: #{forward_features.1} parent=0 // pred_check_branch
    %25 = sbr.rel (0) target = $region21
  $region20: #{forward_features.1} parent=0 // pred_region
    _
  $region21: #{forward_features.1} parent=0 // pred_fallthru
    _
  // Predicated region
  $region22: #{forward_features.1} parent=0 // pred_check
    _
  $region23: #{forward_features.1} parent=0 // pred_check_branch
    %27 = sbr.rel (0) target = $region25
  $region24: #{forward_features.1} parent=0 // pred_region
    _
  $region25: #{forward_features.1} parent=0 // pred_fallthru
    _
  // Predicated region
  $region26: #{forward_features.1} parent=0 // pred_check
    _
  $region27: #{forward_features.1} parent=0 // pred_check_branch
    %29 = sbr.rel (0) target = $region29
  $region28: #{forward_features.1} parent=0 // pred_region
    _
  $region29: #{forward_features.1} parent=0 // pred_fallthru
    _
  // Predicated region
  $region30: #{forward_features.1} parent=0 // pred_check
    _
  $region31: #{forward_features.1} parent=0 // pred_check_branch
    %31 = sbr.rel (0) target = $region33
  $region32: #{forward_features.1} parent=0 // pred_region
    _
  $region33: #{forward_features.1} parent=0 // pred_fallthru
    _
  // Predicated region
  $region34: #{forward_features.1} parent=0 // pred_check
    _
  $region35: #{forward_features.1} parent=0 // pred_check_branch
    %33 = sbr.rel (0) target = $region37
  $region36: #{forward_features.1} parent=0 // pred_region
    _
  $region37: #{forward_features.1} parent=0 // pred_fallthru
    _
  // Predicated region
  $region38: #{forward_features.1} parent=0 // pred_check
    _
  $region39: #{forward_features.1} parent=0 // pred_check_branch
    %35 = sbr.rel (0) target = $region41
  $region40: #{forward_features.1} parent=0 // pred_region
    _
  $region41: #{forward_features.1} parent=0 // pred_fallthru
    _
  // Predicated region
  $region42: #{forward_features.1} parent=0 // pred_check
    _
  $region43: #{forward_features.1} parent=0 // pred_check_branch
    %37 = sbr.rel (0) target = $region45
  $region44: #{forward_features.1} parent=0 // pred_region
    _
  $region45: #{forward_features.1} parent=0 // pred_fallthru
    _
  %v39 = vld [vmem:[%s0] sm:$0xff]
  %v40 = vld [vmem:[%s0 + $0x8] sm:$0xff]
  %v41 = vld [vmem:[%s0 + $0x10] sm:$0xff]
  %v42 = vld [vmem:[%s0 + $0x18] sm:$0xff]
  %v43 = vld [vmem:[%s0 + $0x20] sm:$0xff]
  %v44 = vld [vmem:[%s0 + $0x28] sm:$0xff]
  %v45 = vld [vmem:[%s0 + $0x30] sm:$0xff]
  %v46 = vld [vmem:[%s0 + $0x38] sm:$0xff]
  %v47 = vld [vmem:[%s0 + $0x40] sm:$0xff]
  %v48 = vld [vmem:[%s0 + $0x48] sm:$0xff]
  %v49 = vld [vmem:[%s0 + $0x50] sm:$0xff]
  %v50 = vld [vmem:[%s0 + $0x58] sm:$0xff]
  %v51 = vld [vmem:[%s0 + $0x60] sm:$0xff]
  %v52 = vld [vmem:[%s0 + $0x68] sm:$0xff]
  %v53 = vld [vmem:[%s0 + $0x70] sm:$0xff]
  %v54 = vld [vmem:[%s0 + $0x78] sm:$0xff]
  %v55 = vld [vmem:[%s0 + $0x80] sm:$0xff]
  %v56 = vld [vmem:[%s0 + $0x88] sm:$0xff]
  %v57 = vld [vmem:[%s0 + $0x90] sm:$0xff]
  %v58 = vld [vmem:[%s0 + $0x98] sm:$0xff]
  %v59 = vld [vmem:[%s0 + $0xa0] sm:$0xff]
  %v60 = vld [vmem:[%s0 + $0xa8] sm:$0xff]
  %v61 = vld [vmem:[%s0 + $0xb0] sm:$0xff]
  %v62 = vld [vmem:[%s0 + $0xb8] sm:$0xff]
  %v63 = vld [vmem:[%s1] sm:$0xf]
  %v64 = vld [vmem:[%s1 + $0x4] sm:$0xf]
  %v65 = vld [vmem:[%s1 + $0x8] sm:$0xf]
  %v66 = vld [vmem:[%s1 + $0xc] sm:$0xf]
  %v67 = vld [vmem:[%s1 + $0x10] sm:$0xf]
  %v68 = vld [vmem:[%s1 + $0x14] sm:$0xf]
  %v69 = vld [vmem:[%s1 + $0x18] sm:$0xf]
  %v70 = vld [vmem:[%s1 + $0x1c] sm:$0xf]
  %v71 = vld [vmem:[%s1 + $0x20] sm:$0xf]
  %v72 = vld [vmem:[%s1 + $0x24] sm:$0xf]
  %v73 = vld [vmem:[%s1 + $0x28] sm:$0xf]
  %v74 = vld [vmem:[%s1 + $0x2c] sm:$0xf]
  %v75 = vld [vmem:[%s1 + $0x30] sm:$0xf]
  %v76 = vld [vmem:[%s1 + $0x34] sm:$0xf]
  %v77 = vld [vmem:[%s1 + $0x38] sm:$0xf]
  %v78 = vld [vmem:[%s1 + $0x3c] sm:$0xf]
  %v79 = vld [vmem:[%s1 + $0x40] sm:$0xf]
  %v80 = vld [vmem:[%s1 + $0x44] sm:$0xf]
  %v81 = vld [vmem:[%s1 + $0x48] sm:$0xf]
  %v82 = vld [vmem:[%s1 + $0x4c] sm:$0xf]
  %v83 = vld [vmem:[%s1 + $0x50] sm:$0xf]
  %v84 = vld [vmem:[%s1 + $0x54] sm:$0xf]
  %v85 = vld [vmem:[%s1 + $0x58] sm:$0xf]
  %v86 = vld [vmem:[%s1 + $0x5c] sm:$0xf]
  %v87 = vld [vmem:[%s1 + $0x60] sm:$0xf]
  %v88 = vld [vmem:[%s1 + $0x64] sm:$0xf]
  %v89 = vld [vmem:[%s1 + $0x68] sm:$0xf]
  %v90 = vld [vmem:[%s1 + $0x6c] sm:$0xf]
  %v91 = vld [vmem:[%s1 + $0x70] sm:$0xf]
  %v92 = vld [vmem:[%s1 + $0x74] sm:$0xf]
  %v93 = vld [vmem:[%s1 + $0x78] sm:$0xf]
  %v94 = vld [vmem:[%s1 + $0x7c] sm:$0xf]
  %v95 = vld [vmem:[%s1 + $0x80] sm:$0xf]
  %v96 = vld [vmem:[%s1 + $0x84] sm:$0xf]
  %v97 = vld [vmem:[%s1 + $0x88] sm:$0xf]
  %v98 = vld [vmem:[%s1 + $0x8c] sm:$0xf]
  %v99 = vld [vmem:[%s1 + $0x90] sm:$0xf]
  %v100 = vld [vmem:[%s1 + $0x94] sm:$0xf]
  %v101 = vld [vmem:[%s1 + $0x98] sm:$0xf]
  %v102 = vld [vmem:[%s1 + $0x9c] sm:$0xf]
  %v103 = vld [vmem:[%s1 + $0xa0] sm:$0xf]
  %v104 = vld [vmem:[%s1 + $0xa4] sm:$0xf]
  %v105 = vld [vmem:[%s1 + $0xa8] sm:$0xf]
  %v106 = vld [vmem:[%s1 + $0xac] sm:$0xf]
  %v107 = vld [vmem:[%s1 + $0xb0] sm:$0xf]
  %v108 = vld [vmem:[%s1 + $0xb4] sm:$0xf]
  %v109 = vld [vmem:[%s1 + $0xb8] sm:$0xf]
  %v110 = vld [vmem:[%s1 + $0xbc] sm:$0xf]
  %v111 = vld [vmem:[%s1 + $0xc0] sm:$0xf]
  %v112 = vld [vmem:[%s1 + $0xc4] sm:$0xf]
  %v113 = vld [vmem:[%s1 + $0xc8] sm:$0xf]
  %v114 = vld [vmem:[%s1 + $0xcc] sm:$0xf]
  %v115 = vld [vmem:[%s1 + $0xd0] sm:$0xf]
  %v116 = vld [vmem:[%s1 + $0xd4] sm:$0xf]
  %v117 = vld [vmem:[%s1 + $0xd8] sm:$0xf]
  %v118 = vld [vmem:[%s1 + $0xdc] sm:$0xf]
  %v119 = vld [vmem:[%s1 + $0xe0] sm:$0xf]
  %v120 = vld [vmem:[%s1 + $0xe4] sm:$0xf]
  %v121 = vld [vmem:[%s1 + $0xe8] sm:$0xf]
  %v122 = vld [vmem:[%s1 + $0xec] sm:$0xf]
  %v123 = vld [vmem:[%s1 + $0xf0] sm:$0xf]
  %v124 = vld [vmem:[%s1 + $0xf4] sm:$0xf]
  %v125 = vld [vmem:[%s1 + $0xf8] sm:$0xf]
  %v126 = vld [vmem:[%s1 + $0xfc] sm:$0xf]
  %v127 = vld [vmem:[%s1 + $0x100] sm:$0xf]
  %v128 = vld [vmem:[%s1 + $0x104] sm:$0xf]
  %v129 = vld [vmem:[%s1 + $0x108] sm:$0xf]
  %v130 = vld [vmem:[%s1 + $0x10c] sm:$0xf]
  %v131 = vld [vmem:[%s1 + $0x110] sm:$0xf]
  %v132 = vld [vmem:[%s1 + $0x114] sm:$0xf]
  %v133 = vld [vmem:[%s1 + $0x118] sm:$0xf]
  %v134 = vld [vmem:[%s1 + $0x11c] sm:$0xf]
  %v135 = vld [vmem:[%s1 + $0x120] sm:$0xf]
  %v136 = vld [vmem:[%s1 + $0x124] sm:$0xf]
  %v137 = vld [vmem:[%s1 + $0x128] sm:$0xf]
  %v138 = vld [vmem:[%s1 + $0x12c] sm:$0xf]
  %v139 = vld [vmem:[%s1 + $0x130] sm:$0xf]
  %v140 = vld [vmem:[%s1 + $0x134] sm:$0xf]
  %v141 = vld [vmem:[%s1 + $0x138] sm:$0xf]
  %v142 = vld [vmem:[%s1 + $0x13c] sm:$0xf]
  %v143 = vld [vmem:[%s1 + $0x140] sm:$0xf]
  %v144 = vld [vmem:[%s1 + $0x144] sm:$0xf]
  %v145 = vld [vmem:[%s1 + $0x148] sm:$0xf]
  %v146 = vld [vmem:[%s1 + $0x14c] sm:$0xf]
  %v147 = vld [vmem:[%s1 + $0x150] sm:$0xf]
  %v148 = vld [vmem:[%s1 + $0x154] sm:$0xf]
  %v149 = vld [vmem:[%s1 + $0x158] sm:$0xf]
  %v150 = vld [vmem:[%s1 + $0x15c] sm:$0xf]
  %v151 = vld [vmem:[%s1 + $0x160] sm:$0xf]
  %v152 = vld [vmem:[%s1 + $0x164] sm:$0xf]
  %v153 = vld [vmem:[%s1 + $0x168] sm:$0xf]
  %v154 = vld [vmem:[%s1 + $0x16c] sm:$0xf]
  %v155 = vld [vmem:[%s1 + $0x170] sm:$0xf]
  %v156 = vld [vmem:[%s1 + $0x174] sm:$0xf]
  %v157 = vld [vmem:[%s1 + $0x178] sm:$0xf]
  %v158 = vld [vmem:[%s1 + $0x17c] sm:$0xf]
  %v159 = vld [vmem:[%s1 + $0x180] sm:$0xf]
  %v160 = vld [vmem:[%s1 + $0x184] sm:$0xf]
  %v161 = vld [vmem:[%s1 + $0x188] sm:$0xf]
  %v162 = vld [vmem:[%s1 + $0x18c] sm:$0xf]
  %v163 = vld [vmem:[%s1 + $0x190] sm:$0xf]
  %v164 = vld [vmem:[%s1 + $0x194] sm:$0xf]
  %v165 = vld [vmem:[%s1 + $0x198] sm:$0xf]
  %v166 = vld [vmem:[%s1 + $0x19c] sm:$0xf]
  %v167 = vld [vmem:[%s1 + $0x1a0] sm:$0xf]
  %v168 = vld [vmem:[%s1 + $0x1a4] sm:$0xf]
  %v169 = vld [vmem:[%s1 + $0x1a8] sm:$0xf]
  %v170 = vld [vmem:[%s1 + $0x1ac] sm:$0xf]
  %v171 = vld [vmem:[%s1 + $0x1b0] sm:$0xf]
  %v172 = vld [vmem:[%s1 + $0x1b4] sm:$0xf]
  %v173 = vld [vmem:[%s1 + $0x1b8] sm:$0xf]
  %v174 = vld [vmem:[%s1 + $0x1bc] sm:$0xf]
  %v175 = vld [vmem:[%s1 + $0x1c0] sm:$0xf]
  %v176 = vld [vmem:[%s1 + $0x1c4] sm:$0xf]
  %v177 = vld [vmem:[%s1 + $0x1c8] sm:$0xf]
  %v178 = vld [vmem:[%s1 + $0x1cc] sm:$0xf]
  %v179 = vld [vmem:[%s1 + $0x1d0] sm:$0xf]
  %v180 = vld [vmem:[%s1 + $0x1d4] sm:$0xf]
  %v181 = vld [vmem:[%s1 + $0x1d8] sm:$0xf]
  %v182 = vld [vmem:[%s1 + $0x1dc] sm:$0xf]
  %v183 = vld [vmem:[%s1 + $0x1e0] sm:$0xf]
  %v184 = vld [vmem:[%s1 + $0x1e4] sm:$0xf]
  %v185 = vld [vmem:[%s1 + $0x1e8] sm:$0xf]
  %v186 = vld [vmem:[%s1 + $0x1ec] sm:$0xf]
  %v187 = vld [vmem:[%s1 + $0x1f0] sm:$0xf]
  %v188 = vld [vmem:[%s1 + $0x1f4] sm:$0xf]
  %v189 = vld [vmem:[%s1 + $0x1f8] sm:$0xf]
  %v190 = vld [vmem:[%s1 + $0x1fc] sm:$0xf]
  %v191 = vld [vmem:[%s1 + $0x200] sm:$0xf]
  %v192 = vld [vmem:[%s1 + $0x204] sm:$0xf]
  %v193 = vld [vmem:[%s1 + $0x208] sm:$0xf]
  %v194 = vld [vmem:[%s1 + $0x20c] sm:$0xf]
  %v195 = vld [vmem:[%s1 + $0x210] sm:$0xf]
  %v196 = vld [vmem:[%s1 + $0x214] sm:$0xf]
  %v197 = vld [vmem:[%s1 + $0x218] sm:$0xf]
  %v198 = vld [vmem:[%s1 + $0x21c] sm:$0xf]
  %v199 = vld [vmem:[%s1 + $0x220] sm:$0xf]
  %v200 = vld [vmem:[%s1 + $0x224] sm:$0xf]
  %v201 = vld [vmem:[%s1 + $0x228] sm:$0xf]
  %v202 = vld [vmem:[%s1 + $0x22c] sm:$0xf]
  %v203 = vld [vmem:[%s1 + $0x230] sm:$0xf]
  %v204 = vld [vmem:[%s1 + $0x234] sm:$0xf]
  %v205 = vld [vmem:[%s1 + $0x238] sm:$0xf]
  %v206 = vld [vmem:[%s1 + $0x23c] sm:$0xf]
  %v207 = vld [vmem:[%s1 + $0x240] sm:$0xf]
  %v208 = vld [vmem:[%s1 + $0x244] sm:$0xf]
  %v209 = vld [vmem:[%s1 + $0x248] sm:$0xf]
  %v210 = vld [vmem:[%s1 + $0x24c] sm:$0xf]
  %v211 = vld [vmem:[%s1 + $0x250] sm:$0xf]
  %v212 = vld [vmem:[%s1 + $0x254] sm:$0xf]
  %v213 = vld [vmem:[%s1 + $0x258] sm:$0xf]
  %v214 = vld [vmem:[%s1 + $0x25c] sm:$0xf]
  %v215 = vld [vmem:[%s1 + $0x260] sm:$0xf]
  %v216 = vld [vmem:[%s1 + $0x264] sm:$0xf]
  %v217 = vld [vmem:[%s1 + $0x268] sm:$0xf]
  %v218 = vld [vmem:[%s1 + $0x26c] sm:$0xf]
  %v219 = vld [vmem:[%s1 + $0x270] sm:$0xf]
  %v220 = vld [vmem:[%s1 + $0x274] sm:$0xf]
  %v221 = vld [vmem:[%s1 + $0x278] sm:$0xf]
  %v222 = vld [vmem:[%s1 + $0x27c] sm:$0xf]
  %v223 = vld [vmem:[%s1 + $0x280] sm:$0xf]
  %v224 = vld [vmem:[%s1 + $0x284] sm:$0xf]
  %v225 = vld [vmem:[%s1 + $0x288] sm:$0xf]
  %v226 = vld [vmem:[%s1 + $0x28c] sm:$0xf]
  %v227 = vld [vmem:[%s1 + $0x290] sm:$0xf]
  %v228 = vld [vmem:[%s1 + $0x294] sm:$0xf]
  %v229 = vld [vmem:[%s1 + $0x298] sm:$0xf]
  %v230 = vld [vmem:[%s1 + $0x29c] sm:$0xf]
  %v231 = vld [vmem:[%s1 + $0x2a0] sm:$0xf]
  %v232 = vld [vmem:[%s1 + $0x2a4] sm:$0xf]
  %v233 = vld [vmem:[%s1 + $0x2a8] sm:$0xf]
  %v234 = vld [vmem:[%s1 + $0x2ac] sm:$0xf]
  %v235 = vld [vmem:[%s1 + $0x2b0] sm:$0xf]
  %v236 = vld [vmem:[%s1 + $0x2b4] sm:$0xf]
  %v237 = vld [vmem:[%s1 + $0x2b8] sm:$0xf]
  %v238 = vld [vmem:[%s1 + $0x2bc] sm:$0xf]
  %v239 = vld [vmem:[%s1 + $0x2c0] sm:$0xf]
  %v240 = vld [vmem:[%s1 + $0x2c4] sm:$0xf]
  %v241 = vld [vmem:[%s1 + $0x2c8] sm:$0xf]
  %v242 = vld [vmem:[%s1 + $0x2cc] sm:$0xf]
  %v243 = vld [vmem:[%s1 + $0x2d0] sm:$0xf]
  %v244 = vld [vmem:[%s1 + $0x2d4] sm:$0xf]
  %v245 = vld [vmem:[%s1 + $0x2d8] sm:$0xf]
  %v246 = vld [vmem:[%s1 + $0x2dc] sm:$0xf]
  %v247 = vld [vmem:[%s1 + $0x2e0] sm:$0xf]
  %v248 = vld [vmem:[%s1 + $0x2e4] sm:$0xf]
  %v249 = vld [vmem:[%s1 + $0x2e8] sm:$0xf]
  %v250 = vld [vmem:[%s1 + $0x2ec] sm:$0xf]
  %v251 = vld [vmem:[%s1 + $0x2f0] sm:$0xf]
  %v252 = vld [vmem:[%s1 + $0x2f4] sm:$0xf]
  %v253 = vld [vmem:[%s1 + $0x2f8] sm:$0xf]
  %v254 = vld [vmem:[%s1 + $0x2fc] sm:$0xf]
  %v255 = vld [vmem:[%s1 + $0x300] sm:$0xf]
  %v256 = vld [vmem:[%s1 + $0x304] sm:$0xf]
  %v257 = vld [vmem:[%s1 + $0x308] sm:$0xf]
  %v258 = vld [vmem:[%s1 + $0x30c] sm:$0xf]
  %v259 = vld [vmem:[%s1 + $0x310] sm:$0xf]
  %v260 = vld [vmem:[%s1 + $0x314] sm:$0xf]
  %v261 = vld [vmem:[%s1 + $0x318] sm:$0xf]
  %v262 = vld [vmem:[%s1 + $0x31c] sm:$0xf]
  %v263 = vld [vmem:[%s1 + $0x320] sm:$0xf]
  %v264 = vld [vmem:[%s1 + $0x324] sm:$0xf]
  %v265 = vld [vmem:[%s1 + $0x328] sm:$0xf]
  %v266 = vld [vmem:[%s1 + $0x32c] sm:$0xf]
  %v267 = vld [vmem:[%s1 + $0x330] sm:$0xf]
  %v268 = vld [vmem:[%s1 + $0x334] sm:$0xf]
  %v269 = vld [vmem:[%s1 + $0x338] sm:$0xf]
  %v270 = vld [vmem:[%s1 + $0x33c] sm:$0xf]
  %v271 = vld [vmem:[%s1 + $0x340] sm:$0xf]
  %v272 = vld [vmem:[%s1 + $0x344] sm:$0xf]
  %v273 = vld [vmem:[%s1 + $0x348] sm:$0xf]
  %v274 = vld [vmem:[%s1 + $0x34c] sm:$0xf]
  %v275 = vld [vmem:[%s1 + $0x350] sm:$0xf]
  %v276 = vld [vmem:[%s1 + $0x354] sm:$0xf]
  %v277 = vld [vmem:[%s1 + $0x358] sm:$0xf]
  %v278 = vld [vmem:[%s1 + $0x35c] sm:$0xf]
  %v279 = vld [vmem:[%s1 + $0x360] sm:$0xf]
  %v280 = vld [vmem:[%s1 + $0x364] sm:$0xf]
  %v281 = vld [vmem:[%s1 + $0x368] sm:$0xf]
  %v282 = vld [vmem:[%s1 + $0x36c] sm:$0xf]
  %v283 = vld [vmem:[%s1 + $0x370] sm:$0xf]
  %v284 = vld [vmem:[%s1 + $0x374] sm:$0xf]
  %v285 = vld [vmem:[%s1 + $0x378] sm:$0xf]
  %v286 = vld [vmem:[%s1 + $0x37c] sm:$0xf]
  %v287 = vld [vmem:[%s1 + $0x380] sm:$0xf]
  %v288 = vld [vmem:[%s1 + $0x384] sm:$0xf]
  %v289 = vld [vmem:[%s1 + $0x388] sm:$0xf]
  %v290 = vld [vmem:[%s1 + $0x38c] sm:$0xf]
  %v291 = vld [vmem:[%s1 + $0x390] sm:$0xf]
  %v292 = vld [vmem:[%s1 + $0x394] sm:$0xf]
  %v293 = vld [vmem:[%s1 + $0x398] sm:$0xf]
  %v294 = vld [vmem:[%s1 + $0x39c] sm:$0xf]
  %v295 = vld [vmem:[%s1 + $0x3a0] sm:$0xf]
  %v296 = vld [vmem:[%s1 + $0x3a4] sm:$0xf]
  %v297 = vld [vmem:[%s1 + $0x3a8] sm:$0xf]
  %v298 = vld [vmem:[%s1 + $0x3ac] sm:$0xf]
  %v299 = vld [vmem:[%s1 + $0x3b0] sm:$0xf]
  %v300 = vld [vmem:[%s1 + $0x3b4] sm:$0xf]
  %v301 = vld [vmem:[%s1 + $0x3b8] sm:$0xf]
  %v302 = vld [vmem:[%s1 + $0x3bc] sm:$0xf]
  %v303 = vld [vmem:[%s1 + $0x3c0] sm:$0xf]
  %v304 = vld [vmem:[%s1 + $0x3c4] sm:$0xf]
  %v305 = vld [vmem:[%s1 + $0x3c8] sm:$0xf]
  %v306 = vld [vmem:[%s1 + $0x3cc] sm:$0xf]
  %v307 = vld [vmem:[%s1 + $0x3d0] sm:$0xf]
  %v308 = vld [vmem:[%s1 + $0x3d4] sm:$0xf]
  %v309 = vld [vmem:[%s1 + $0x3d8] sm:$0xf]
  %v310 = vld [vmem:[%s1 + $0x3dc] sm:$0xf]
  %v311 = vld [vmem:[%s1 + $0x3e0] sm:$0xf]
  %v312 = vld [vmem:[%s1 + $0x3e4] sm:$0xf]
  %v313 = vld [vmem:[%s1 + $0x3e8] sm:$0xf]
  %v314 = vld [vmem:[%s1 + $0x3ec] sm:$0xf]
  %v315 = vld [vmem:[%s1 + $0x3f0] sm:$0xf]
  %v316 = vld [vmem:[%s1 + $0x3f4] sm:$0xf]
  %v317 = vld [vmem:[%s1 + $0x3f8] sm:$0xf]
  %v318 = vld [vmem:[%s1 + $0x3fc] sm:$0xf]
  %v319 = vld [vmem:[%s1 + $0x400] sm:$0xf]
  %v320 = vld [vmem:[%s1 + $0x404] sm:$0xf]
  %v321 = vld [vmem:[%s1 + $0x408] sm:$0xf]
  %v322 = vld [vmem:[%s1 + $0x40c] sm:$0xf]
  %v323 = vld [vmem:[%s1 + $0x410] sm:$0xf]
  %v324 = vld [vmem:[%s1 + $0x414] sm:$0xf]
  %v325 = vld [vmem:[%s1 + $0x418] sm:$0xf]
  %v326 = vld [vmem:[%s1 + $0x41c] sm:$0xf]
  %v327 = vld [vmem:[%s1 + $0x420] sm:$0xf]
  %v328 = vld [vmem:[%s1 + $0x424] sm:$0xf]
  %v329 = vld [vmem:[%s1 + $0x428] sm:$0xf]
  %v330 = vld [vmem:[%s1 + $0x42c] sm:$0xf]
  %v331 = vld [vmem:[%s1 + $0x430] sm:$0xf]
  %v332 = vld [vmem:[%s1 + $0x434] sm:$0xf]
  %v333 = vld [vmem:[%s1 + $0x438] sm:$0xf]
  %v334 = vld [vmem:[%s1 + $0x43c] sm:$0xf]
  %v335 = vld [vmem:[%s1 + $0x440] sm:$0xf]
  %v336 = vld [vmem:[%s1 + $0x444] sm:$0xf]
  %v337 = vld [vmem:[%s1 + $0x448] sm:$0xf]
  %v338 = vld [vmem:[%s1 + $0x44c] sm:$0xf]
  %v339 = vld [vmem:[%s1 + $0x450] sm:$0xf]
  %v340 = vld [vmem:[%s1 + $0x454] sm:$0xf]
  %v341 = vld [vmem:[%s1 + $0x458] sm:$0xf]
  %v342 = vld [vmem:[%s1 + $0x45c] sm:$0xf]
  %v343 = vld [vmem:[%s1 + $0x460] sm:$0xf]
  %v344 = vld [vmem:[%s1 + $0x464] sm:$0xf]
  %v345 = vld [vmem:[%s1 + $0x468] sm:$0xf]
  %v346 = vld [vmem:[%s1 + $0x46c] sm:$0xf]
  %v347 = vld [vmem:[%s1 + $0x470] sm:$0xf]
  %v348 = vld [vmem:[%s1 + $0x474] sm:$0xf]
  %v349 = vld [vmem:[%s1 + $0x478] sm:$0xf]
  %v350 = vld [vmem:[%s1 + $0x47c] sm:$0xf]
  %v351 = vld [vmem:[%s1 + $0x480] sm:$0xf]
  %v352 = vld [vmem:[%s1 + $0x484] sm:$0xf]
  %v353 = vld [vmem:[%s1 + $0x488] sm:$0xf]
  %v354 = vld [vmem:[%s1 + $0x48c] sm:$0xf]
  %v355 = vld [vmem:[%s1 + $0x490] sm:$0xf]
  %v356 = vld [vmem:[%s1 + $0x494] sm:$0xf]
  %v357 = vld [vmem:[%s1 + $0x498] sm:$0xf]
  %v358 = vld [vmem:[%s1 + $0x49c] sm:$0xf]
  %v359 = vld [vmem:[%s1 + $0x4a0] sm:$0xf]
  %v360 = vld [vmem:[%s1 + $0x4a4] sm:$0xf]
  %v361 = vld [vmem:[%s1 + $0x4a8] sm:$0xf]
  %v362 = vld [vmem:[%s1 + $0x4ac] sm:$0xf]
  %v363 = vld [vmem:[%s1 + $0x4b0] sm:$0xf]
  %v364 = vld [vmem:[%s1 + $0x4b4] sm:$0xf]
  %v365 = vld [vmem:[%s1 + $0x4b8] sm:$0xf]
  %v366 = vld [vmem:[%s1 + $0x4bc] sm:$0xf]
  %v367 = vld [vmem:[%s1 + $0x4c0] sm:$0xf]
  %v368 = vld [vmem:[%s1 + $0x4c4] sm:$0xf]
  %v369 = vld [vmem:[%s1 + $0x4c8] sm:$0xf]
  %v370 = vld [vmem:[%s1 + $0x4cc] sm:$0xf]
  %v371 = vld [vmem:[%s1 + $0x4d0] sm:$0xf]
  %v372 = vld [vmem:[%s1 + $0x4d4] sm:$0xf]
  %v373 = vld [vmem:[%s1 + $0x4d8] sm:$0xf]
  %v374 = vld [vmem:[%s1 + $0x4dc] sm:$0xf]
  %v375 = vld [vmem:[%s1 + $0x4e0] sm:$0xf]
  %v376 = vld [vmem:[%s1 + $0x4e4] sm:$0xf]
  %v377 = vld [vmem:[%s1 + $0x4e8] sm:$0xf]
  %v378 = vld [vmem:[%s1 + $0x4ec] sm:$0xf]
  %v379 = vld [vmem:[%s1 + $0x4f0] sm:$0xf]
  %v380 = vld [vmem:[%s1 + $0x4f4] sm:$0xf]
  %v381 = vld [vmem:[%s1 + $0x4f8] sm:$0xf]
  %v382 = vld [vmem:[%s1 + $0x4fc] sm:$0xf]
  %v383 = vld [vmem:[%s1 + $0x500] sm:$0xf]
  %v384 = vld [vmem:[%s1 + $0x504] sm:$0xf]
  %v385 = vld [vmem:[%s1 + $0x508] sm:$0xf]
  %v386 = vld [vmem:[%s1 + $0x50c] sm:$0xf]
  %v387 = vld [vmem:[%s1 + $0x510] sm:$0xf]
  %v388 = vld [vmem:[%s1 + $0x514] sm:$0xf]
  %v389 = vld [vmem:[%s1 + $0x518] sm:$0xf]
  %v390 = vld [vmem:[%s1 + $0x51c] sm:$0xf]
  %v391 = vld [vmem:[%s1 + $0x520] sm:$0xf]
  %v392 = vld [vmem:[%s1 + $0x524] sm:$0xf]
  %v393 = vld [vmem:[%s1 + $0x528] sm:$0xf]
  %v394 = vld [vmem:[%s1 + $0x52c] sm:$0xf]
  %v395 = vld [vmem:[%s1 + $0x530] sm:$0xf]
  %v396 = vld [vmem:[%s1 + $0x534] sm:$0xf]
  %v397 = vld [vmem:[%s1 + $0x538] sm:$0xf]
  %v398 = vld [vmem:[%s1 + $0x53c] sm:$0xf]
  %v399 = vld [vmem:[%s1 + $0x540] sm:$0xf]
  %v400 = vld [vmem:[%s1 + $0x544] sm:$0xf]
  %v401 = vld [vmem:[%s1 + $0x548] sm:$0xf]
  %v402 = vld [vmem:[%s1 + $0x54c] sm:$0xf]
  %v403 = vld [vmem:[%s1 + $0x550] sm:$0xf]
  %v404 = vld [vmem:[%s1 + $0x554] sm:$0xf]
  %v405 = vld [vmem:[%s1 + $0x558] sm:$0xf]
  %v406 = vld [vmem:[%s1 + $0x55c] sm:$0xf]
  %v407 = vld [vmem:[%s1 + $0x560] sm:$0xf]
  %v408 = vld [vmem:[%s1 + $0x564] sm:$0xf]
  %v409 = vld [vmem:[%s1 + $0x568] sm:$0xf]
  %v410 = vld [vmem:[%s1 + $0x56c] sm:$0xf]
  %v411 = vld [vmem:[%s1 + $0x570] sm:$0xf]
  %v412 = vld [vmem:[%s1 + $0x574] sm:$0xf]
  %v413 = vld [vmem:[%s1 + $0x578] sm:$0xf]
  %v414 = vld [vmem:[%s1 + $0x57c] sm:$0xf]
  %v415 = vld [vmem:[%s1 + $0x580] sm:$0xf]
  %v416 = vld [vmem:[%s1 + $0x584] sm:$0xf]
  %v417 = vld [vmem:[%s1 + $0x588] sm:$0xf]
  %v418 = vld [vmem:[%s1 + $0x58c] sm:$0xf]
  %v419 = vld [vmem:[%s1 + $0x590] sm:$0xf]
  %v420 = vld [vmem:[%s1 + $0x594] sm:$0xf]
  %v421 = vld [vmem:[%s1 + $0x598] sm:$0xf]
  %v422 = vld [vmem:[%s1 + $0x59c] sm:$0xf]
  %v423 = vld [vmem:[%s1 + $0x5a0] sm:$0xf]
  %v424 = vld [vmem:[%s1 + $0x5a4] sm:$0xf]
  %v425 = vld [vmem:[%s1 + $0x5a8] sm:$0xf]
  %v426 = vld [vmem:[%s1 + $0x5ac] sm:$0xf]
  %v427 = vld [vmem:[%s1 + $0x5b0] sm:$0xf]
  %v428 = vld [vmem:[%s1 + $0x5b4] sm:$0xf]
  %v429 = vld [vmem:[%s1 + $0x5b8] sm:$0xf]
  %v430 = vld [vmem:[%s1 + $0x5bc] sm:$0xf]
  %v431 = vld [vmem:[%s1 + $0x5c0] sm:$0xf]
  %v432 = vld [vmem:[%s1 + $0x5c4] sm:$0xf]
  %v433 = vld [vmem:[%s1 + $0x5c8] sm:$0xf]
  %v434 = vld [vmem:[%s1 + $0x5cc] sm:$0xf]
  %v435 = vld [vmem:[%s1 + $0x5d0] sm:$0xf]
  %v436 = vld [vmem:[%s1 + $0x5d4] sm:$0xf]
  %v437 = vld [vmem:[%s1 + $0x5d8] sm:$0xf]
  %v438 = vld [vmem:[%s1 + $0x5dc] sm:$0xf]
  %v439 = vld [vmem:[%s1 + $0x5e0] sm:$0xf]
  %v440 = vld [vmem:[%s1 + $0x5e4] sm:$0xf]
  %v441 = vld [vmem:[%s1 + $0x5e8] sm:$0xf]
  %v442 = vld [vmem:[%s1 + $0x5ec] sm:$0xf]
  %v443 = vld [vmem:[%s1 + $0x5f0] sm:$0xf]
  %v444 = vld [vmem:[%s1 + $0x5f4] sm:$0xf]
  %v445 = vld [vmem:[%s1 + $0x5f8] sm:$0xf]
  %v446 = vld [vmem:[%s1 + $0x5fc] sm:$0xf]
  %v447 = vld [vmem:[%s2] sm:$0x1]
  %v449 = vlaneseq
  %v450 = vshrl.u32 %v449, 7
  %v451 = vsub.s32 0, %v450
  %v452 = vrot.slane %v447, %v451
  %v478 = vunpack.c.l.b16 %v39
  %v479 = vunpack.c.h.b16 %v39
  %v480 = vunpack.c.l.b16 %v40
  %v481 = vunpack.c.h.b16 %v40
  %v482 = vunpack.c.l.b16 %v41
  %v483 = vunpack.c.h.b16 %v41
  %v484 = vunpack.c.l.b16 %v42
  %v485 = vunpack.c.h.b16 %v42
  %v486 = vunpack.c.l.b16 %v43
  %v487 = vunpack.c.h.b16 %v43
  %v488 = vunpack.c.l.b16 %v44
  %v489 = vunpack.c.h.b16 %v44
  %v490 = vunpack.c.l.b16 %v45
  %v491 = vunpack.c.h.b16 %v45
  %v492 = vunpack.c.l.b16 %v46
  %v493 = vunpack.c.h.b16 %v46
  %v494 = vunpack.c.l.b16 %v47
  %v495 = vunpack.c.h.b16 %v47
  %v496 = vunpack.c.l.b16 %v48
  %v497 = vunpack.c.h.b16 %v48
  %v498 = vunpack.c.l.b16 %v49
  %v499 = vunpack.c.h.b16 %v49
  %v500 = vunpack.c.l.b16 %v50
  %v501 = vunpack.c.h.b16 %v50
  %v502 = vunpack.c.l.b16 %v51
  %v503 = vunpack.c.h.b16 %v51
  %v504 = vunpack.c.l.b16 %v52
  %v505 = vunpack.c.h.b16 %v52
  %v506 = vunpack.c.l.b16 %v53
  %v507 = vunpack.c.h.b16 %v53
  %v508 = vunpack.c.l.b16 %v54
  %v509 = vunpack.c.h.b16 %v54
  %v510 = vunpack.c.l.b16 %v55
  %v511 = vunpack.c.h.b16 %v55
  %v512 = vunpack.c.l.b16 %v56
  %v513 = vunpack.c.h.b16 %v56
  %v514 = vunpack.c.l.b16 %v57
  %v515 = vunpack.c.h.b16 %v57
  %v516 = vunpack.c.l.b16 %v58
  %v517 = vunpack.c.h.b16 %v58
  %v518 = vunpack.c.l.b16 %v59
  %v519 = vunpack.c.h.b16 %v59
  %v520 = vunpack.c.l.b16 %v60
  %v521 = vunpack.c.h.b16 %v60
  %v522 = vunpack.c.l.b16 %v61
  %v523 = vunpack.c.h.b16 %v61
  %v524 = vunpack.c.l.b16 %v62
  %v525 = vunpack.c.h.b16 %v62
  %v526 = vpack.c.b16 %v502, %v478
  %v527 = vpack.c.b16 %v503, %v479
  %v528 = vpack.c.b16 %v504, %v480
  %v529 = vpack.c.b16 %v505, %v481
  %v530 = vpack.c.b16 %v506, %v482
  %v531 = vpack.c.b16 %v507, %v483
  %v532 = vpack.c.b16 %v508, %v484
  %v533 = vpack.c.b16 %v509, %v485
  %v534 = vpack.c.b16 %v510, %v486
  %v535 = vpack.c.b16 %v511, %v487
  %v536 = vpack.c.b16 %v512, %v488
  %v537 = vpack.c.b16 %v513, %v489
  %v538 = vpack.c.b16 %v514, %v490
  %v539 = vpack.c.b16 %v515, %v491
  %v540 = vpack.c.b16 %v516, %v492
  %v541 = vpack.c.b16 %v517, %v493
  %v542 = vpack.c.b16 %v518, %v494
  %v543 = vpack.c.b16 %v519, %v495
  %v544 = vpack.c.b16 %v520, %v496
  %v545 = vpack.c.b16 %v521, %v497
  %v546 = vpack.c.b16 %v522, %v498
  %v547 = vpack.c.b16 %v523, %v499
  %v548 = vpack.c.b16 %v524, %v500
  %v549 = vpack.c.b16 %v525, %v501
  %v958 = vunpack.c.l.b16 %v63
  %v959 = vunpack.c.l.b16 %v64
  %v960 = vunpack.c.l.b16 %v65
  %v961 = vunpack.c.l.b16 %v66
  %v962 = vunpack.c.l.b16 %v67
  %v963 = vunpack.c.l.b16 %v68
  %v964 = vunpack.c.l.b16 %v69
  %v965 = vunpack.c.l.b16 %v70
  %v966 = vunpack.c.l.b16 %v71
  %v967 = vunpack.c.l.b16 %v72
  %v968 = vunpack.c.l.b16 %v73
  %v969 = vunpack.c.l.b16 %v74
  %v970 = vunpack.c.l.b16 %v75
  %v971 = vunpack.c.l.b16 %v76
  %v972 = vunpack.c.l.b16 %v77
  %v973 = vunpack.c.l.b16 %v78
  %v974 = vunpack.c.l.b16 %v79
  %v975 = vunpack.c.l.b16 %v80
  %v976 = vunpack.c.l.b16 %v81
  %v977 = vunpack.c.l.b16 %v82
  %v978 = vunpack.c.l.b16 %v83
  %v979 = vunpack.c.l.b16 %v84
  %v980 = vunpack.c.l.b16 %v85
  %v981 = vunpack.c.l.b16 %v86
  %v982 = vunpack.c.l.b16 %v87
  %v983 = vunpack.c.l.b16 %v88
  %v984 = vunpack.c.l.b16 %v89
  %v985 = vunpack.c.l.b16 %v90
  %v986 = vunpack.c.l.b16 %v91
  %v987 = vunpack.c.l.b16 %v92
  %v988 = vunpack.c.l.b16 %v93
  %v989 = vunpack.c.l.b16 %v94
  %v990 = vunpack.c.l.b16 %v95
  %v991 = vunpack.c.l.b16 %v96
  %v992 = vunpack.c.l.b16 %v97
  %v993 = vunpack.c.l.b16 %v98
  %v994 = vunpack.c.l.b16 %v99
  %v995 = vunpack.c.l.b16 %v100
  %v996 = vunpack.c.l.b16 %v101
  %v997 = vunpack.c.l.b16 %v102
  %v998 = vunpack.c.l.b16 %v103
  %v999 = vunpack.c.l.b16 %v104
  %v1000 = vunpack.c.l.b16 %v105
  %v1001 = vunpack.c.l.b16 %v106
  %v1002 = vunpack.c.l.b16 %v107
  %v1003 = vunpack.c.l.b16 %v108
  %v1004 = vunpack.c.l.b16 %v109
  %v1005 = vunpack.c.l.b16 %v110
  %v1006 = vunpack.c.l.b16 %v111
  %v1007 = vunpack.c.l.b16 %v112
  %v1008 = vunpack.c.l.b16 %v113
  %v1009 = vunpack.c.l.b16 %v114
  %v1010 = vunpack.c.l.b16 %v115
  %v1011 = vunpack.c.l.b16 %v116
  %v1012 = vunpack.c.l.b16 %v117
  %v1013 = vunpack.c.l.b16 %v118
  %v1014 = vunpack.c.l.b16 %v119
  %v1015 = vunpack.c.l.b16 %v120
  %v1016 = vunpack.c.l.b16 %v121
  %v1017 = vunpack.c.l.b16 %v122
  %v1018 = vunpack.c.l.b16 %v123
  %v1019 = vunpack.c.l.b16 %v124
  %v1020 = vunpack.c.l.b16 %v125
  %v1021 = vunpack.c.l.b16 %v126
  %v1022 = vunpack.c.l.b16 %v127
  %v1023 = vunpack.c.l.b16 %v128
  %v1024 = vunpack.c.l.b16 %v129
  %v1025 = vunpack.c.l.b16 %v130
  %v1026 = vunpack.c.l.b16 %v131
  %v1027 = vunpack.c.l.b16 %v132
  %v1028 = vunpack.c.l.b16 %v133
  %v1029 = vunpack.c.l.b16 %v134
  %v1030 = vunpack.c.l.b16 %v135
  %v1031 = vunpack.c.l.b16 %v136
  %v1032 = vunpack.c.l.b16 %v137
  %v1033 = vunpack.c.l.b16 %v138
  %v1034 = vunpack.c.l.b16 %v139
  %v1035 = vunpack.c.l.b16 %v140
  %v1036 = vunpack.c.l.b16 %v141
  %v1037 = vunpack.c.l.b16 %v142
  %v1038 = vunpack.c.l.b16 %v143
  %v1039 = vunpack.c.l.b16 %v144
  %v1040 = vunpack.c.l.b16 %v145
  %v1041 = vunpack.c.l.b16 %v146
  %v1042 = vunpack.c.l.b16 %v147
  %v1043 = vunpack.c.l.b16 %v148
  %v1044 = vunpack.c.l.b16 %v149
  %v1045 = vunpack.c.l.b16 %v150
  %v1046 = vunpack.c.l.b16 %v151
  %v1047 = vunpack.c.l.b16 %v152
  %v1048 = vunpack.c.l.b16 %v153
  %v1049 = vunpack.c.l.b16 %v154
  %v1050 = vunpack.c.l.b16 %v155
  %v1051 = vunpack.c.l.b16 %v156
  %v1052 = vunpack.c.l.b16 %v157
  %v1053 = vunpack.c.l.b16 %v158
  %v1054 = vunpack.c.l.b16 %v159
  %v1055 = vunpack.c.l.b16 %v160
  %v1056 = vunpack.c.l.b16 %v161
  %v1057 = vunpack.c.l.b16 %v162
  %v1058 = vunpack.c.l.b16 %v163
  %v1059 = vunpack.c.l.b16 %v164
  %v1060 = vunpack.c.l.b16 %v165
  %v1061 = vunpack.c.l.b16 %v166
  %v1062 = vunpack.c.l.b16 %v167
  %v1063 = vunpack.c.l.b16 %v168
  %v1064 = vunpack.c.l.b16 %v169
  %v1065 = vunpack.c.l.b16 %v170
  %v1066 = vunpack.c.l.b16 %v171
  %v1067 = vunpack.c.l.b16 %v172
  %v1068 = vunpack.c.l.b16 %v173
  %v1069 = vunpack.c.l.b16 %v174
  %v1070 = vunpack.c.l.b16 %v175
  %v1071 = vunpack.c.l.b16 %v176
  %v1072 = vunpack.c.l.b16 %v177
  %v1073 = vunpack.c.l.b16 %v178
  %v1074 = vunpack.c.l.b16 %v179
  %v1075 = vunpack.c.l.b16 %v180
  %v1076 = vunpack.c.l.b16 %v181
  %v1077 = vunpack.c.l.b16 %v182
  %v1078 = vunpack.c.l.b16 %v183
  %v1079 = vunpack.c.l.b16 %v184
  %v1080 = vunpack.c.l.b16 %v185
  %v1081 = vunpack.c.l.b16 %v186
  %v1082 = vunpack.c.l.b16 %v187
  %v1083 = vunpack.c.l.b16 %v188
  %v1084 = vunpack.c.l.b16 %v189
  %v1085 = vunpack.c.l.b16 %v190
  %v1086 = vunpack.c.l.b16 %v191
  %v1087 = vunpack.c.l.b16 %v192
  %v1088 = vunpack.c.l.b16 %v193
  %v1089 = vunpack.c.l.b16 %v194
  %v1090 = vunpack.c.l.b16 %v195
  %v1091 = vunpack.c.l.b16 %v196
  %v1092 = vunpack.c.l.b16 %v197
  %v1093 = vunpack.c.l.b16 %v198
  %v1094 = vunpack.c.l.b16 %v199
  %v1095 = vunpack.c.l.b16 %v200
  %v1096 = vunpack.c.l.b16 %v201
  %v1097 = vunpack.c.l.b16 %v202
  %v1098 = vunpack.c.l.b16 %v203
  %v1099 = vunpack.c.l.b16 %v204
  %v1100 = vunpack.c.l.b16 %v205
  %v1101 = vunpack.c.l.b16 %v206
  %v1102 = vunpack.c.l.b16 %v207
  %v1103 = vunpack.c.l.b16 %v208
  %v1104 = vunpack.c.l.b16 %v209
  %v1105 = vunpack.c.l.b16 %v210
  %v1106 = vunpack.c.l.b16 %v211
  %v1107 = vunpack.c.l.b16 %v212
  %v1108 = vunpack.c.l.b16 %v213
  %v1109 = vunpack.c.l.b16 %v214
  %v1110 = vunpack.c.l.b16 %v215
  %v1111 = vunpack.c.l.b16 %v216
  %v1112 = vunpack.c.l.b16 %v217
  %v1113 = vunpack.c.l.b16 %v218
  %v1114 = vunpack.c.l.b16 %v219
  %v1115 = vunpack.c.l.b16 %v220
  %v1116 = vunpack.c.l.b16 %v221
  %v1117 = vunpack.c.l.b16 %v222
  %v1118 = vunpack.c.l.b16 %v223
  %v1119 = vunpack.c.l.b16 %v224
  %v1120 = vunpack.c.l.b16 %v225
  %v1121 = vunpack.c.l.b16 %v226
  %v1122 = vunpack.c.l.b16 %v227
  %v1123 = vunpack.c.l.b16 %v228
  %v1124 = vunpack.c.l.b16 %v229
  %v1125 = vunpack.c.l.b16 %v230
  %v1126 = vunpack.c.l.b16 %v231
  %v1127 = vunpack.c.l.b16 %v232
  %v1128 = vunpack.c.l.b16 %v233
  %v1129 = vunpack.c.l.b16 %v234
  %v1130 = vunpack.c.l.b16 %v235
  %v1131 = vunpack.c.l.b16 %v236
  %v1132 = vunpack.c.l.b16 %v237
  %v1133 = vunpack.c.l.b16 %v238
  %v1134 = vunpack.c.l.b16 %v239
  %v1135 = vunpack.c.l.b16 %v240
  %v1136 = vunpack.c.l.b16 %v241
  %v1137 = vunpack.c.l.b16 %v242
  %v1138 = vunpack.c.l.b16 %v243
  %v1139 = vunpack.c.l.b16 %v244
  %v1140 = vunpack.c.l.b16 %v245
  %v1141 = vunpack.c.l.b16 %v246
  %v1142 = vunpack.c.l.b16 %v247
  %v1143 = vunpack.c.l.b16 %v248
  %v1144 = vunpack.c.l.b16 %v249
  %v1145 = vunpack.c.l.b16 %v250
  %v1146 = vunpack.c.l.b16 %v251
  %v1147 = vunpack.c.l.b16 %v252
  %v1148 = vunpack.c.l.b16 %v253
  %v1149 = vunpack.c.l.b16 %v254
  %v1150 = vunpack.c.l.b16 %v255
  %v1151 = vunpack.c.l.b16 %v256
  %v1152 = vunpack.c.l.b16 %v257
  %v1153 = vunpack.c.l.b16 %v258
  %v1154 = vunpack.c.l.b16 %v259
  %v1155 = vunpack.c.l.b16 %v260
  %v1156 = vunpack.c.l.b16 %v261
  %v1157 = vunpack.c.l.b16 %v262
  %v1158 = vunpack.c.l.b16 %v263
  %v1159 = vunpack.c.l.b16 %v264
  %v1160 = vunpack.c.l.b16 %v265
  %v1161 = vunpack.c.l.b16 %v266
  %v1162 = vunpack.c.l.b16 %v267
  %v1163 = vunpack.c.l.b16 %v268
  %v1164 = vunpack.c.l.b16 %v269
  %v1165 = vunpack.c.l.b16 %v270
  %v1166 = vunpack.c.l.b16 %v271
  %v1167 = vunpack.c.l.b16 %v272
  %v1168 = vunpack.c.l.b16 %v273
  %v1169 = vunpack.c.l.b16 %v274
  %v1170 = vunpack.c.l.b16 %v275
  %v1171 = vunpack.c.l.b16 %v276
  %v1172 = vunpack.c.l.b16 %v277
  %v1173 = vunpack.c.l.b16 %v278
  %v1174 = vunpack.c.l.b16 %v279
  %v1175 = vunpack.c.l.b16 %v280
  %v1176 = vunpack.c.l.b16 %v281
  %v1177 = vunpack.c.l.b16 %v282
  %v1178 = vunpack.c.l.b16 %v283
  %v1179 = vunpack.c.l.b16 %v284
  %v1180 = vunpack.c.l.b16 %v285
  %v1181 = vunpack.c.l.b16 %v286
  %v1182 = vunpack.c.l.b16 %v287
  %v1183 = vunpack.c.l.b16 %v288
  %v1184 = vunpack.c.l.b16 %v289
  %v1185 = vunpack.c.l.b16 %v290
  %v1186 = vunpack.c.l.b16 %v291
  %v1187 = vunpack.c.l.b16 %v292
  %v1188 = vunpack.c.l.b16 %v293
  %v1189 = vunpack.c.l.b16 %v294
  %v1190 = vunpack.c.l.b16 %v295
  %v1191 = vunpack.c.l.b16 %v296
  %v1192 = vunpack.c.l.b16 %v297
  %v1193 = vunpack.c.l.b16 %v298
  %v1194 = vunpack.c.l.b16 %v299
  %v1195 = vunpack.c.l.b16 %v300
  %v1196 = vunpack.c.l.b16 %v301
  %v1197 = vunpack.c.l.b16 %v302
  %v1198 = vunpack.c.l.b16 %v303
  %v1199 = vunpack.c.l.b16 %v304
  %v1200 = vunpack.c.l.b16 %v305
  %v1201 = vunpack.c.l.b16 %v306
  %v1202 = vunpack.c.l.b16 %v307
  %v1203 = vunpack.c.l.b16 %v308
  %v1204 = vunpack.c.l.b16 %v309
  %v1205 = vunpack.c.l.b16 %v310
  %v1206 = vunpack.c.l.b16 %v311
  %v1207 = vunpack.c.l.b16 %v312
  %v1208 = vunpack.c.l.b16 %v313
  %v1209 = vunpack.c.l.b16 %v314
  %v1210 = vunpack.c.l.b16 %v315
  %v1211 = vunpack.c.l.b16 %v316
  %v1212 = vunpack.c.l.b16 %v317
  %v1213 = vunpack.c.l.b16 %v318
  %v1214 = vunpack.c.l.b16 %v319
  %v1215 = vunpack.c.l.b16 %v320
  %v1216 = vunpack.c.l.b16 %v321
  %v1217 = vunpack.c.l.b16 %v322
  %v1218 = vunpack.c.l.b16 %v323
  %v1219 = vunpack.c.l.b16 %v324
  %v1220 = vunpack.c.l.b16 %v325
  %v1221 = vunpack.c.l.b16 %v326
  %v1222 = vunpack.c.l.b16 %v327
  %v1223 = vunpack.c.l.b16 %v328
  %v1224 = vunpack.c.l.b16 %v329
  %v1225 = vunpack.c.l.b16 %v330
  %v1226 = vunpack.c.l.b16 %v331
  %v1227 = vunpack.c.l.b16 %v332
  %v1228 = vunpack.c.l.b16 %v333
  %v1229 = vunpack.c.l.b16 %v334
  %v1230 = vunpack.c.l.b16 %v335
  %v1231 = vunpack.c.l.b16 %v336
  %v1232 = vunpack.c.l.b16 %v337
  %v1233 = vunpack.c.l.b16 %v338
  %v1234 = vunpack.c.l.b16 %v339
  %v1235 = vunpack.c.l.b16 %v340
  %v1236 = vunpack.c.l.b16 %v341
  %v1237 = vunpack.c.l.b16 %v342
  %v1238 = vunpack.c.l.b16 %v343
  %v1239 = vunpack.c.l.b16 %v344
  %v1240 = vunpack.c.l.b16 %v345
  %v1241 = vunpack.c.l.b16 %v346
  %v1242 = vunpack.c.l.b16 %v347
  %v1243 = vunpack.c.l.b16 %v348
  %v1244 = vunpack.c.l.b16 %v349
  %v1245 = vunpack.c.l.b16 %v350
  %v1246 = vunpack.c.l.b16 %v351
  %v1247 = vunpack.c.l.b16 %v352
  %v1248 = vunpack.c.l.b16 %v353
  %v1249 = vunpack.c.l.b16 %v354
  %v1250 = vunpack.c.l.b16 %v355
  %v1251 = vunpack.c.l.b16 %v356
  %v1252 = vunpack.c.l.b16 %v357
  %v1253 = vunpack.c.l.b16 %v358
  %v1254 = vunpack.c.l.b16 %v359
  %v1255 = vunpack.c.l.b16 %v360
  %v1256 = vunpack.c.l.b16 %v361
  %v1257 = vunpack.c.l.b16 %v362
  %v1258 = vunpack.c.l.b16 %v363
  %v1259 = vunpack.c.l.b16 %v364
  %v1260 = vunpack.c.l.b16 %v365
  %v1261 = vunpack.c.l.b16 %v366
  %v1262 = vunpack.c.l.b16 %v367
  %v1263 = vunpack.c.l.b16 %v368
  %v1264 = vunpack.c.l.b16 %v369
  %v1265 = vunpack.c.l.b16 %v370
  %v1266 = vunpack.c.l.b16 %v371
  %v1267 = vunpack.c.l.b16 %v372
  %v1268 = vunpack.c.l.b16 %v373
  %v1269 = vunpack.c.l.b16 %v374
  %v1270 = vunpack.c.l.b16 %v375
  %v1271 = vunpack.c.l.b16 %v376
  %v1272 = vunpack.c.l.b16 %v377
  %v1273 = vunpack.c.l.b16 %v378
  %v1274 = vunpack.c.l.b16 %v379
  %v1275 = vunpack.c.l.b16 %v380
  %v1276 = vunpack.c.l.b16 %v381
  %v1277 = vunpack.c.l.b16 %v382
  %v1278 = vunpack.c.l.b16 %v383
  %v1279 = vunpack.c.l.b16 %v384
  %v1280 = vunpack.c.l.b16 %v385
  %v1281 = vunpack.c.l.b16 %v386
  %v1282 = vunpack.c.l.b16 %v387
  %v1283 = vunpack.c.l.b16 %v388
  %v1284 = vunpack.c.l.b16 %v389
  %v1285 = vunpack.c.l.b16 %v390
  %v1286 = vunpack.c.l.b16 %v391
  %v1287 = vunpack.c.l.b16 %v392
  %v1288 = vunpack.c.l.b16 %v393
  %v1289 = vunpack.c.l.b16 %v394
  %v1290 = vunpack.c.l.b16 %v395
  %v1291 = vunpack.c.l.b16 %v396
  %v1292 = vunpack.c.l.b16 %v397
  %v1293 = vunpack.c.l.b16 %v398
  %v1294 = vunpack.c.l.b16 %v399
  %v1295 = vunpack.c.l.b16 %v400
  %v1296 = vunpack.c.l.b16 %v401
  %v1297 = vunpack.c.l.b16 %v402
  %v1298 = vunpack.c.l.b16 %v403
  %v1299 = vunpack.c.l.b16 %v404
  %v1300 = vunpack.c.l.b16 %v405
  %v1301 = vunpack.c.l.b16 %v406
  %v1302 = vunpack.c.l.b16 %v407
  %v1303 = vunpack.c.l.b16 %v408
  %v1304 = vunpack.c.l.b16 %v409
  %v1305 = vunpack.c.l.b16 %v410
  %v1306 = vunpack.c.l.b16 %v411
  %v1307 = vunpack.c.l.b16 %v412
  %v1308 = vunpack.c.l.b16 %v413
  %v1309 = vunpack.c.l.b16 %v414
  %v1310 = vunpack.c.l.b16 %v415
  %v1311 = vunpack.c.l.b16 %v416
  %v1312 = vunpack.c.l.b16 %v417
  %v1313 = vunpack.c.l.b16 %v418
  %v1314 = vunpack.c.l.b16 %v419
  %v1315 = vunpack.c.l.b16 %v420
  %v1316 = vunpack.c.l.b16 %v421
  %v1317 = vunpack.c.l.b16 %v422
  %v1318 = vunpack.c.l.b16 %v423
  %v1319 = vunpack.c.l.b16 %v424
  %v1320 = vunpack.c.l.b16 %v425
  %v1321 = vunpack.c.l.b16 %v426
  %v1322 = vunpack.c.l.b16 %v427
  %v1323 = vunpack.c.l.b16 %v428
  %v1324 = vunpack.c.l.b16 %v429
  %v1325 = vunpack.c.l.b16 %v430
  %v1326 = vunpack.c.l.b16 %v431
  %v1327 = vunpack.c.l.b16 %v432
  %v1328 = vunpack.c.l.b16 %v433
  %v1329 = vunpack.c.l.b16 %v434
  %v1330 = vunpack.c.l.b16 %v435
  %v1331 = vunpack.c.l.b16 %v436
  %v1332 = vunpack.c.l.b16 %v437
  %v1333 = vunpack.c.l.b16 %v438
  %v1334 = vunpack.c.l.b16 %v439
  %v1335 = vunpack.c.l.b16 %v440
  %v1336 = vunpack.c.l.b16 %v441
  %v1337 = vunpack.c.l.b16 %v442
  %v1338 = vunpack.c.l.b16 %v443
  %v1339 = vunpack.c.l.b16 %v444
  %v1340 = vunpack.c.l.b16 %v445
  %v1341 = vunpack.c.l.b16 %v446
  %v1342 = vpack.c.b16 %v959, %v958
  %v1343 = vpack.c.b16 %v961, %v960
  %v1344 = vpack.c.b16 %v963, %v962
  %v1345 = vpack.c.b16 %v965, %v964
  %v1346 = vpack.c.b16 %v967, %v966
  %v1347 = vpack.c.b16 %v969, %v968
  %v1348 = vpack.c.b16 %v971, %v970
  %v1349 = vpack.c.b16 %v973, %v972
  %v1350 = vpack.c.b16 %v975, %v974
  %v1351 = vpack.c.b16 %v977, %v976
  %v1352 = vpack.c.b16 %v979, %v978
  %v1353 = vpack.c.b16 %v981, %v980
  %v1354 = vpack.c.b16 %v983, %v982
  %v1355 = vpack.c.b16 %v985, %v984
  %v1356 = vpack.c.b16 %v987, %v986
  %v1357 = vpack.c.b16 %v989, %v988
  %v1358 = vpack.c.b16 %v991, %v990
  %v1359 = vpack.c.b16 %v993, %v992
  %v1360 = vpack.c.b16 %v995, %v994
  %v1361 = vpack.c.b16 %v997, %v996
  %v1362 = vpack.c.b16 %v999, %v998
  %v1363 = vpack.c.b16 %v1001, %v1000
  %v1364 = vpack.c.b16 %v1003, %v1002
  %v1365 = vpack.c.b16 %v1005, %v1004
  %v1366 = vpack.c.b16 %v1007, %v1006
  %v1367 = vpack.c.b16 %v1009, %v1008
  %v1368 = vpack.c.b16 %v1011, %v1010
  %v1369 = vpack.c.b16 %v1013, %v1012
  %v1370 = vpack.c.b16 %v1015, %v1014
  %v1371 = vpack.c.b16 %v1017, %v1016
  %v1372 = vpack.c.b16 %v1019, %v1018
  %v1373 = vpack.c.b16 %v1021, %v1020
  %v1374 = vpack.c.b16 %v1023, %v1022
  %v1375 = vpack.c.b16 %v1025, %v1024
  %v1376 = vpack.c.b16 %v1027, %v1026
  %v1377 = vpack.c.b16 %v1029, %v1028
  %v1378 = vpack.c.b16 %v1031, %v1030
  %v1379 = vpack.c.b16 %v1033, %v1032
  %v1380 = vpack.c.b16 %v1035, %v1034
  %v1381 = vpack.c.b16 %v1037, %v1036
  %v1382 = vpack.c.b16 %v1039, %v1038
  %v1383 = vpack.c.b16 %v1041, %v1040
  %v1384 = vpack.c.b16 %v1043, %v1042
  %v1385 = vpack.c.b16 %v1045, %v1044
  %v1386 = vpack.c.b16 %v1047, %v1046
  %v1387 = vpack.c.b16 %v1049, %v1048
  %v1388 = vpack.c.b16 %v1051, %v1050
  %v1389 = vpack.c.b16 %v1053, %v1052
  %v1390 = vpack.c.b16 %v1055, %v1054
  %v1391 = vpack.c.b16 %v1057, %v1056
  %v1392 = vpack.c.b16 %v1059, %v1058
  %v1393 = vpack.c.b16 %v1061, %v1060
  %v1394 = vpack.c.b16 %v1063, %v1062
  %v1395 = vpack.c.b16 %v1065, %v1064
  %v1396 = vpack.c.b16 %v1067, %v1066
  %v1397 = vpack.c.b16 %v1069, %v1068
  %v1398 = vpack.c.b16 %v1071, %v1070
  %v1399 = vpack.c.b16 %v1073, %v1072
  %v1400 = vpack.c.b16 %v1075, %v1074
  %v1401 = vpack.c.b16 %v1077, %v1076
  %v1402 = vpack.c.b16 %v1079, %v1078
  %v1403 = vpack.c.b16 %v1081, %v1080
  %v1404 = vpack.c.b16 %v1083, %v1082
  %v1405 = vpack.c.b16 %v1085, %v1084
  %v1406 = vpack.c.b16 %v1087, %v1086
  %v1407 = vpack.c.b16 %v1089, %v1088
  %v1408 = vpack.c.b16 %v1091, %v1090
  %v1409 = vpack.c.b16 %v1093, %v1092
  %v1410 = vpack.c.b16 %v1095, %v1094
  %v1411 = vpack.c.b16 %v1097, %v1096
  %v1412 = vpack.c.b16 %v1099, %v1098
  %v1413 = vpack.c.b16 %v1101, %v1100
  %v1414 = vpack.c.b16 %v1103, %v1102
  %v1415 = vpack.c.b16 %v1105, %v1104
  %v1416 = vpack.c.b16 %v1107, %v1106
  %v1417 = vpack.c.b16 %v1109, %v1108
  %v1418 = vpack.c.b16 %v1111, %v1110
  %v1419 = vpack.c.b16 %v1113, %v1112
  %v1420 = vpack.c.b16 %v1115, %v1114
  %v1421 = vpack.c.b16 %v1117, %v1116
  %v1422 = vpack.c.b16 %v1119, %v1118
  %v1423 = vpack.c.b16 %v1121, %v1120
  %v1424 = vpack.c.b16 %v1123, %v1122
  %v1425 = vpack.c.b16 %v1125, %v1124
  %v1426 = vpack.c.b16 %v1127, %v1126
  %v1427 = vpack.c.b16 %v1129, %v1128
  %v1428 = vpack.c.b16 %v1131, %v1130
  %v1429 = vpack.c.b16 %v1133, %v1132
  %v1430 = vpack.c.b16 %v1135, %v1134
  %v1431 = vpack.c.b16 %v1137, %v1136
  %v1432 = vpack.c.b16 %v1139, %v1138
  %v1433 = vpack.c.b16 %v1141, %v1140
  %v1434 = vpack.c.b16 %v1143, %v1142
  %v1435 = vpack.c.b16 %v1145, %v1144
  %v1436 = vpack.c.b16 %v1147, %v1146
  %v1437 = vpack.c.b16 %v1149, %v1148
  %v1438 = vpack.c.b16 %v1151, %v1150
  %v1439 = vpack.c.b16 %v1153, %v1152
  %v1440 = vpack.c.b16 %v1155, %v1154
  %v1441 = vpack.c.b16 %v1157, %v1156
  %v1442 = vpack.c.b16 %v1159, %v1158
  %v1443 = vpack.c.b16 %v1161, %v1160
  %v1444 = vpack.c.b16 %v1163, %v1162
  %v1445 = vpack.c.b16 %v1165, %v1164
  %v1446 = vpack.c.b16 %v1167, %v1166
  %v1447 = vpack.c.b16 %v1169, %v1168
  %v1448 = vpack.c.b16 %v1171, %v1170
  %v1449 = vpack.c.b16 %v1173, %v1172
  %v1450 = vpack.c.b16 %v1175, %v1174
  %v1451 = vpack.c.b16 %v1177, %v1176
  %v1452 = vpack.c.b16 %v1179, %v1178
  %v1453 = vpack.c.b16 %v1181, %v1180
  %v1454 = vpack.c.b16 %v1183, %v1182
  %v1455 = vpack.c.b16 %v1185, %v1184
  %v1456 = vpack.c.b16 %v1187, %v1186
  %v1457 = vpack.c.b16 %v1189, %v1188
  %v1458 = vpack.c.b16 %v1191, %v1190
  %v1459 = vpack.c.b16 %v1193, %v1192
  %v1460 = vpack.c.b16 %v1195, %v1194
  %v1461 = vpack.c.b16 %v1197, %v1196
  %v1462 = vpack.c.b16 %v1199, %v1198
  %v1463 = vpack.c.b16 %v1201, %v1200
  %v1464 = vpack.c.b16 %v1203, %v1202
  %v1465 = vpack.c.b16 %v1205, %v1204
  %v1466 = vpack.c.b16 %v1207, %v1206
  %v1467 = vpack.c.b16 %v1209, %v1208
  %v1468 = vpack.c.b16 %v1211, %v1210
  %v1469 = vpack.c.b16 %v1213, %v1212
  %v1470 = vpack.c.b16 %v1215, %v1214
  %v1471 = vpack.c.b16 %v1217, %v1216
  %v1472 = vpack.c.b16 %v1219, %v1218
  %v1473 = vpack.c.b16 %v1221, %v1220
  %v1474 = vpack.c.b16 %v1223, %v1222
  %v1475 = vpack.c.b16 %v1225, %v1224
  %v1476 = vpack.c.b16 %v1227, %v1226
  %v1477 = vpack.c.b16 %v1229, %v1228
  %v1478 = vpack.c.b16 %v1231, %v1230
  %v1479 = vpack.c.b16 %v1233, %v1232
  %v1480 = vpack.c.b16 %v1235, %v1234
  %v1481 = vpack.c.b16 %v1237, %v1236
  %v1482 = vpack.c.b16 %v1239, %v1238
  %v1483 = vpack.c.b16 %v1241, %v1240
  %v1484 = vpack.c.b16 %v1243, %v1242
  %v1485 = vpack.c.b16 %v1245, %v1244
  %v1486 = vpack.c.b16 %v1247, %v1246
  %v1487 = vpack.c.b16 %v1249, %v1248
  %v1488 = vpack.c.b16 %v1251, %v1250
  %v1489 = vpack.c.b16 %v1253, %v1252
  %v1490 = vpack.c.b16 %v1255, %v1254
  %v1491 = vpack.c.b16 %v1257, %v1256
  %v1492 = vpack.c.b16 %v1259, %v1258
  %v1493 = vpack.c.b16 %v1261, %v1260
  %v1494 = vpack.c.b16 %v1263, %v1262
  %v1495 = vpack.c.b16 %v1265, %v1264
  %v1496 = vpack.c.b16 %v1267, %v1266
  %v1497 = vpack.c.b16 %v1269, %v1268
  %v1498 = vpack.c.b16 %v1271, %v1270
  %v1499 = vpack.c.b16 %v1273, %v1272
  %v1500 = vpack.c.b16 %v1275, %v1274
  %v1501 = vpack.c.b16 %v1277, %v1276
  %v1502 = vpack.c.b16 %v1279, %v1278
  %v1503 = vpack.c.b16 %v1281, %v1280
  %v1504 = vpack.c.b16 %v1283, %v1282
  %v1505 = vpack.c.b16 %v1285, %v1284
  %v1506 = vpack.c.b16 %v1287, %v1286
  %v1507 = vpack.c.b16 %v1289, %v1288
  %v1508 = vpack.c.b16 %v1291, %v1290
  %v1509 = vpack.c.b16 %v1293, %v1292
  %v1510 = vpack.c.b16 %v1295, %v1294
  %v1511 = vpack.c.b16 %v1297, %v1296
  %v1512 = vpack.c.b16 %v1299, %v1298
  %v1513 = vpack.c.b16 %v1301, %v1300
  %v1514 = vpack.c.b16 %v1303, %v1302
  %v1515 = vpack.c.b16 %v1305, %v1304
  %v1516 = vpack.c.b16 %v1307, %v1306
  %v1517 = vpack.c.b16 %v1309, %v1308
  %v1518 = vpack.c.b16 %v1311, %v1310
  %v1519 = vpack.c.b16 %v1313, %v1312
  %v1520 = vpack.c.b16 %v1315, %v1314
  %v1521 = vpack.c.b16 %v1317, %v1316
  %v1522 = vpack.c.b16 %v1319, %v1318
  %v1523 = vpack.c.b16 %v1321, %v1320
  %v1524 = vpack.c.b16 %v1323, %v1322
  %v1525 = vpack.c.b16 %v1325, %v1324
  %v1526 = vpack.c.b16 %v1327, %v1326
  %v1527 = vpack.c.b16 %v1329, %v1328
  %v1528 = vpack.c.b16 %v1331, %v1330
  %v1529 = vpack.c.b16 %v1333, %v1332
  %v1530 = vpack.c.b16 %v1335, %v1334
  %v1531 = vpack.c.b16 %v1337, %v1336
  %v1532 = vpack.c.b16 %v1339, %v1338
  %v1533 = vpack.c.b16 %v1341, %v1340
  %1726 = vmatprep.subr.bf16.mxu0 0
  %1727 = vmatpush1.bf16.msra.mxu0 %v1349
  %1728 = vmatprep.subr.bf16.mxu0 0
  %1729 = vmatpush1.bf16.msra.mxu0 %v1348
  %1730 = vmatprep.subr.bf16.mxu0 0
  %1731 = vmatpush1.bf16.msra.mxu0 %v1347
  %1732 = vmatprep.subr.bf16.mxu0 0
  %1733 = vmatpush1.bf16.msra.mxu0 %v1346
  %1734 = vmatprep.subr.bf16.mxu0 0
  %1735 = vmatpush1.bf16.msra.mxu0 %v1345
  %1736 = vmatprep.subr.bf16.mxu0 0
  %1737 = vmatpush1.bf16.msra.mxu0 %v1344
  %1738 = vmatprep.subr.bf16.mxu0 0
  %1739 = vmatpush1.bf16.msra.mxu0 %v1343
  %1740 = vmatprep.subr.bf16.mxu0 0
  %1741 = vmatpush1.bf16.msra.mxu0 %v1342
  %1742 = vmatprep.subr.bf16.mxu0 0
  %1743 = vmatpush2.bf16.msra.mxu0 %v1357
  %1744 = vmatprep.subr.bf16.mxu0 0
  %1745 = vmatpush2.bf16.msra.mxu0 %v1356
  %1746 = vmatprep.subr.bf16.mxu0 0
  %1747 = vmatpush2.bf16.msra.mxu0 %v1355
  %1748 = vmatprep.subr.bf16.mxu0 0
  %1749 = vmatpush2.bf16.msra.mxu0 %v1354
  %1750 = vmatprep.subr.bf16.mxu0 0
  %1751 = vmatpush2.bf16.msra.mxu0 %v1353
  %1752 = vmatprep.subr.bf16.mxu0 0
  %1753 = vmatpush2.bf16.msra.mxu0 %v1352
  %1754 = vmatprep.subr.bf16.mxu0 0
  %1755 = vmatpush2.bf16.msra.mxu0 %v1351
  %1756 = vmatprep.subr.bf16.mxu0 0
  %1757 = vmatpush2.bf16.msra.mxu0 %v1350
  %1758 = vmatprep.mubr.bf16.mxu0 %v527
  %1759 = vmatmul.mubr.bf16.gmra.mxu0 %v526
  %v1760 = vpop.f32.mrf.mxu0
  %v1761 = vadd.f32 %v452, %v1760
  %v1762 = vpop.f32.mrf.mxu0
  %v1763 = vpop.f32.mrf.mxu0
  %v1764 = vadd.f32 %v452, %v1763
  %v1765 = vpop.f32.mrf.mxu0
  %1766 = vdwg.mxu0
  %1767 = vmatprep.subr.bf16.mxu0 0
  %1768 = vmatpush1.bf16.msra.mxu0 %v1365
  %1769 = vmatprep.subr.bf16.mxu0 0
  %1770 = vmatpush1.bf16.msra.mxu0 %v1364
  %1771 = vmatprep.subr.bf16.mxu0 0
  %1772 = vmatpush1.bf16.msra.mxu0 %v1363
  %1773 = vmatprep.subr.bf16.mxu0 0
  %1774 = vmatpush1.bf16.msra.mxu0 %v1362
  %1775 = vmatprep.subr.bf16.mxu0 0
  %1776 = vmatpush1.bf16.msra.mxu0 %v1361
  %1777 = vmatprep.subr.bf16.mxu0 0
  %1778 = vmatpush1.bf16.msra.mxu0 %v1360
  %1779 = vmatprep.subr.bf16.mxu0 0
  %1780 = vmatpush1.bf16.msra.mxu0 %v1359
  %1781 = vmatprep.subr.bf16.mxu0 0
  %1782 = vmatpush1.bf16.msra.mxu0 %v1358
  %1783 = vmatprep.subr.bf16.mxu0 0
  %1784 = vmatpush2.bf16.msra.mxu0 %v1373
  %1785 = vmatprep.subr.bf16.mxu0 0
  %1786 = vmatpush2.bf16.msra.mxu0 %v1372
  %1787 = vmatprep.subr.bf16.mxu0 0
  %1788 = vmatpush2.bf16.msra.mxu0 %v1371
  %1789 = vmatprep.subr.bf16.mxu0 0
  %1790 = vmatpush2.bf16.msra.mxu0 %v1370
  %1791 = vmatprep.subr.bf16.mxu0 0
  %1792 = vmatpush2.bf16.msra.mxu0 %v1369
  %1793 = vmatprep.subr.bf16.mxu0 0
  %1794 = vmatpush2.bf16.msra.mxu0 %v1368
  %1795 = vmatprep.subr.bf16.mxu0 0
  %1796 = vmatpush2.bf16.msra.mxu0 %v1367
  %1797 = vmatprep.subr.bf16.mxu0 0
  %1798 = vmatpush2.bf16.msra.mxu0 %v1366
  %1799 = vmatprep.mubr.bf16.mxu0 %v529
  %1800 = vmatmul.mubr.bf16.gmra.mxu0 %v528
  %v1801 = vpop.f32.mrf.mxu0
  %v1802 = vadd.f32 %v1761, %v1801
  %v1803 = vpop.f32.mrf.mxu0
  %v1804 = vpop.f32.mrf.mxu0
  %v1805 = vadd.f32 %v1764, %v1804
  %v1806 = vpop.f32.mrf.mxu0
  %1807 = vdwg.mxu0
  %1808 = vmatprep.subr.bf16.mxu0 0
  %1809 = vmatpush1.bf16.msra.mxu0 %v1381
  %1810 = vmatprep.subr.bf16.mxu0 0
  %1811 = vmatpush1.bf16.msra.mxu0 %v1380
  %1812 = vmatprep.subr.bf16.mxu0 0
  %1813 = vmatpush1.bf16.msra.mxu0 %v1379
  %1814 = vmatprep.subr.bf16.mxu0 0
  %1815 = vmatpush1.bf16.msra.mxu0 %v1378
  %1816 = vmatprep.subr.bf16.mxu0 0
  %1817 = vmatpush1.bf16.msra.mxu0 %v1377
  %1818 = vmatprep.subr.bf16.mxu0 0
  %1819 = vmatpush1.bf16.msra.mxu0 %v1376
  %1820 = vmatprep.subr.bf16.mxu0 0
  %1821 = vmatpush1.bf16.msra.mxu0 %v1375
  %1822 = vmatprep.subr.bf16.mxu0 0
  %1823 = vmatpush1.bf16.msra.mxu0 %v1374
  %1824 = vmatprep.subr.bf16.mxu0 0
  %1825 = vmatpush2.bf16.msra.mxu0 %v1389
  %1826 = vmatprep.subr.bf16.mxu0 0
  %1827 = vmatpush2.bf16.msra.mxu0 %v1388
  %1828 = vmatprep.subr.bf16.mxu0 0
  %1829 = vmatpush2.bf16.msra.mxu0 %v1387
  %1830 = vmatprep.subr.bf16.mxu0 0
  %1831 = vmatpush2.bf16.msra.mxu0 %v1386
  %1832 = vmatprep.subr.bf16.mxu0 0
  %1833 = vmatpush2.bf16.msra.mxu0 %v1385
  %1834 = vmatprep.subr.bf16.mxu0 0
  %1835 = vmatpush2.bf16.msra.mxu0 %v1384
  %1836 = vmatprep.subr.bf16.mxu0 0
  %1837 = vmatpush2.bf16.msra.mxu0 %v1383
  %1838 = vmatprep.subr.bf16.mxu0 0
  %1839 = vmatpush2.bf16.msra.mxu0 %v1382
  %1840 = vmatprep.mubr.bf16.mxu0 %v531
  %1841 = vmatmul.mubr.bf16.gmra.mxu0 %v530
  %v1842 = vpop.f32.mrf.mxu0
  %v1843 = vadd.f32 %v1802, %v1842
  %v1844 = vpop.f32.mrf.mxu0
  %v1845 = vpop.f32.mrf.mxu0
  %v1846 = vadd.f32 %v1805, %v1845
  %v1847 = vpop.f32.mrf.mxu0
  %1848 = vdwg.mxu0
  %1849 = vmatprep.subr.bf16.mxu0 0
  %1850 = vmatpush1.bf16.msra.mxu0 %v1397
  %1851 = vmatprep.subr.bf16.mxu0 0
  %1852 = vmatpush1.bf16.msra.mxu0 %v1396
  %1853 = vmatprep.subr.bf16.mxu0 0
  %1854 = vmatpush1.bf16.msra.mxu0 %v1395
  %1855 = vmatprep.subr.bf16.mxu0 0
  %1856 = vmatpush1.bf16.msra.mxu0 %v1394
  %1857 = vmatprep.subr.bf16.mxu0 0
  %1858 = vmatpush1.bf16.msra.mxu0 %v1393
  %1859 = vmatprep.subr.bf16.mxu0 0
  %1860 = vmatpush1.bf16.msra.mxu0 %v1392
  %1861 = vmatprep.subr.bf16.mxu0 0
  %1862 = vmatpush1.bf16.msra.mxu0 %v1391
  %1863 = vmatprep.subr.bf16.mxu0 0
  %1864 = vmatpush1.bf16.msra.mxu0 %v1390
  %1865 = vmatprep.subr.bf16.mxu0 0
  %1866 = vmatpush2.bf16.msra.mxu0 %v1405
  %1867 = vmatprep.subr.bf16.mxu0 0
  %1868 = vmatpush2.bf16.msra.mxu0 %v1404
  %1869 = vmatprep.subr.bf16.mxu0 0
  %1870 = vmatpush2.bf16.msra.mxu0 %v1403
  %1871 = vmatprep.subr.bf16.mxu0 0
  %1872 = vmatpush2.bf16.msra.mxu0 %v1402
  %1873 = vmatprep.subr.bf16.mxu0 0
  %1874 = vmatpush2.bf16.msra.mxu0 %v1401
  %1875 = vmatprep.subr.bf16.mxu0 0
  %1876 = vmatpush2.bf16.msra.mxu0 %v1400
  %1877 = vmatprep.subr.bf16.mxu0 0
  %1878 = vmatpush2.bf16.msra.mxu0 %v1399
  %1879 = vmatprep.subr.bf16.mxu0 0
  %1880 = vmatpush2.bf16.msra.mxu0 %v1398
  %1881 = vmatprep.mubr.bf16.mxu0 %v533
  %1882 = vmatmul.mubr.bf16.gmra.mxu0 %v532
  %v1883 = vpop.f32.mrf.mxu0
  %v1884 = vadd.f32 %v1843, %v1883
  %v1885 = vpop.f32.mrf.mxu0
  %v1886 = vpop.f32.mrf.mxu0
  %v1887 = vadd.f32 %v1846, %v1886
  %v1888 = vpop.f32.mrf.mxu0
  %1889 = vdwg.mxu0
  %1890 = vmatprep.subr.bf16.mxu0 0
  %1891 = vmatpush1.bf16.msra.mxu0 %v1413
  %1892 = vmatprep.subr.bf16.mxu0 0
  %1893 = vmatpush1.bf16.msra.mxu0 %v1412
  %1894 = vmatprep.subr.bf16.mxu0 0
  %1895 = vmatpush1.bf16.msra.mxu0 %v1411
  %1896 = vmatprep.subr.bf16.mxu0 0
  %1897 = vmatpush1.bf16.msra.mxu0 %v1410
  %1898 = vmatprep.subr.bf16.mxu0 0
  %1899 = vmatpush1.bf16.msra.mxu0 %v1409
  %1900 = vmatprep.subr.bf16.mxu0 0
  %1901 = vmatpush1.bf16.msra.mxu0 %v1408
  %1902 = vmatprep.subr.bf16.mxu0 0
  %1903 = vmatpush1.bf16.msra.mxu0 %v1407
  %1904 = vmatprep.subr.bf16.mxu0 0
  %1905 = vmatpush1.bf16.msra.mxu0 %v1406
  %1906 = vmatprep.subr.bf16.mxu0 0
  %1907 = vmatpush2.bf16.msra.mxu0 %v1421
  %1908 = vmatprep.subr.bf16.mxu0 0
  %1909 = vmatpush2.bf16.msra.mxu0 %v1420
  %1910 = vmatprep.subr.bf16.mxu0 0
  %1911 = vmatpush2.bf16.msra.mxu0 %v1419
  %1912 = vmatprep.subr.bf16.mxu0 0
  %1913 = vmatpush2.bf16.msra.mxu0 %v1418
  %1914 = vmatprep.subr.bf16.mxu0 0
  %1915 = vmatpush2.bf16.msra.mxu0 %v1417
  %1916 = vmatprep.subr.bf16.mxu0 0
  %1917 = vmatpush2.bf16.msra.mxu0 %v1416
  %1918 = vmatprep.subr.bf16.mxu0 0
  %1919 = vmatpush2.bf16.msra.mxu0 %v1415
  %1920 = vmatprep.subr.bf16.mxu0 0
  %1921 = vmatpush2.bf16.msra.mxu0 %v1414
  %1922 = vmatprep.mubr.bf16.mxu0 %v535
  %1923 = vmatmul.mubr.bf16.gmra.mxu0 %v534
  %v1924 = vpop.f32.mrf.mxu0
  %v1925 = vadd.f32 %v1884, %v1924
  %v1926 = vpop.f32.mrf.mxu0
  %v1927 = vpop.f32.mrf.mxu0
  %v1928 = vadd.f32 %v1887, %v1927
  %v1929 = vpop.f32.mrf.mxu0
  %1930 = vdwg.mxu0
  %1931 = vmatprep.subr.bf16.mxu0 0
  %1932 = vmatpush1.bf16.msra.mxu0 %v1429
  %1933 = vmatprep.subr.bf16.mxu0 0
  %1934 = vmatpush1.bf16.msra.mxu0 %v1428
  %1935 = vmatprep.subr.bf16.mxu0 0
  %1936 = vmatpush1.bf16.msra.mxu0 %v1427
  %1937 = vmatprep.subr.bf16.mxu0 0
  %1938 = vmatpush1.bf16.msra.mxu0 %v1426
  %1939 = vmatprep.subr.bf16.mxu0 0
  %1940 = vmatpush1.bf16.msra.mxu0 %v1425
  %1941 = vmatprep.subr.bf16.mxu0 0
  %1942 = vmatpush1.bf16.msra.mxu0 %v1424
  %1943 = vmatprep.subr.bf16.mxu0 0
  %1944 = vmatpush1.bf16.msra.mxu0 %v1423
  %1945 = vmatprep.subr.bf16.mxu0 0
  %1946 = vmatpush1.bf16.msra.mxu0 %v1422
  %1947 = vmatprep.subr.bf16.mxu0 0
  %1948 = vmatpush2.bf16.msra.mxu0 %v1437
  %1949 = vmatprep.subr.bf16.mxu0 0
  %1950 = vmatpush2.bf16.msra.mxu0 %v1436
  %1951 = vmatprep.subr.bf16.mxu0 0
  %1952 = vmatpush2.bf16.msra.mxu0 %v1435
  %1953 = vmatprep.subr.bf16.mxu0 0
  %1954 = vmatpush2.bf16.msra.mxu0 %v1434
  %1955 = vmatprep.subr.bf16.mxu0 0
  %1956 = vmatpush2.bf16.msra.mxu0 %v1433
  %1957 = vmatprep.subr.bf16.mxu0 0
  %1958 = vmatpush2.bf16.msra.mxu0 %v1432
  %1959 = vmatprep.subr.bf16.mxu0 0
  %1960 = vmatpush2.bf16.msra.mxu0 %v1431
  %1961 = vmatprep.subr.bf16.mxu0 0
  %1962 = vmatpush2.bf16.msra.mxu0 %v1430
  %1963 = vmatprep.mubr.bf16.mxu0 %v537
  %1964 = vmatmul.mubr.bf16.gmra.mxu0 %v536
  %v1965 = vpop.f32.mrf.mxu0
  %v1966 = vadd.f32 %v1925, %v1965
  %v1967 = vpop.f32.mrf.mxu0
  %v1968 = vpop.f32.mrf.mxu0
  %v1969 = vadd.f32 %v1928, %v1968
  %v1970 = vpop.f32.mrf.mxu0
  %1971 = vdwg.mxu0
  %1972 = vmatprep.subr.bf16.mxu0 0
  %1973 = vmatpush1.bf16.msra.mxu0 %v1445
  %1974 = vmatprep.subr.bf16.mxu0 0
  %1975 = vmatpush1.bf16.msra.mxu0 %v1444
  %1976 = vmatprep.subr.bf16.mxu0 0
  %1977 = vmatpush1.bf16.msra.mxu0 %v1443
  %1978 = vmatprep.subr.bf16.mxu0 0
  %1979 = vmatpush1.bf16.msra.mxu0 %v1442
  %1980 = vmatprep.subr.bf16.mxu0 0
  %1981 = vmatpush1.bf16.msra.mxu0 %v1441
  %1982 = vmatprep.subr.bf16.mxu0 0
  %1983 = vmatpush1.bf16.msra.mxu0 %v1440
  %1984 = vmatprep.subr.bf16.mxu0 0
  %1985 = vmatpush1.bf16.msra.mxu0 %v1439
  %1986 = vmatprep.subr.bf16.mxu0 0
  %1987 = vmatpush1.bf16.msra.mxu0 %v1438
  %1988 = vmatprep.subr.bf16.mxu0 0
  %1989 = vmatpush2.bf16.msra.mxu0 %v1453
  %1990 = vmatprep.subr.bf16.mxu0 0
  %1991 = vmatpush2.bf16.msra.mxu0 %v1452
  %1992 = vmatprep.subr.bf16.mxu0 0
  %1993 = vmatpush2.bf16.msra.mxu0 %v1451
  %1994 = vmatprep.subr.bf16.mxu0 0
  %1995 = vmatpush2.bf16.msra.mxu0 %v1450
  %1996 = vmatprep.subr.bf16.mxu0 0
  %1997 = vmatpush2.bf16.msra.mxu0 %v1449
  %1998 = vmatprep.subr.bf16.mxu0 0
  %1999 = vmatpush2.bf16.msra.mxu0 %v1448
  %2000 = vmatprep.subr.bf16.mxu0 0
  %2001 = vmatpush2.bf16.msra.mxu0 %v1447
  %2002 = vmatprep.subr.bf16.mxu0 0
  %2003 = vmatpush2.bf16.msra.mxu0 %v1446
  %2004 = vmatprep.mubr.bf16.mxu0 %v539
  %2005 = vmatmul.mubr.bf16.gmra.mxu0 %v538
  %v2006 = vpop.f32.mrf.mxu0
  %v2007 = vadd.f32 %v1966, %v2006
  %v2008 = vpop.f32.mrf.mxu0
  %v2009 = vpop.f32.mrf.mxu0
  %v2010 = vadd.f32 %v1969, %v2009
  %v2011 = vpop.f32.mrf.mxu0
  %2012 = vdwg.mxu0
  %2013 = vmatprep.subr.bf16.mxu0 0
  %2014 = vmatpush1.bf16.msra.mxu0 %v1461
  %2015 = vmatprep.subr.bf16.mxu0 0
  %2016 = vmatpush1.bf16.msra.mxu0 %v1460
  %2017 = vmatprep.subr.bf16.mxu0 0
  %2018 = vmatpush1.bf16.msra.mxu0 %v1459
  %2019 = vmatprep.subr.bf16.mxu0 0
  %2020 = vmatpush1.bf16.msra.mxu0 %v1458
  %2021 = vmatprep.subr.bf16.mxu0 0
  %2022 = vmatpush1.bf16.msra.mxu0 %v1457
  %2023 = vmatprep.subr.bf16.mxu0 0
  %2024 = vmatpush1.bf16.msra.mxu0 %v1456
  %2025 = vmatprep.subr.bf16.mxu0 0
  %2026 = vmatpush1.bf16.msra.mxu0 %v1455
  %2027 = vmatprep.subr.bf16.mxu0 0
  %2028 = vmatpush1.bf16.msra.mxu0 %v1454
  %2029 = vmatprep.subr.bf16.mxu0 0
  %2030 = vmatpush2.bf16.msra.mxu0 %v1469
  %2031 = vmatprep.subr.bf16.mxu0 0
  %2032 = vmatpush2.bf16.msra.mxu0 %v1468
  %2033 = vmatprep.subr.bf16.mxu0 0
  %2034 = vmatpush2.bf16.msra.mxu0 %v1467
  %2035 = vmatprep.subr.bf16.mxu0 0
  %2036 = vmatpush2.bf16.msra.mxu0 %v1466
  %2037 = vmatprep.subr.bf16.mxu0 0
  %2038 = vmatpush2.bf16.msra.mxu0 %v1465
  %2039 = vmatprep.subr.bf16.mxu0 0
  %2040 = vmatpush2.bf16.msra.mxu0 %v1464
  %2041 = vmatprep.subr.bf16.mxu0 0
  %2042 = vmatpush2.bf16.msra.mxu0 %v1463
  %2043 = vmatprep.subr.bf16.mxu0 0
  %2044 = vmatpush2.bf16.msra.mxu0 %v1462
  %2045 = vmatprep.mubr.bf16.mxu0 %v541
  %2046 = vmatmul.mubr.bf16.gmra.mxu0 %v540
  %v2047 = vpop.f32.mrf.mxu0
  %v2048 = vadd.f32 %v2007, %v2047
  %v2049 = vpop.f32.mrf.mxu0
  %v2050 = vpop.f32.mrf.mxu0
  %v2051 = vadd.f32 %v2010, %v2050
  %v2052 = vpop.f32.mrf.mxu0
  %2053 = vdwg.mxu0
  %2054 = vmatprep.subr.bf16.mxu0 0
  %2055 = vmatpush1.bf16.msra.mxu0 %v1477
  %2056 = vmatprep.subr.bf16.mxu0 0
  %2057 = vmatpush1.bf16.msra.mxu0 %v1476
  %2058 = vmatprep.subr.bf16.mxu0 0
  %2059 = vmatpush1.bf16.msra.mxu0 %v1475
  %2060 = vmatprep.subr.bf16.mxu0 0
  %2061 = vmatpush1.bf16.msra.mxu0 %v1474
  %2062 = vmatprep.subr.bf16.mxu0 0
  %2063 = vmatpush1.bf16.msra.mxu0 %v1473
  %2064 = vmatprep.subr.bf16.mxu0 0
  %2065 = vmatpush1.bf16.msra.mxu0 %v1472
  %2066 = vmatprep.subr.bf16.mxu0 0
  %2067 = vmatpush1.bf16.msra.mxu0 %v1471
  %2068 = vmatprep.subr.bf16.mxu0 0
  %2069 = vmatpush1.bf16.msra.mxu0 %v1470
  %2070 = vmatprep.subr.bf16.mxu0 0
  %2071 = vmatpush2.bf16.msra.mxu0 %v1485
  %2072 = vmatprep.subr.bf16.mxu0 0
  %2073 = vmatpush2.bf16.msra.mxu0 %v1484
  %2074 = vmatprep.subr.bf16.mxu0 0
  %2075 = vmatpush2.bf16.msra.mxu0 %v1483
  %2076 = vmatprep.subr.bf16.mxu0 0
  %2077 = vmatpush2.bf16.msra.mxu0 %v1482
  %2078 = vmatprep.subr.bf16.mxu0 0
  %2079 = vmatpush2.bf16.msra.mxu0 %v1481
  %2080 = vmatprep.subr.bf16.mxu0 0
  %2081 = vmatpush2.bf16.msra.mxu0 %v1480
  %2082 = vmatprep.subr.bf16.mxu0 0
  %2083 = vmatpush2.bf16.msra.mxu0 %v1479
  %2084 = vmatprep.subr.bf16.mxu0 0
  %2085 = vmatpush2.bf16.msra.mxu0 %v1478
  %2086 = vmatprep.mubr.bf16.mxu0 %v543
  %2087 = vmatmul.mubr.bf16.gmra.mxu0 %v542
  %v2088 = vpop.f32.mrf.mxu0
  %v2089 = vadd.f32 %v2048, %v2088
  %v2090 = vpop.f32.mrf.mxu0
  %v2091 = vpop.f32.mrf.mxu0
  %v2092 = vadd.f32 %v2051, %v2091
  %v2093 = vpop.f32.mrf.mxu0
  %2094 = vdwg.mxu0
  %2095 = vmatprep.subr.bf16.mxu0 0
  %2096 = vmatpush1.bf16.msra.mxu0 %v1493
  %2097 = vmatprep.subr.bf16.mxu0 0
  %2098 = vmatpush1.bf16.msra.mxu0 %v1492
  %2099 = vmatprep.subr.bf16.mxu0 0
  %2100 = vmatpush1.bf16.msra.mxu0 %v1491
  %2101 = vmatprep.subr.bf16.mxu0 0
  %2102 = vmatpush1.bf16.msra.mxu0 %v1490
  %2103 = vmatprep.subr.bf16.mxu0 0
  %2104 = vmatpush1.bf16.msra.mxu0 %v1489
  %2105 = vmatprep.subr.bf16.mxu0 0
  %2106 = vmatpush1.bf16.msra.mxu0 %v1488
  %2107 = vmatprep.subr.bf16.mxu0 0
  %2108 = vmatpush1.bf16.msra.mxu0 %v1487
  %2109 = vmatprep.subr.bf16.mxu0 0
  %2110 = vmatpush1.bf16.msra.mxu0 %v1486
  %2111 = vmatprep.subr.bf16.mxu0 0
  %2112 = vmatpush2.bf16.msra.mxu0 %v1501
  %2113 = vmatprep.subr.bf16.mxu0 0
  %2114 = vmatpush2.bf16.msra.mxu0 %v1500
  %2115 = vmatprep.subr.bf16.mxu0 0
  %2116 = vmatpush2.bf16.msra.mxu0 %v1499
  %2117 = vmatprep.subr.bf16.mxu0 0
  %2118 = vmatpush2.bf16.msra.mxu0 %v1498
  %2119 = vmatprep.subr.bf16.mxu0 0
  %2120 = vmatpush2.bf16.msra.mxu0 %v1497
  %2121 = vmatprep.subr.bf16.mxu0 0
  %2122 = vmatpush2.bf16.msra.mxu0 %v1496
  %2123 = vmatprep.subr.bf16.mxu0 0
  %2124 = vmatpush2.bf16.msra.mxu0 %v1495
  %2125 = vmatprep.subr.bf16.mxu0 0
  %2126 = vmatpush2.bf16.msra.mxu0 %v1494
  %2127 = vmatprep.mubr.bf16.mxu0 %v545
  %2128 = vmatmul.mubr.bf16.gmra.mxu0 %v544
  %v2129 = vpop.f32.mrf.mxu0
  %v2130 = vadd.f32 %v2089, %v2129
  %v2131 = vpop.f32.mrf.mxu0
  %v2132 = vpop.f32.mrf.mxu0
  %v2133 = vadd.f32 %v2092, %v2132
  %v2134 = vpop.f32.mrf.mxu0
  %2135 = vdwg.mxu0
  %2136 = vmatprep.subr.bf16.mxu0 0
  %2137 = vmatpush1.bf16.msra.mxu0 %v1509
  %2138 = vmatprep.subr.bf16.mxu0 0
  %2139 = vmatpush1.bf16.msra.mxu0 %v1508
  %2140 = vmatprep.subr.bf16.mxu0 0
  %2141 = vmatpush1.bf16.msra.mxu0 %v1507
  %2142 = vmatprep.subr.bf16.mxu0 0
  %2143 = vmatpush1.bf16.msra.mxu0 %v1506
  %2144 = vmatprep.subr.bf16.mxu0 0
  %2145 = vmatpush1.bf16.msra.mxu0 %v1505
  %2146 = vmatprep.subr.bf16.mxu0 0
  %2147 = vmatpush1.bf16.msra.mxu0 %v1504
  %2148 = vmatprep.subr.bf16.mxu0 0
  %2149 = vmatpush1.bf16.msra.mxu0 %v1503
  %2150 = vmatprep.subr.bf16.mxu0 0
  %2151 = vmatpush1.bf16.msra.mxu0 %v1502
  %2152 = vmatprep.subr.bf16.mxu0 0
  %2153 = vmatpush2.bf16.msra.mxu0 %v1517
  %2154 = vmatprep.subr.bf16.mxu0 0
  %2155 = vmatpush2.bf16.msra.mxu0 %v1516
  %2156 = vmatprep.subr.bf16.mxu0 0
  %2157 = vmatpush2.bf16.msra.mxu0 %v1515
  %2158 = vmatprep.subr.bf16.mxu0 0
  %2159 = vmatpush2.bf16.msra.mxu0 %v1514
  %2160 = vmatprep.subr.bf16.mxu0 0
  %2161 = vmatpush2.bf16.msra.mxu0 %v1513
  %2162 = vmatprep.subr.bf16.mxu0 0
  %2163 = vmatpush2.bf16.msra.mxu0 %v1512
  %2164 = vmatprep.subr.bf16.mxu0 0
  %2165 = vmatpush2.bf16.msra.mxu0 %v1511
  %2166 = vmatprep.subr.bf16.mxu0 0
  %2167 = vmatpush2.bf16.msra.mxu0 %v1510
  %2168 = vmatprep.mubr.bf16.mxu0 %v547
  %2169 = vmatmul.mubr.bf16.gmra.mxu0 %v546
  %v2170 = vpop.f32.mrf.mxu0
  %v2171 = vadd.f32 %v2130, %v2170
  %v2172 = vpop.f32.mrf.mxu0
  %v2173 = vpop.f32.mrf.mxu0
  %v2174 = vadd.f32 %v2133, %v2173
  %v2175 = vpop.f32.mrf.mxu0
  %2176 = vdwg.mxu0
  %2177 = vmatprep.subr.bf16.mxu0 0
  %2178 = vmatpush1.bf16.msra.mxu0 %v1525
  %2179 = vmatprep.subr.bf16.mxu0 0
  %2180 = vmatpush1.bf16.msra.mxu0 %v1524
  %2181 = vmatprep.subr.bf16.mxu0 0
  %2182 = vmatpush1.bf16.msra.mxu0 %v1523
  %2183 = vmatprep.subr.bf16.mxu0 0
  %2184 = vmatpush1.bf16.msra.mxu0 %v1522
  %2185 = vmatprep.subr.bf16.mxu0 0
  %2186 = vmatpush1.bf16.msra.mxu0 %v1521
  %2187 = vmatprep.subr.bf16.mxu0 0
  %2188 = vmatpush1.bf16.msra.mxu0 %v1520
  %2189 = vmatprep.subr.bf16.mxu0 0
  %2190 = vmatpush1.bf16.msra.mxu0 %v1519
  %2191 = vmatprep.subr.bf16.mxu0 0
  %2192 = vmatpush1.bf16.msra.mxu0 %v1518
  %2193 = vmatprep.subr.bf16.mxu0 0
  %2194 = vmatpush2.bf16.msra.mxu0 %v1533
  %2195 = vmatprep.subr.bf16.mxu0 0
  %2196 = vmatpush2.bf16.msra.mxu0 %v1532
  %2197 = vmatprep.subr.bf16.mxu0 0
  %2198 = vmatpush2.bf16.msra.mxu0 %v1531
  %2199 = vmatprep.subr.bf16.mxu0 0
  %2200 = vmatpush2.bf16.msra.mxu0 %v1530
  %2201 = vmatprep.subr.bf16.mxu0 0
  %2202 = vmatpush2.bf16.msra.mxu0 %v1529
  %2203 = vmatprep.subr.bf16.mxu0 0
  %2204 = vmatpush2.bf16.msra.mxu0 %v1528
  %2205 = vmatprep.subr.bf16.mxu0 0
  %2206 = vmatpush2.bf16.msra.mxu0 %v1527
  %2207 = vmatprep.subr.bf16.mxu0 0
  %2208 = vmatpush2.bf16.msra.mxu0 %v1526
  %2209 = vmatprep.mubr.bf16.mxu0 %v549
  %2210 = vmatmul.mubr.bf16.gmra.mxu0 %v548
  %v2211 = vpop.f32.mrf.mxu0
  %v2212 = vadd.f32 %v2171, %v2211
  %v2213 = vpop.f32.mrf.mxu0
  %v2214 = vpop.f32.mrf.mxu0
  %v2215 = vadd.f32 %v2174, %v2214
  %v2216 = vpop.f32.mrf.mxu0
  %2217 = vdwg.mxu0
  %v2218 = vmax.f32 %v2212, 0.0
  %v2219 = vmax.f32 %v2215, 0.0
  %v2220 = vpack.c.bf16 %v2219, %v2218
  %v2221 = vld [vmem:[%s3] sm:$0xf]
  %v2222 = vld [vmem:[%s3 + $0x4] sm:$0xf]
  %v2223 = vld [vmem:[%s3 + $0x8] sm:$0xf]
  %v2224 = vld [vmem:[%s3 + $0xc] sm:$0xf]
  %v2225 = vld [vmem:[%s4] sm:$0x1]
  %v2227 = vlaneseq
  %v2228 = vshrl.u32 %v2227, 7
  %v2229 = vsub.s32 0, %v2228
  %v2230 = vrot.slane %v2225, %v2229
  %v2236 = vunpack.c.l.b16 %v2221
  %v2237 = vunpack.c.l.b16 %v2222
  %v2238 = vunpack.c.l.b16 %v2223
  %v2239 = vunpack.c.l.b16 %v2224
  %v2240 = vpack.c.b16 %v2237, %v2236
  %v2241 = vpack.c.b16 %v2239, %v2238
  %vm2244 = vcmask 261120
  %v2246 = vsel %vm2244, %v2220, 0
  %2248 = vmatprep.subr.bf16.mxu0 0
  %2249 = vmatpush1.bf16.msra.mxu0 0
  %2250 = vmatprep.subr.bf16.mxu0 0
  %2251 = vmatpush1.bf16.msra.mxu0 0
  %2252 = vmatprep.subr.bf16.mxu0 0
  %2253 = vmatpush1.bf16.msra.mxu0 0
  %2254 = vmatprep.subr.bf16.mxu0 0
  %2255 = vmatpush1.bf16.msra.mxu0 0
  %2256 = vmatprep.subr.bf16.mxu0 0
  %2257 = vmatpush1.bf16.msra.mxu0 0
  %2258 = vmatprep.subr.bf16.mxu0 0
  %2259 = vmatpush1.bf16.msra.mxu0 0
  %2260 = vmatprep.subr.bf16.mxu0 0
  %2261 = vmatpush1.bf16.msra.mxu0 %v2241
  %2262 = vmatprep.subr.bf16.mxu0 0
  %2263 = vmatpush1.bf16.msra.mxu0 %v2240
  %2264 = vmatprep.subr.bf16.mxu0 0
  %2265 = vmatpush2.bf16.msra.mxu0 0
  %2266 = vmatprep.subr.bf16.mxu0 0
  %2267 = vmatpush2.bf16.msra.mxu0 0
  %2268 = vmatprep.subr.bf16.mxu0 0
  %2269 = vmatpush2.bf16.msra.mxu0 0
  %2270 = vmatprep.subr.bf16.mxu0 0
  %2271 = vmatpush2.bf16.msra.mxu0 0
  %2272 = vmatprep.subr.bf16.mxu0 0
  %2273 = vmatpush2.bf16.msra.mxu0 0
  %2274 = vmatprep.subr.bf16.mxu0 0
  %2275 = vmatpush2.bf16.msra.mxu0 0
  %2276 = vmatprep.subr.bf16.mxu0 0
  %2277 = vmatpush2.bf16.msra.mxu0 0
  %2278 = vmatprep.subr.bf16.mxu0 0
  %2279 = vmatpush2.bf16.msra.mxu0 0
  %2280 = vmatprep.mubr.bf16.mxu0 0
  %2281 = vmatmul.mubr.bf16.gmra.mxu0 %v2246
  %v2282 = vpop.f32.mrf.mxu0
  %v2283 = vadd.f32 %v2230, %v2282
  %v2284 = vpop.f32.mrf.mxu0
  %v2285 = vpop.f32.mrf.mxu0
  %v2286 = vadd.f32 %v2230, %v2285
  %v2287 = vpop.f32.mrf.mxu0
  %2288 = vdwg.mxu0
  %v2289 = vlaneseq
  %v2290 = vshrl.u32 %v2289, 7
  %v2291 = vadd.s32 %v2290, 8
  %v2292 = vadd.s32 %v2290, 16
  %v2293 = vadd.s32 %v2290, 24
  %v2294 = vadd.s32 %v2290, 32
  %v2295 = vadd.s32 %v2290, 40
  %v2296 = vadd.s32 %v2290, 48
  %v2297 = vlaneseq
  %v2298 = vand.u32 %v2297, 127
  %v2299 = vpack.c.bf16 %v2283, %v2283
  %v2300 = vld [vmem:[%s5] sm:$0xf]
  %v2301 = vld [vmem:[%s5 + $0x4] sm:$0xf]
  %v2302 = vld [vmem:[%s5 + $0x8] sm:$0xf]
  %v2303 = vld [vmem:[%s5 + $0xc] sm:$0xf]
  %v2304 = vld [vmem:[%s5 + $0x10] sm:$0xf]
  %v2305 = vld [vmem:[%s5 + $0x14] sm:$0xf]
  %v2306 = vld [vmem:[%s5 + $0x18] sm:$0x7]
  %v2314 = vunpack.c.l.b16 %v2300
  %v2315 = vunpack.c.l.b16 %v2301
  %v2316 = vunpack.c.l.b16 %v2302
  %v2317 = vunpack.c.l.b16 %v2303
  %v2318 = vunpack.c.l.b16 %v2304
  %v2319 = vunpack.c.l.b16 %v2305
  %v2320 = vunpack.c.l.b16 %v2306
  %v2321 = vpack.c.b16 %v2315, %v2314
  %v2322 = vpack.c.b16 %v2317, %v2316
  %v2323 = vpack.c.b16 %v2319, %v2318
  %v2324 = vpack.c.b16 %v2320, %v2320
  %vm2325 = vcmask 64512
  %v2327 = vsel %vm2325, %v2321, 0
  %v2330 = vsel %vm2325, %v2322, 0
  %v2333 = vsel %vm2325, %v2323, 0
  %v2336 = vsel %vm2325, %v2324, 0
  %vm2338 = vcmask 1043456
  %v2340 = vsel %vm2338, %v2299, 0
  %2342 = vmatprep.subr.bf16.mxu0 0
  %2343 = vmatpush1.bf16.msra.mxu0 0
  %2344 = vmatprep.subr.bf16.mxu0 0
  %2345 = vmatpush1.bf16.msra.mxu0 0
  %2346 = vmatprep.subr.bf16.mxu0 0
  %2347 = vmatpush1.bf16.msra.mxu0 0
  %2348 = vmatprep.subr.bf16.mxu0 0
  %2349 = vmatpush1.bf16.msra.mxu0 0
  %2350 = vmatprep.subr.bf16.mxu0 0
  %2351 = vmatpush1.bf16.msra.mxu0 0
  %2352 = vmatprep.subr.bf16.mxu0 0
  %2353 = vmatpush1.bf16.msra.mxu0 0
  %2354 = vmatprep.subr.bf16.mxu0 0
  %2355 = vmatpush1.bf16.msra.mxu0 0
  %2356 = vmatprep.subr.bf16.mxu0 0
  %2357 = vmatpush1.bf16.msra.mxu0 %v2340
  %2358 = vmatprep.subr.bf16.mxu0 0
  %2359 = vmatpush2.bf16.msra.mxu0 0
  %2360 = vmatprep.subr.bf16.mxu0 0
  %2361 = vmatpush2.bf16.msra.mxu0 0
  %2362 = vmatprep.subr.bf16.mxu0 0
  %2363 = vmatpush2.bf16.msra.mxu0 0
  %2364 = vmatprep.subr.bf16.mxu0 0
  %2365 = vmatpush2.bf16.msra.mxu0 0
  %2366 = vmatprep.subr.bf16.mxu0 0
  %2367 = vmatpush2.bf16.msra.mxu0 0
  %2368 = vmatprep.subr.bf16.mxu0 0
  %2369 = vmatpush2.bf16.msra.mxu0 0
  %2370 = vmatprep.subr.bf16.mxu0 0
  %2371 = vmatpush2.bf16.msra.mxu0 0
  %2372 = vmatprep.subr.bf16.mxu0 0
  %2373 = vmatpush2.bf16.msra.mxu0 0
  %2374 = vmatprep.mubr.bf16.mxu0 0
  %2375 = vmatmul.mubr.bf16.gmra.mxu0 %v2327
  %v2376 = vpop.f32.mrf.mxu0
  %v2377 = vadd.f32 0.0, %v2376
  %v2378 = vpop.f32.mrf.mxu0
  %v2379 = vpop.f32.mrf.mxu0
  %v2380 = vadd.f32 0.0, %v2379
  %v2381 = vpop.f32.mrf.mxu0
  %2382 = vmatprep.mubr.bf16.mxu0 0
  %2383 = vmatmul.mubr.bf16.gmra.mxu0 %v2330
  %v2384 = vpop.f32.mrf.mxu0
  %v2385 = vadd.f32 0.0, %v2384
  %v2386 = vpop.f32.mrf.mxu0
  %v2387 = vpop.f32.mrf.mxu0
  %v2388 = vadd.f32 0.0, %v2387
  %v2389 = vpop.f32.mrf.mxu0
  %2390 = vmatprep.mubr.bf16.mxu0 0
  %2391 = vmatmul.mubr.bf16.gmra.mxu0 %v2333
  %v2392 = vpop.f32.mrf.mxu0
  %v2393 = vadd.f32 0.0, %v2392
  %v2394 = vpop.f32.mrf.mxu0
  %v2395 = vpop.f32.mrf.mxu0
  %v2396 = vadd.f32 0.0, %v2395
  %v2397 = vpop.f32.mrf.mxu0
  %2398 = vmatprep.mubr.bf16.mxu0 0
  %2399 = vmatmul.mubr.bf16.gmra.mxu0 %v2336
  %v2400 = vpop.f32.mrf.mxu0
  %v2401 = vadd.f32 0.0, %v2400
  %v2402 = vpop.f32.mrf.mxu0
  %v2403 = vpop.f32.mrf.mxu0
  %v2404 = vpop.f32.mrf.mxu0
  %2405 = vdwg.mxu0
  %s2406 = scalar_lea.vmem %s5, 28
  %v2407 = vld [vmem:[%s2406] sm:$0xf]
  %v2408 = vld [vmem:[%s2406 + $0x4] sm:$0xf]
  %v2409 = vld [vmem:[%s2406 + $0x8] sm:$0xf]
  %v2410 = vld [vmem:[%s2406 + $0xc] sm:$0xf]
  %v2411 = vld [vmem:[%s2406 + $0x10] sm:$0xf]
  %v2412 = vld [vmem:[%s2406 + $0x14] sm:$0xf]
  %v2413 = vld [vmem:[%s2406 + $0x18] sm:$0x7]
  %v2421 = vunpack.c.l.b16 %v2407
  %v2422 = vunpack.c.l.b16 %v2408
  %v2423 = vunpack.c.l.b16 %v2409
  %v2424 = vunpack.c.l.b16 %v2410
  %v2425 = vunpack.c.l.b16 %v2411
  %v2426 = vunpack.c.l.b16 %v2412
  %v2427 = vunpack.c.l.b16 %v2413
  %v2428 = vpack.c.b16 %v2422, %v2421
  %v2429 = vpack.c.b16 %v2424, %v2423
  %v2430 = vpack.c.b16 %v2426, %v2425
  %v2431 = vpack.c.b16 %v2427, %v2427
  %v2433 = vsel %vm2325, %v2428, 0
  %v2436 = vsel %vm2325, %v2429, 0
  %v2439 = vsel %vm2325, %v2430, 0
  %v2442 = vsel %vm2325, %v2431, 0
  %2444 = vmatprep.subr.bf16.mxu0 0
  %2445 = vmatpush1.bf16.msra.mxu0 0
  %2446 = vmatprep.subr.bf16.mxu0 0
  %2447 = vmatpush1.bf16.msra.mxu0 0
  %2448 = vmatprep.subr.bf16.mxu0 0
  %2449 = vmatpush1.bf16.msra.mxu0 0
  %2450 = vmatprep.subr.bf16.mxu0 0
  %2451 = vmatpush1.bf16.msra.mxu0 0
  %2452 = vmatprep.subr.bf16.mxu0 0
  %2453 = vmatpush1.bf16.msra.mxu0 0
  %2454 = vmatprep.subr.bf16.mxu0 0
  %2455 = vmatpush1.bf16.msra.mxu0 0
  %2456 = vmatprep.subr.bf16.mxu0 0
  %2457 = vmatpush1.bf16.msra.mxu0 0
  %2458 = vmatprep.subr.bf16.mxu0 0
  %2459 = vmatpush1.bf16.msra.mxu0 %v2340
  %2460 = vmatprep.subr.bf16.mxu0 0
  %2461 = vmatpush2.bf16.msra.mxu0 0
  %2462 = vmatprep.subr.bf16.mxu0 0
  %2463 = vmatpush2.bf16.msra.mxu0 0
  %2464 = vmatprep.subr.bf16.mxu0 0
  %2465 = vmatpush2.bf16.msra.mxu0 0
  %2466 = vmatprep.subr.bf16.mxu0 0
  %2467 = vmatpush2.bf16.msra.mxu0 0
  %2468 = vmatprep.subr.bf16.mxu0 0
  %2469 = vmatpush2.bf16.msra.mxu0 0
  %2470 = vmatprep.subr.bf16.mxu0 0
  %2471 = vmatpush2.bf16.msra.mxu0 0
  %2472 = vmatprep.subr.bf16.mxu0 0
  %2473 = vmatpush2.bf16.msra.mxu0 0
  %2474 = vmatprep.subr.bf16.mxu0 0
  %2475 = vmatpush2.bf16.msra.mxu0 0
  %2476 = vmatprep.mubr.bf16.mxu0 0
  %2477 = vmatmul.mubr.bf16.gmra.mxu0 %v2433
  %v2478 = vpop.f32.mrf.mxu0
  %v2479 = vadd.f32 0.0, %v2478
  %v2480 = vpop.f32.mrf.mxu0
  %v2481 = vpop.f32.mrf.mxu0
  %v2482 = vadd.f32 0.0, %v2481
  %v2483 = vpop.f32.mrf.mxu0
  %2484 = vmatprep.mubr.bf16.mxu0 0
  %2485 = vmatmul.mubr.bf16.gmra.mxu0 %v2436
  %v2486 = vpop.f32.mrf.mxu0
  %v2487 = vadd.f32 0.0, %v2486
  %v2488 = vpop.f32.mrf.mxu0
  %v2489 = vpop.f32.mrf.mxu0
  %v2490 = vadd.f32 0.0, %v2489
  %v2491 = vpop.f32.mrf.mxu0
  %2492 = vmatprep.mubr.bf16.mxu0 0
  %2493 = vmatmul.mubr.bf16.gmra.mxu0 %v2439
  %v2494 = vpop.f32.mrf.mxu0
  %v2495 = vadd.f32 0.0, %v2494
  %v2496 = vpop.f32.mrf.mxu0
  %v2497 = vpop.f32.mrf.mxu0
  %v2498 = vadd.f32 0.0, %v2497
  %v2499 = vpop.f32.mrf.mxu0
  %2500 = vmatprep.mubr.bf16.mxu0 0
  %2501 = vmatmul.mubr.bf16.gmra.mxu0 %v2442
  %v2502 = vpop.f32.mrf.mxu0
  %v2503 = vadd.f32 0.0, %v2502
  %v2504 = vpop.f32.mrf.mxu0
  %v2505 = vpop.f32.mrf.mxu0
  %v2506 = vpop.f32.mrf.mxu0
  %2507 = vdwg.mxu0
  %2515 = vrot.lane.b32.xlu0 %v2479, 8
  %v2516 = vpop.permute.xlu0 %2515
  %2517 = vrot.lane.b32.xlu0 %v2482, 8
  %v2518 = vpop.permute.xlu0 %2517
  %2519 = vrot.lane.b32.xlu0 %v2487, 8
  %v2520 = vpop.permute.xlu0 %2519
  %2521 = vrot.lane.b32.xlu0 %v2490, 8
  %v2522 = vpop.permute.xlu0 %2521
  %2523 = vrot.lane.b32.xlu0 %v2495, 8
  %v2524 = vpop.permute.xlu0 %2523
  %2525 = vrot.lane.b32.xlu0 %v2498, 8
  %v2526 = vpop.permute.xlu0 %2525
  %2527 = vrot.lane.b32.xlu0 %v2503, 8
  %v2528 = vpop.permute.xlu0 %2527
  %v2536 = vsel %vm2325, %v2377, %v2516
  %v2537 = vsel %vm2325, %v2380, %v2518
  %v2538 = vsel %vm2325, %v2385, %v2520
  %v2539 = vsel %vm2325, %v2388, %v2522
  %v2540 = vsel %vm2325, %v2393, %v2524
  %v2541 = vsel %vm2325, %v2396, %v2526
  %v2542 = vsel %vm2325, %v2401, %v2528
  %v2543 = vpack.c.bf16 %v2537, %v2536
  %v2544 = vpack.c.bf16 %v2539, %v2538
  %v2545 = vpack.c.bf16 %v2541, %v2540
  %v2546 = vpack.c.bf16 %v2542, %v2542
  %v2547 = vld [vmem:[%s6] sm:$0xf]
  %v2548 = vld [vmem:[%s6 + $0x4] sm:$0xf]
  %v2549 = vld [vmem:[%s7] sm:$0x1]
  %v2551 = vlaneseq
  %v2552 = vshrl.u32 %v2551, 7
  %v2553 = vsub.s32 0, %v2552
  %v2554 = vrot.slane %v2549, %v2553
  %v2558 = vunpack.c.l.b16 %v2547
  %v2559 = vunpack.c.l.b16 %v2548
  %v2560 = vpack.c.b16 %v2559, %v2558
  %vm2562 = vcmask 130048
  %v2564 = vsel %vm2562, %v2543, 0
  %v2567 = vsel %vm2562, %v2544, 0
  %v2570 = vsel %vm2562, %v2545, 0
  %v2573 = vsel %vm2562, %v2546, 0
  %2575 = vmatprep.subr.bf16.mxu0 0
  %2576 = vmatpush1.bf16.msra.mxu0 0
  %2577 = vmatprep.subr.bf16.mxu0 0
  %2578 = vmatpush1.bf16.msra.mxu0 0
  %2579 = vmatprep.subr.bf16.mxu0 0
  %2580 = vmatpush1.bf16.msra.mxu0 0
  %2581 = vmatprep.subr.bf16.mxu0 0
  %2582 = vmatpush1.bf16.msra.mxu0 0
  %2583 = vmatprep.subr.bf16.mxu0 0
  %2584 = vmatpush1.bf16.msra.mxu0 0
  %2585 = vmatprep.subr.bf16.mxu0 0
  %2586 = vmatpush1.bf16.msra.mxu0 0
  %2587 = vmatprep.subr.bf16.mxu0 0
  %2588 = vmatpush1.bf16.msra.mxu0 0
  %2589 = vmatprep.subr.bf16.mxu0 0
  %2590 = vmatpush1.bf16.msra.mxu0 %v2560
  %2591 = vmatprep.subr.bf16.mxu0 0
  %2592 = vmatpush2.bf16.msra.mxu0 0
  %2593 = vmatprep.subr.bf16.mxu0 0
  %2594 = vmatpush2.bf16.msra.mxu0 0
  %2595 = vmatprep.subr.bf16.mxu0 0
  %2596 = vmatpush2.bf16.msra.mxu0 0
  %2597 = vmatprep.subr.bf16.mxu0 0
  %2598 = vmatpush2.bf16.msra.mxu0 0
  %2599 = vmatprep.subr.bf16.mxu0 0
  %2600 = vmatpush2.bf16.msra.mxu0 0
  %2601 = vmatprep.subr.bf16.mxu0 0
  %2602 = vmatpush2.bf16.msra.mxu0 0
  %2603 = vmatprep.subr.bf16.mxu0 0
  %2604 = vmatpush2.bf16.msra.mxu0 0
  %2605 = vmatprep.subr.bf16.mxu0 0
  %2606 = vmatpush2.bf16.msra.mxu0 0
  %2607 = vmatprep.mubr.bf16.mxu0 0
  %2608 = vmatmul.mubr.bf16.gmra.mxu0 %v2564
  %v2609 = vpop.f32.mrf.mxu0
  %v2610 = vadd.f32 %v2554, %v2609
  %v2611 = vpop.f32.mrf.mxu0
  %v2612 = vpop.f32.mrf.mxu0
  %v2613 = vadd.f32 %v2554, %v2612
  %v2614 = vpop.f32.mrf.mxu0
  %2615 = vmatprep.mubr.bf16.mxu0 0
  %2616 = vmatmul.mubr.bf16.gmra.mxu0 %v2567
  %v2617 = vpop.f32.mrf.mxu0
  %v2618 = vadd.f32 %v2554, %v2617
  %v2619 = vpop.f32.mrf.mxu0
  %v2620 = vpop.f32.mrf.mxu0
  %v2621 = vadd.f32 %v2554, %v2620
  %v2622 = vpop.f32.mrf.mxu0
  %2623 = vmatprep.mubr.bf16.mxu0 0
  %2624 = vmatmul.mubr.bf16.gmra.mxu0 %v2570
  %v2625 = vpop.f32.mrf.mxu0
  %v2626 = vadd.f32 %v2554, %v2625
  %v2627 = vpop.f32.mrf.mxu0
  %v2628 = vpop.f32.mrf.mxu0
  %v2629 = vadd.f32 %v2554, %v2628
  %v2630 = vpop.f32.mrf.mxu0
  %2631 = vmatprep.mubr.bf16.mxu0 0
  %2632 = vmatmul.mubr.bf16.gmra.mxu0 %v2573
  %v2633 = vpop.f32.mrf.mxu0
  %v2634 = vadd.f32 %v2554, %v2633
  %v2635 = vpop.f32.mrf.mxu0
  %v2636 = vpop.f32.mrf.mxu0
  %v2637 = vpop.f32.mrf.mxu0
  %2638 = vdwg.mxu0
  %vm2639 = vcmask 433152
  %v2640 = vsel %vm2639, %v2610, -inf
  %2641 = vmax.xlane.f32.xlu0 %v2640
  %v2642 = vpop.xlane.xlu0 %2641
  %v2643 = vsel %vm2639, %v2613, -inf
  %2644 = vmax.xlane.f32.xlu0 %v2643
  %v2645 = vpop.xlane.xlu0 %2644
  %v2646 = vsel %vm2639, %v2618, -inf
  %2647 = vmax.xlane.f32.xlu0 %v2646
  %v2648 = vpop.xlane.xlu0 %2647
  %v2649 = vsel %vm2639, %v2621, -inf
  %2650 = vmax.xlane.f32.xlu0 %v2649
  %v2651 = vpop.xlane.xlu0 %2650
  %v2652 = vsel %vm2639, %v2626, -inf
  %2653 = vmax.xlane.f32.xlu0 %v2652
  %v2654 = vpop.xlane.xlu0 %2653
  %v2655 = vsel %vm2639, %v2629, -inf
  %2656 = vmax.xlane.f32.xlu0 %v2655
  %v2657 = vpop.xlane.xlu0 %2656
  %vm2658 = vcmask 431104
  %v2659 = vsel %vm2658, %v2634, -inf
  %2660 = vmax.xlane.f32.xlu0 %v2659
  %v2661 = vpop.xlane.xlu0 %2660
  %v2662 = vsub.f32 %v2610, %v2642
  %v2663 = vsub.f32 %v2613, %v2645
  %v2664 = vsub.f32 %v2618, %v2648
  %v2665 = vsub.f32 %v2621, %v2651
  %v2666 = vsub.f32 %v2626, %v2654
  %v2667 = vsub.f32 %v2629, %v2657
  %v2668 = vsub.f32 %v2634, %v2661
  %v2669 = vmul.f32 %v2662, 1.442695
  %v2670 = vpow.pop %v2669
  %v2671 = vmul.f32 %v2663, 1.442695
  %v2672 = vpow.pop %v2671
  %v2673 = vmul.f32 %v2664, 1.442695
  %v2674 = vpow.pop %v2673
  %v2675 = vmul.f32 %v2665, 1.442695
  %v2676 = vpow.pop %v2675
  %v2677 = vmul.f32 %v2666, 1.442695
  %v2678 = vpow.pop %v2677
  %v2679 = vmul.f32 %v2667, 1.442695
  %v2680 = vpow.pop %v2679
  %v2681 = vmul.f32 %v2668, 1.442695
  %v2682 = vpow.pop %v2681
  %v2683 = vsel %vm2639, %v2670, 0.0
  %2684 = vadd.xlane.f32.xlu0 %v2683
  %v2685 = vpop.xlane.xlu0 %2684
  %v2686 = vsel %vm2639, %v2672, 0.0
  %2687 = vadd.xlane.f32.xlu0 %v2686
  %v2688 = vpop.xlane.xlu0 %2687
  %v2689 = vsel %vm2639, %v2674, 0.0
  %2690 = vadd.xlane.f32.xlu0 %v2689
  %v2691 = vpop.xlane.xlu0 %2690
  %v2692 = vsel %vm2639, %v2676, 0.0
  %2693 = vadd.xlane.f32.xlu0 %v2692
  %v2694 = vpop.xlane.xlu0 %2693
  %v2695 = vsel %vm2639, %v2678, 0.0
  %2696 = vadd.xlane.f32.xlu0 %v2695
  %v2697 = vpop.xlane.xlu0 %2696
  %v2698 = vsel %vm2639, %v2680, 0.0
  %2699 = vadd.xlane.f32.xlu0 %v2698
  %v2700 = vpop.xlane.xlu0 %2699
  %v2701 = vsel %vm2658, %v2682, 0.0
  %2702 = vadd.xlane.f32.xlu0 %v2701
  %v2703 = vpop.xlane.xlu0 %2702
  %v2704 = vrcp.pop %v2685
  %v2705 = vrcp.pop %v2688
  %v2706 = vrcp.pop %v2691
  %v2707 = vrcp.pop %v2694
  %v2708 = vrcp.pop %v2697
  %v2709 = vrcp.pop %v2700
  %v2710 = vrcp.pop %v2703
  %v2711 = vmul.f32 %v2670, %v2704
  %v2712 = vmul.f32 %v2672, %v2705
  %v2713 = vmul.f32 %v2674, %v2706
  %v2714 = vmul.f32 %v2676, %v2707
  %v2715 = vmul.f32 %v2678, %v2708
  %v2716 = vmul.f32 %v2680, %v2709
  %v2717 = vmul.f32 %v2682, %v2710
  %v2718 = vsel %vm2639, %v2711, 0.0
  %v2719 = vsel %vm2639, %v2712, 0.0
  %v2720 = vsel %vm2639, %v2713, 0.0
  %v2721 = vsel %vm2639, %v2714, 0.0
  %v2722 = vsel %vm2639, %v2715, 0.0
  %v2723 = vsel %vm2639, %v2716, 0.0
  %v2724 = vsel %vm2639, %v2717, 0.0
  %2732 = vrot.lane.b32.xlu0 %v2711, 1
  %v2733 = vpop.permute.xlu0 %2732
  %2734 = vrot.lane.b32.xlu0 %v2712, 1
  %v2735 = vpop.permute.xlu0 %2734
  %2736 = vrot.lane.b32.xlu0 %v2713, 1
  %v2737 = vpop.permute.xlu0 %2736
  %2738 = vrot.lane.b32.xlu0 %v2714, 1
  %v2739 = vpop.permute.xlu0 %2738
  %2740 = vrot.lane.b32.xlu0 %v2715, 1
  %v2741 = vpop.permute.xlu0 %2740
  %2742 = vrot.lane.b32.xlu0 %v2716, 1
  %v2743 = vpop.permute.xlu0 %2742
  %2744 = vrot.lane.b32.xlu0 %v2717, 1
  %v2745 = vpop.permute.xlu0 %2744
  %vm2753 = vcmask 7168
  %v2754 = vsel %vm2753, 0.0, %v2733
  %v2755 = vsel %vm2753, 0.0, %v2735
  %v2756 = vsel %vm2753, 0.0, %v2737
  %v2757 = vsel %vm2753, 0.0, %v2739
  %v2758 = vsel %vm2753, 0.0, %v2741
  %v2759 = vsel %vm2753, 0.0, %v2743
  %v2760 = vsel %vm2753, 0.0, %v2745
  %vm2761 = vcmp.lt.s32.totalorder %v2298, %v2290
  %vm2762 = vcmp.lt.s32.totalorder %v2298, %v2291
  %vm2763 = vcmp.lt.s32.totalorder %v2298, %v2292
  %vm2764 = vcmp.lt.s32.totalorder %v2298, %v2293
  %vm2765 = vcmp.lt.s32.totalorder %v2298, %v2294
  %vm2766 = vcmp.lt.s32.totalorder %v2298, %v2295
  %vm2767 = vcmp.lt.s32.totalorder %v2298, %v2296
  %vm2768 = vcmp.gt.s32.totalorder %v2298, %v2290
  %vm2769 = vcmp.gt.s32.totalorder %v2298, %v2291
  %vm2770 = vcmp.gt.s32.totalorder %v2298, %v2292
  %vm2771 = vcmp.gt.s32.totalorder %v2298, %v2293
  %vm2772 = vcmp.gt.s32.totalorder %v2298, %v2294
  %vm2773 = vcmp.gt.s32.totalorder %v2298, %v2295
  %vm2774 = vcmp.gt.s32.totalorder %v2298, %v2296
  %v2775 = vsel %vm2768, %v2754, 0.0
  %v2776 = vsel %vm2769, %v2755, 0.0
  %v2777 = vsel %vm2770, %v2756, 0.0
  %v2778 = vsel %vm2771, %v2757, 0.0
  %v2779 = vsel %vm2772, %v2758, 0.0
  %v2780 = vsel %vm2773, %v2759, 0.0
  %v2781 = vsel %vm2774, %v2760, 0.0
  %v2782 = vsel %vm2761, %v2718, %v2775
  %v2783 = vsel %vm2762, %v2719, %v2776
  %v2784 = vsel %vm2763, %v2720, %v2777
  %v2785 = vsel %vm2764, %v2721, %v2778
  %v2786 = vsel %vm2765, %v2722, %v2779
  %v2787 = vsel %vm2766, %v2723, %v2780
  %v2788 = vsel %vm2767, %v2724, %v2781
  %v2789 = vpack.c.bf16 %v2783, %v2782
  %v2790 = vpack.c.bf16 %v2785, %v2784
  %v2791 = vpack.c.bf16 %v2787, %v2786
  %v2792 = vpack.c.bf16 %v2788, %v2788
  %vm2793 = vcmask 441344
  %v2795 = vsel %vm2793, %v2789, 0
  %v2798 = vsel %vm2793, %v2790, 0
  %v2801 = vsel %vm2793, %v2791, 0
  %v2804 = vsel %vm2793, %v2792, 0
  %vm2806 = vcmask 1042432
  %v2807 = vsel %vm2806, %v2546, 0
  %2809 = vmatprep.subr.bf16.mxu0 0
  %2810 = vmatpush1.bf16.msra.mxu0 0
  %2811 = vmatprep.subr.bf16.mxu0 0
  %2812 = vmatpush1.bf16.msra.mxu0 0
  %2813 = vmatprep.subr.bf16.mxu0 0
  %2814 = vmatpush1.bf16.msra.mxu0 0
  %2815 = vmatprep.subr.bf16.mxu0 0
  %2816 = vmatpush1.bf16.msra.mxu0 0
  %2817 = vmatprep.subr.bf16.mxu0 0
  %2818 = vmatpush1.bf16.msra.mxu0 %v2807
  %2819 = vmatprep.subr.bf16.mxu0 0
  %2820 = vmatpush1.bf16.msra.mxu0 %v2545
  %2821 = vmatprep.subr.bf16.mxu0 0
  %2822 = vmatpush1.bf16.msra.mxu0 %v2544
  %2823 = vmatprep.subr.bf16.mxu0 0
  %2824 = vmatpush1.bf16.msra.mxu0 %v2543
  %2825 = vmatprep.subr.bf16.mxu0 0
  %2826 = vmatpush2.bf16.msra.mxu0 0
  %2827 = vmatprep.subr.bf16.mxu0 0
  %2828 = vmatpush2.bf16.msra.mxu0 0
  %2829 = vmatprep.subr.bf16.mxu0 0
  %2830 = vmatpush2.bf16.msra.mxu0 0
  %2831 = vmatprep.subr.bf16.mxu0 0
  %2832 = vmatpush2.bf16.msra.mxu0 0
  %2833 = vmatprep.subr.bf16.mxu0 0
  %2834 = vmatpush2.bf16.msra.mxu0 0
  %2835 = vmatprep.subr.bf16.mxu0 0
  %2836 = vmatpush2.bf16.msra.mxu0 0
  %2837 = vmatprep.subr.bf16.mxu0 0
  %2838 = vmatpush2.bf16.msra.mxu0 0
  %2839 = vmatprep.subr.bf16.mxu0 0
  %2840 = vmatpush2.bf16.msra.mxu0 0
  %2841 = vmatprep.mubr.bf16.mxu0 0
  %2842 = vmatmul.mubr.bf16.gmra.mxu0 %v2795
  %v2843 = vpop.f32.mrf.mxu0
  %v2844 = vadd.f32 0.0, %v2843
  %v2845 = vpop.f32.mrf.mxu0
  %v2846 = vpop.f32.mrf.mxu0
  %v2847 = vadd.f32 0.0, %v2846
  %v2848 = vpop.f32.mrf.mxu0
  %2849 = vmatprep.mubr.bf16.mxu0 0
  %2850 = vmatmul.mubr.bf16.gmra.mxu0 %v2798
  %v2851 = vpop.f32.mrf.mxu0
  %v2852 = vadd.f32 0.0, %v2851
  %v2853 = vpop.f32.mrf.mxu0
  %v2854 = vpop.f32.mrf.mxu0
  %v2855 = vadd.f32 0.0, %v2854
  %v2856 = vpop.f32.mrf.mxu0
  %2857 = vmatprep.mubr.bf16.mxu0 0
  %2858 = vmatmul.mubr.bf16.gmra.mxu0 %v2801
  %v2859 = vpop.f32.mrf.mxu0
  %v2860 = vadd.f32 0.0, %v2859
  %v2861 = vpop.f32.mrf.mxu0
  %v2862 = vpop.f32.mrf.mxu0
  %v2863 = vadd.f32 0.0, %v2862
  %v2864 = vpop.f32.mrf.mxu0
  %2865 = vmatprep.mubr.bf16.mxu0 0
  %2866 = vmatmul.mubr.bf16.gmra.mxu0 %v2804
  %v2867 = vpop.f32.mrf.mxu0
  %v2868 = vadd.f32 0.0, %v2867
  %v2869 = vpop.f32.mrf.mxu0
  %v2870 = vpop.f32.mrf.mxu0
  %v2871 = vpop.f32.mrf.mxu0
  %2872 = vdwg.mxu0
  %v2873 = vpack.c.bf16 %v2847, %v2844
  %v2874 = vpack.c.bf16 %v2855, %v2852
  %v2875 = vpack.c.bf16 %v2863, %v2860
  %v2876 = vpack.c.bf16 %v2868, %v2868
  %2881 = vrot.lane.b32.xlu0 %v2543, 16
  %v2882 = vpop.permute.xlu0 %2881
  %2883 = vrot.lane.b32.xlu0 %v2544, 16
  %v2884 = vpop.permute.xlu0 %2883
  %2885 = vrot.lane.b32.xlu0 %v2545, 16
  %v2886 = vpop.permute.xlu0 %2885
  %2887 = vrot.lane.b32.xlu0 %v2546, 16
  %v2888 = vpop.permute.xlu0 %2887
  %v2891 = vsel %vm2562, %v2873, %v2882
  %v2894 = vsel %vm2562, %v2874, %v2884
  %v2897 = vsel %vm2562, %v2875, %v2886
  %v2900 = vsel %vm2562, %v2876, %v2888
  %v2901 = vld [vmem:[%s8] sm:$0xf]
  %v2902 = vld [vmem:[%s8 + $0x4] sm:$0xf]
  %v2903 = vld [vmem:[%s8 + $0x8] sm:$0xf]
  %v2904 = vld [vmem:[%s8 + $0xc] sm:$0xf]
  %v2905 = vld [vmem:[%s9] sm:$0x1]
  %v2907 = vlaneseq
  %v2908 = vshrl.u32 %v2907, 7
  %v2909 = vsub.s32 0, %v2908
  %v2910 = vrot.slane %v2905, %v2909
  %v2916 = vunpack.c.l.b16 %v2901
  %v2917 = vunpack.c.l.b16 %v2902
  %v2918 = vunpack.c.l.b16 %v2903
  %v2919 = vunpack.c.l.b16 %v2904
  %v2920 = vpack.c.b16 %v2917, %v2916
  %v2921 = vpack.c.b16 %v2919, %v2918
  %v2924 = vsel %vm2244, %v2891, 0
  %v2926 = vsel %vm2244, %v2894, 0
  %v2928 = vsel %vm2244, %v2897, 0
  %v2930 = vsel %vm2244, %v2900, 0
  %2932 = vmatprep.subr.bf16.mxu0 0
  %2933 = vmatpush1.bf16.msra.mxu0 0
  %2934 = vmatprep.subr.bf16.mxu0 0
  %2935 = vmatpush1.bf16.msra.mxu0 0
  %2936 = vmatprep.subr.bf16.mxu0 0
  %2937 = vmatpush1.bf16.msra.mxu0 0
  %2938 = vmatprep.subr.bf16.mxu0 0
  %2939 = vmatpush1.bf16.msra.mxu0 0
  %2940 = vmatprep.subr.bf16.mxu0 0
  %2941 = vmatpush1.bf16.msra.mxu0 0
  %2942 = vmatprep.subr.bf16.mxu0 0
  %2943 = vmatpush1.bf16.msra.mxu0 0
  %2944 = vmatprep.subr.bf16.mxu0 0
  %2945 = vmatpush1.bf16.msra.mxu0 %v2921
  %2946 = vmatprep.subr.bf16.mxu0 0
  %2947 = vmatpush1.bf16.msra.mxu0 %v2920
  %2948 = vmatprep.subr.bf16.mxu0 0
  %2949 = vmatpush2.bf16.msra.mxu0 0
  %2950 = vmatprep.subr.bf16.mxu0 0
  %2951 = vmatpush2.bf16.msra.mxu0 0
  %2952 = vmatprep.subr.bf16.mxu0 0
  %2953 = vmatpush2.bf16.msra.mxu0 0
  %2954 = vmatprep.subr.bf16.mxu0 0
  %2955 = vmatpush2.bf16.msra.mxu0 0
  %2956 = vmatprep.subr.bf16.mxu0 0
  %2957 = vmatpush2.bf16.msra.mxu0 0
  %2958 = vmatprep.subr.bf16.mxu0 0
  %2959 = vmatpush2.bf16.msra.mxu0 0
  %2960 = vmatprep.subr.bf16.mxu0 0
  %2961 = vmatpush2.bf16.msra.mxu0 0
  %2962 = vmatprep.subr.bf16.mxu0 0
  %2963 = vmatpush2.bf16.msra.mxu0 0
  %2964 = vmatprep.mubr.bf16.mxu0 0
  %2965 = vmatmul.mubr.bf16.gmra.mxu0 %v2924
  %v2966 = vpop.f32.mrf.mxu0
  %v2967 = vadd.f32 %v2910, %v2966
  %v2968 = vpop.f32.mrf.mxu0
  %v2969 = vpop.f32.mrf.mxu0
  %v2970 = vadd.f32 %v2910, %v2969
  %v2971 = vpop.f32.mrf.mxu0
  %2972 = vmatprep.mubr.bf16.mxu0 0
  %2973 = vmatmul.mubr.bf16.gmra.mxu0 %v2926
  %v2974 = vpop.f32.mrf.mxu0
  %v2975 = vadd.f32 %v2910, %v2974
  %v2976 = vpop.f32.mrf.mxu0
  %v2977 = vpop.f32.mrf.mxu0
  %v2978 = vadd.f32 %v2910, %v2977
  %v2979 = vpop.f32.mrf.mxu0
  %2980 = vmatprep.mubr.bf16.mxu0 0
  %2981 = vmatmul.mubr.bf16.gmra.mxu0 %v2928
  %v2982 = vpop.f32.mrf.mxu0
  %v2983 = vadd.f32 %v2910, %v2982
  %v2984 = vpop.f32.mrf.mxu0
  %v2985 = vpop.f32.mrf.mxu0
  %v2986 = vadd.f32 %v2910, %v2985
  %v2987 = vpop.f32.mrf.mxu0
  %2988 = vmatprep.mubr.bf16.mxu0 0
  %2989 = vmatmul.mubr.bf16.gmra.mxu0 %v2930
  %v2990 = vpop.f32.mrf.mxu0
  %v2991 = vadd.f32 %v2910, %v2990
  %v2992 = vpop.f32.mrf.mxu0
  %v2993 = vpop.f32.mrf.mxu0
  %v2994 = vpop.f32.mrf.mxu0
  %2995 = vdwg.mxu0
  %v2996 = vld [vmem:[%s10] sm:$0xff]
  %v2997 = vld [vmem:[%s10 + $0x8] sm:$0xff]
  %v2998 = vld [vmem:[%s10 + $0x10] sm:$0xff]
  %v2999 = vld [vmem:[%s10 + $0x18] sm:$0xff]
  %v3000 = vld [vmem:[%s10 + $0x20] sm:$0xff]
  %v3001 = vld [vmem:[%s10 + $0x28] sm:$0xff]
  %v3002 = vld [vmem:[%s10 + $0x30] sm:$0x3f]
  %v3003 = vadd.f32 %v2967, %v2996
  %v3004 = vadd.f32 %v2970, %v2997
  %v3005 = vadd.f32 %v2975, %v2998
  %v3006 = vadd.f32 %v2978, %v2999
  %v3007 = vadd.f32 %v2983, %v3000
  %v3008 = vadd.f32 %v2986, %v3001
  %v3009 = vadd.f32 %v2991, %v3002
  %3010 = vst [vmem:[%s11] sm:$0xff] %v3003
  %3011 = vst [vmem:[%s11 + $0x8] sm:$0xff] %v3004
  %3012 = vst [vmem:[%s11 + $0x10] sm:$0xff] %v3005
  %3013 = vst [vmem:[%s11 + $0x18] sm:$0xff] %v3006
  %3014 = vst [vmem:[%s11 + $0x20] sm:$0xff] %v3007
  %3015 = vst [vmem:[%s11 + $0x28] sm:$0xff] %v3008
  %3016 = vst [vmem:[%s11 + $0x30] sm:$0x3f] %v3009
  %v3017 = vpack.c.bf16 %v2286, %v2286
  %v3018 = vld [vmem:[%s5] sm:$0xf]
  %v3019 = vld [vmem:[%s5 + $0x4] sm:$0xf]
  %v3020 = vld [vmem:[%s5 + $0x8] sm:$0xf]
  %v3021 = vld [vmem:[%s5 + $0xc] sm:$0xf]
  %v3022 = vld [vmem:[%s5 + $0x10] sm:$0xf]
  %v3023 = vld [vmem:[%s5 + $0x14] sm:$0xf]
  %v3024 = vld [vmem:[%s5 + $0x18] sm:$0x7]
  %v3032 = vunpack.c.l.b16 %v3018
  %v3033 = vunpack.c.l.b16 %v3019
  %v3034 = vunpack.c.l.b16 %v3020
  %v3035 = vunpack.c.l.b16 %v3021
  %v3036 = vunpack.c.l.b16 %v3022
  %v3037 = vunpack.c.l.b16 %v3023
  %v3038 = vunpack.c.l.b16 %v3024
  %v3039 = vpack.c.b16 %v3033, %v3032
  %v3040 = vpack.c.b16 %v3035, %v3034
  %v3041 = vpack.c.b16 %v3037, %v3036
  %v3042 = vpack.c.b16 %v3038, %v3038
  %v3044 = vsel %vm2325, %v3039, 0
  %v3047 = vsel %vm2325, %v3040, 0
  %v3050 = vsel %vm2325, %v3041, 0
  %v3053 = vsel %vm2325, %v3042, 0
  %v3056 = vsel %vm2338, %v3017, 0
  %3058 = vmatprep.subr.bf16.mxu0 0
  %3059 = vmatpush1.bf16.msra.mxu0 0
  %3060 = vmatprep.subr.bf16.mxu0 0
  %3061 = vmatpush1.bf16.msra.mxu0 0
  %3062 = vmatprep.subr.bf16.mxu0 0
  %3063 = vmatpush1.bf16.msra.mxu0 0
  %3064 = vmatprep.subr.bf16.mxu0 0
  %3065 = vmatpush1.bf16.msra.mxu0 0
  %3066 = vmatprep.subr.bf16.mxu0 0
  %3067 = vmatpush1.bf16.msra.mxu0 0
  %3068 = vmatprep.subr.bf16.mxu0 0
  %3069 = vmatpush1.bf16.msra.mxu0 0
  %3070 = vmatprep.subr.bf16.mxu0 0
  %3071 = vmatpush1.bf16.msra.mxu0 0
  %3072 = vmatprep.subr.bf16.mxu0 0
  %3073 = vmatpush1.bf16.msra.mxu0 %v3056
  %3074 = vmatprep.subr.bf16.mxu0 0
  %3075 = vmatpush2.bf16.msra.mxu0 0
  %3076 = vmatprep.subr.bf16.mxu0 0
  %3077 = vmatpush2.bf16.msra.mxu0 0
  %3078 = vmatprep.subr.bf16.mxu0 0
  %3079 = vmatpush2.bf16.msra.mxu0 0
  %3080 = vmatprep.subr.bf16.mxu0 0
  %3081 = vmatpush2.bf16.msra.mxu0 0
  %3082 = vmatprep.subr.bf16.mxu0 0
  %3083 = vmatpush2.bf16.msra.mxu0 0
  %3084 = vmatprep.subr.bf16.mxu0 0
  %3085 = vmatpush2.bf16.msra.mxu0 0
  %3086 = vmatprep.subr.bf16.mxu0 0
  %3087 = vmatpush2.bf16.msra.mxu0 0
  %3088 = vmatprep.subr.bf16.mxu0 0
  %3089 = vmatpush2.bf16.msra.mxu0 0
  %3090 = vmatprep.mubr.bf16.mxu0 0
  %3091 = vmatmul.mubr.bf16.gmra.mxu0 %v3044
  %v3092 = vpop.f32.mrf.mxu0
  %v3093 = vadd.f32 0.0, %v3092
  %v3094 = vpop.f32.mrf.mxu0
  %v3095 = vpop.f32.mrf.mxu0
  %v3096 = vadd.f32 0.0, %v3095
  %v3097 = vpop.f32.mrf.mxu0
  %3098 = vmatprep.mubr.bf16.mxu0 0
  %3099 = vmatmul.mubr.bf16.gmra.mxu0 %v3047
  %v3100 = vpop.f32.mrf.mxu0
  %v3101 = vadd.f32 0.0, %v3100
  %v3102 = vpop.f32.mrf.mxu0
  %v3103 = vpop.f32.mrf.mxu0
  %v3104 = vadd.f32 0.0, %v3103
  %v3105 = vpop.f32.mrf.mxu0
  %3106 = vmatprep.mubr.bf16.mxu0 0
  %3107 = vmatmul.mubr.bf16.gmra.mxu0 %v3050
  %v3108 = vpop.f32.mrf.mxu0
  %v3109 = vadd.f32 0.0, %v3108
  %v3110 = vpop.f32.mrf.mxu0
  %v3111 = vpop.f32.mrf.mxu0
  %v3112 = vadd.f32 0.0, %v3111
  %v3113 = vpop.f32.mrf.mxu0
  %3114 = vmatprep.mubr.bf16.mxu0 0
  %3115 = vmatmul.mubr.bf16.gmra.mxu0 %v3053
  %v3116 = vpop.f32.mrf.mxu0
  %v3117 = vadd.f32 0.0, %v3116
  %v3118 = vpop.f32.mrf.mxu0
  %v3119 = vpop.f32.mrf.mxu0
  %v3120 = vpop.f32.mrf.mxu0
  %3121 = vdwg.mxu0
  %v3122 = vld [vmem:[%s2406] sm:$0xf]
  %v3123 = vld [vmem:[%s2406 + $0x4] sm:$0xf]
  %v3124 = vld [vmem:[%s2406 + $0x8] sm:$0xf]
  %v3125 = vld [vmem:[%s2406 + $0xc] sm:$0xf]
  %v3126 = vld [vmem:[%s2406 + $0x10] sm:$0xf]
  %v3127 = vld [vmem:[%s2406 + $0x14] sm:$0xf]
  %v3128 = vld [vmem:[%s2406 + $0x18] sm:$0x7]
  %v3136 = vunpack.c.l.b16 %v3122
  %v3137 = vunpack.c.l.b16 %v3123
  %v3138 = vunpack.c.l.b16 %v3124
  %v3139 = vunpack.c.l.b16 %v3125
  %v3140 = vunpack.c.l.b16 %v3126
  %v3141 = vunpack.c.l.b16 %v3127
  %v3142 = vunpack.c.l.b16 %v3128
  %v3143 = vpack.c.b16 %v3137, %v3136
  %v3144 = vpack.c.b16 %v3139, %v3138
  %v3145 = vpack.c.b16 %v3141, %v3140
  %v3146 = vpack.c.b16 %v3142, %v3142
  %v3148 = vsel %vm2325, %v3143, 0
  %v3151 = vsel %vm2325, %v3144, 0
  %v3154 = vsel %vm2325, %v3145, 0
  %v3157 = vsel %vm2325, %v3146, 0
  %3159 = vmatprep.subr.bf16.mxu0 0
  %3160 = vmatpush1.bf16.msra.mxu0 0
  %3161 = vmatprep.subr.bf16.mxu0 0
  %3162 = vmatpush1.bf16.msra.mxu0 0
  %3163 = vmatprep.subr.bf16.mxu0 0
  %3164 = vmatpush1.bf16.msra.mxu0 0
  %3165 = vmatprep.subr.bf16.mxu0 0
  %3166 = vmatpush1.bf16.msra.mxu0 0
  %3167 = vmatprep.subr.bf16.mxu0 0
  %3168 = vmatpush1.bf16.msra.mxu0 0
  %3169 = vmatprep.subr.bf16.mxu0 0
  %3170 = vmatpush1.bf16.msra.mxu0 0
  %3171 = vmatprep.subr.bf16.mxu0 0
  %3172 = vmatpush1.bf16.msra.mxu0 0
  %3173 = vmatprep.subr.bf16.mxu0 0
  %3174 = vmatpush1.bf16.msra.mxu0 %v3056
  %3175 = vmatprep.subr.bf16.mxu0 0
  %3176 = vmatpush2.bf16.msra.mxu0 0
  %3177 = vmatprep.subr.bf16.mxu0 0
  %3178 = vmatpush2.bf16.msra.mxu0 0
  %3179 = vmatprep.subr.bf16.mxu0 0
  %3180 = vmatpush2.bf16.msra.mxu0 0
  %3181 = vmatprep.subr.bf16.mxu0 0
  %3182 = vmatpush2.bf16.msra.mxu0 0
  %3183 = vmatprep.subr.bf16.mxu0 0
  %3184 = vmatpush2.bf16.msra.mxu0 0
  %3185 = vmatprep.subr.bf16.mxu0 0
  %3186 = vmatpush2.bf16.msra.mxu0 0
  %3187 = vmatprep.subr.bf16.mxu0 0
  %3188 = vmatpush2.bf16.msra.mxu0 0
  %3189 = vmatprep.subr.bf16.mxu0 0
  %3190 = vmatpush2.bf16.msra.mxu0 0
  %3191 = vmatprep.mubr.bf16.mxu0 0
  %3192 = vmatmul.mubr.bf16.gmra.mxu0 %v3148
  %v3193 = vpop.f32.mrf.mxu0
  %v3194 = vadd.f32 0.0, %v3193
  %v3195 = vpop.f32.mrf.mxu0
  %v3196 = vpop.f32.mrf.mxu0
  %v3197 = vadd.f32 0.0, %v3196
  %v3198 = vpop.f32.mrf.mxu0
  %3199 = vmatprep.mubr.bf16.mxu0 0
  %3200 = vmatmul.mubr.bf16.gmra.mxu0 %v3151
  %v3201 = vpop.f32.mrf.mxu0
  %v3202 = vadd.f32 0.0, %v3201
  %v3203 = vpop.f32.mrf.mxu0
  %v3204 = vpop.f32.mrf.mxu0
  %v3205 = vadd.f32 0.0, %v3204
  %v3206 = vpop.f32.mrf.mxu0
  %3207 = vmatprep.mubr.bf16.mxu0 0
  %3208 = vmatmul.mubr.bf16.gmra.mxu0 %v3154
  %v3209 = vpop.f32.mrf.mxu0
  %v3210 = vadd.f32 0.0, %v3209
  %v3211 = vpop.f32.mrf.mxu0
  %v3212 = vpop.f32.mrf.mxu0
  %v3213 = vadd.f32 0.0, %v3212
  %v3214 = vpop.f32.mrf.mxu0
  %3215 = vmatprep.mubr.bf16.mxu0 0
  %3216 = vmatmul.mubr.bf16.gmra.mxu0 %v3157
  %v3217 = vpop.f32.mrf.mxu0
  %v3218 = vadd.f32 0.0, %v3217
  %v3219 = vpop.f32.mrf.mxu0
  %v3220 = vpop.f32.mrf.mxu0
  %v3221 = vpop.f32.mrf.mxu0
  %3222 = vdwg.mxu0
  %3230 = vrot.lane.b32.xlu0 %v3194, 8
  %v3231 = vpop.permute.xlu0 %3230
  %3232 = vrot.lane.b32.xlu0 %v3197, 8
  %v3233 = vpop.permute.xlu0 %3232
  %3234 = vrot.lane.b32.xlu0 %v3202, 8
  %v3235 = vpop.permute.xlu0 %3234
  %3236 = vrot.lane.b32.xlu0 %v3205, 8
  %v3237 = vpop.permute.xlu0 %3236
  %3238 = vrot.lane.b32.xlu0 %v3210, 8
  %v3239 = vpop.permute.xlu0 %3238
  %3240 = vrot.lane.b32.xlu0 %v3213, 8
  %v3241 = vpop.permute.xlu0 %3240
  %3242 = vrot.lane.b32.xlu0 %v3218, 8
  %v3243 = vpop.permute.xlu0 %3242
  %v3251 = vsel %vm2325, %v3093, %v3231
  %v3252 = vsel %vm2325, %v3096, %v3233
  %v3253 = vsel %vm2325, %v3101, %v3235
  %v3254 = vsel %vm2325, %v3104, %v3237
  %v3255 = vsel %vm2325, %v3109, %v3239
  %v3256 = vsel %vm2325, %v3112, %v3241
  %v3257 = vsel %vm2325, %v3117, %v3243
  %v3258 = vpack.c.bf16 %v3252, %v3251
  %v3259 = vpack.c.bf16 %v3254, %v3253
  %v3260 = vpack.c.bf16 %v3256, %v3255
  %v3261 = vpack.c.bf16 %v3257, %v3257
  %v3262 = vld [vmem:[%s6] sm:$0xf]
  %v3263 = vld [vmem:[%s6 + $0x4] sm:$0xf]
  %v3264 = vld [vmem:[%s7] sm:$0x1]
  %v3266 = vlaneseq
  %v3267 = vshrl.u32 %v3266, 7
  %v3268 = vsub.s32 0, %v3267
  %v3269 = vrot.slane %v3264, %v3268
  %v3273 = vunpack.c.l.b16 %v3262
  %v3274 = vunpack.c.l.b16 %v3263
  %v3275 = vpack.c.b16 %v3274, %v3273
  %v3278 = vsel %vm2562, %v3258, 0
  %v3281 = vsel %vm2562, %v3259, 0
  %v3284 = vsel %vm2562, %v3260, 0
  %v3287 = vsel %vm2562, %v3261, 0
  %3289 = vmatprep.subr.bf16.mxu0 0
  %3290 = vmatpush1.bf16.msra.mxu0 0
  %3291 = vmatprep.subr.bf16.mxu0 0
  %3292 = vmatpush1.bf16.msra.mxu0 0
  %3293 = vmatprep.subr.bf16.mxu0 0
  %3294 = vmatpush1.bf16.msra.mxu0 0
  %3295 = vmatprep.subr.bf16.mxu0 0
  %3296 = vmatpush1.bf16.msra.mxu0 0
  %3297 = vmatprep.subr.bf16.mxu0 0
  %3298 = vmatpush1.bf16.msra.mxu0 0
  %3299 = vmatprep.subr.bf16.mxu0 0
  %3300 = vmatpush1.bf16.msra.mxu0 0
  %3301 = vmatprep.subr.bf16.mxu0 0
  %3302 = vmatpush1.bf16.msra.mxu0 0
  %3303 = vmatprep.subr.bf16.mxu0 0
  %3304 = vmatpush1.bf16.msra.mxu0 %v3275
  %3305 = vmatprep.subr.bf16.mxu0 0
  %3306 = vmatpush2.bf16.msra.mxu0 0
  %3307 = vmatprep.subr.bf16.mxu0 0
  %3308 = vmatpush2.bf16.msra.mxu0 0
  %3309 = vmatprep.subr.bf16.mxu0 0
  %3310 = vmatpush2.bf16.msra.mxu0 0
  %3311 = vmatprep.subr.bf16.mxu0 0
  %3312 = vmatpush2.bf16.msra.mxu0 0
  %3313 = vmatprep.subr.bf16.mxu0 0
  %3314 = vmatpush2.bf16.msra.mxu0 0
  %3315 = vmatprep.subr.bf16.mxu0 0
  %3316 = vmatpush2.bf16.msra.mxu0 0
  %3317 = vmatprep.subr.bf16.mxu0 0
  %3318 = vmatpush2.bf16.msra.mxu0 0
  %3319 = vmatprep.subr.bf16.mxu0 0
  %3320 = vmatpush2.bf16.msra.mxu0 0
  %3321 = vmatprep.mubr.bf16.mxu0 0
  %3322 = vmatmul.mubr.bf16.gmra.mxu0 %v3278
  %v3323 = vpop.f32.mrf.mxu0
  %v3324 = vadd.f32 %v3269, %v3323
  %v3325 = vpop.f32.mrf.mxu0
  %v3326 = vpop.f32.mrf.mxu0
  %v3327 = vadd.f32 %v3269, %v3326
  %v3328 = vpop.f32.mrf.mxu0
  %3329 = vmatprep.mubr.bf16.mxu0 0
  %3330 = vmatmul.mubr.bf16.gmra.mxu0 %v3281
  %v3331 = vpop.f32.mrf.mxu0
  %v3332 = vadd.f32 %v3269, %v3331
  %v3333 = vpop.f32.mrf.mxu0
  %v3334 = vpop.f32.mrf.mxu0
  %v3335 = vadd.f32 %v3269, %v3334
  %v3336 = vpop.f32.mrf.mxu0
  %3337 = vmatprep.mubr.bf16.mxu0 0
  %3338 = vmatmul.mubr.bf16.gmra.mxu0 %v3284
  %v3339 = vpop.f32.mrf.mxu0
  %v3340 = vadd.f32 %v3269, %v3339
  %v3341 = vpop.f32.mrf.mxu0
  %v3342 = vpop.f32.mrf.mxu0
  %v3343 = vadd.f32 %v3269, %v3342
  %v3344 = vpop.f32.mrf.mxu0
  %3345 = vmatprep.mubr.bf16.mxu0 0
  %3346 = vmatmul.mubr.bf16.gmra.mxu0 %v3287
  %v3347 = vpop.f32.mrf.mxu0
  %v3348 = vadd.f32 %v3269, %v3347
  %v3349 = vpop.f32.mrf.mxu0
  %v3350 = vpop.f32.mrf.mxu0
  %v3351 = vpop.f32.mrf.mxu0
  %3352 = vdwg.mxu0
  %v3353 = vsel %vm2639, %v3324, -inf
  %3354 = vmax.xlane.f32.xlu0 %v3353
  %v3355 = vpop.xlane.xlu0 %3354
  %v3356 = vsel %vm2639, %v3327, -inf
  %3357 = vmax.xlane.f32.xlu0 %v3356
  %v3358 = vpop.xlane.xlu0 %3357
  %v3359 = vsel %vm2639, %v3332, -inf
  %3360 = vmax.xlane.f32.xlu0 %v3359
  %v3361 = vpop.xlane.xlu0 %3360
  %v3362 = vsel %vm2639, %v3335, -inf
  %3363 = vmax.xlane.f32.xlu0 %v3362
  %v3364 = vpop.xlane.xlu0 %3363
  %v3365 = vsel %vm2639, %v3340, -inf
  %3366 = vmax.xlane.f32.xlu0 %v3365
  %v3367 = vpop.xlane.xlu0 %3366
  %v3368 = vsel %vm2639, %v3343, -inf
  %3369 = vmax.xlane.f32.xlu0 %v3368
  %v3370 = vpop.xlane.xlu0 %3369
  %v3371 = vsel %vm2658, %v3348, -inf
  %3372 = vmax.xlane.f32.xlu0 %v3371
  %v3373 = vpop.xlane.xlu0 %3372
  %v3374 = vsub.f32 %v3324, %v3355
  %v3375 = vsub.f32 %v3327, %v3358
  %v3376 = vsub.f32 %v3332, %v3361
  %v3377 = vsub.f32 %v3335, %v3364
  %v3378 = vsub.f32 %v3340, %v3367
  %v3379 = vsub.f32 %v3343, %v3370
  %v3380 = vsub.f32 %v3348, %v3373
  %v3381 = vmul.f32 %v3374, 1.442695
  %v3382 = vpow.pop %v3381
  %v3383 = vmul.f32 %v3375, 1.442695
  %v3384 = vpow.pop %v3383
  %v3385 = vmul.f32 %v3376, 1.442695
  %v3386 = vpow.pop %v3385
  %v3387 = vmul.f32 %v3377, 1.442695
  %v3388 = vpow.pop %v3387
  %v3389 = vmul.f32 %v3378, 1.442695
  %v3390 = vpow.pop %v3389
  %v3391 = vmul.f32 %v3379, 1.442695
  %v3392 = vpow.pop %v3391
  %v3393 = vmul.f32 %v3380, 1.442695
  %v3394 = vpow.pop %v3393
  %v3395 = vsel %vm2639, %v3382, 0.0
  %3396 = vadd.xlane.f32.xlu0 %v3395
  %v3397 = vpop.xlane.xlu0 %3396
  %v3398 = vsel %vm2639, %v3384, 0.0
  %3399 = vadd.xlane.f32.xlu0 %v3398
  %v3400 = vpop.xlane.xlu0 %3399
  %v3401 = vsel %vm2639, %v3386, 0.0
  %3402 = vadd.xlane.f32.xlu0 %v3401
  %v3403 = vpop.xlane.xlu0 %3402
  %v3404 = vsel %vm2639, %v3388, 0.0
  %3405 = vadd.xlane.f32.xlu0 %v3404
  %v3406 = vpop.xlane.xlu0 %3405
  %v3407 = vsel %vm2639, %v3390, 0.0
  %3408 = vadd.xlane.f32.xlu0 %v3407
  %v3409 = vpop.xlane.xlu0 %3408
  %v3410 = vsel %vm2639, %v3392, 0.0
  %3411 = vadd.xlane.f32.xlu0 %v3410
  %v3412 = vpop.xlane.xlu0 %3411
  %v3413 = vsel %vm2658, %v3394, 0.0
  %3414 = vadd.xlane.f32.xlu0 %v3413
  %v3415 = vpop.xlane.xlu0 %3414
  %v3416 = vrcp.pop %v3397
  %v3417 = vrcp.pop %v3400
  %v3418 = vrcp.pop %v3403
  %v3419 = vrcp.pop %v3406
  %v3420 = vrcp.pop %v3409
  %v3421 = vrcp.pop %v3412
  %v3422 = vrcp.pop %v3415
  %v3423 = vmul.f32 %v3382, %v3416
  %v3424 = vmul.f32 %v3384, %v3417
  %v3425 = vmul.f32 %v3386, %v3418
  %v3426 = vmul.f32 %v3388, %v3419
  %v3427 = vmul.f32 %v3390, %v3420
  %v3428 = vmul.f32 %v3392, %v3421
  %v3429 = vmul.f32 %v3394, %v3422
  %v3430 = vsel %vm2639, %v3423, 0.0
  %v3431 = vsel %vm2639, %v3424, 0.0
  %v3432 = vsel %vm2639, %v3425, 0.0
  %v3433 = vsel %vm2639, %v3426, 0.0
  %v3434 = vsel %vm2639, %v3427, 0.0
  %v3435 = vsel %vm2639, %v3428, 0.0
  %v3436 = vsel %vm2639, %v3429, 0.0
  %3444 = vrot.lane.b32.xlu0 %v3423, 1
  %v3445 = vpop.permute.xlu0 %3444
  %3446 = vrot.lane.b32.xlu0 %v3424, 1
  %v3447 = vpop.permute.xlu0 %3446
  %3448 = vrot.lane.b32.xlu0 %v3425, 1
  %v3449 = vpop.permute.xlu0 %3448
  %3450 = vrot.lane.b32.xlu0 %v3426, 1
  %v3451 = vpop.permute.xlu0 %3450
  %3452 = vrot.lane.b32.xlu0 %v3427, 1
  %v3453 = vpop.permute.xlu0 %3452
  %3454 = vrot.lane.b32.xlu0 %v3428, 1
  %v3455 = vpop.permute.xlu0 %3454
  %3456 = vrot.lane.b32.xlu0 %v3429, 1
  %v3457 = vpop.permute.xlu0 %3456
  %v3465 = vsel %vm2753, 0.0, %v3445
  %v3466 = vsel %vm2753, 0.0, %v3447
  %v3467 = vsel %vm2753, 0.0, %v3449
  %v3468 = vsel %vm2753, 0.0, %v3451
  %v3469 = vsel %vm2753, 0.0, %v3453
  %v3470 = vsel %vm2753, 0.0, %v3455
  %v3471 = vsel %vm2753, 0.0, %v3457
  %v3472 = vsel %vm2768, %v3465, 0.0
  %v3473 = vsel %vm2769, %v3466, 0.0
  %v3474 = vsel %vm2770, %v3467, 0.0
  %v3475 = vsel %vm2771, %v3468, 0.0
  %v3476 = vsel %vm2772, %v3469, 0.0
  %v3477 = vsel %vm2773, %v3470, 0.0
  %v3478 = vsel %vm2774, %v3471, 0.0
  %v3479 = vsel %vm2761, %v3430, %v3472
  %v3480 = vsel %vm2762, %v3431, %v3473
  %v3481 = vsel %vm2763, %v3432, %v3474
  %v3482 = vsel %vm2764, %v3433, %v3475
  %v3483 = vsel %vm2765, %v3434, %v3476
  %v3484 = vsel %vm2766, %v3435, %v3477
  %v3485 = vsel %vm2767, %v3436, %v3478
  %v3486 = vpack.c.bf16 %v3480, %v3479
  %v3487 = vpack.c.bf16 %v3482, %v3481
  %v3488 = vpack.c.bf16 %v3484, %v3483
  %v3489 = vpack.c.bf16 %v3485, %v3485
  %v3491 = vsel %vm2793, %v3486, 0
  %v3494 = vsel %vm2793, %v3487, 0
  %v3497 = vsel %vm2793, %v3488, 0
  %v3500 = vsel %vm2793, %v3489, 0
  %v3502 = vsel %vm2806, %v3261, 0
  %3504 = vmatprep.subr.bf16.mxu0 0
  %3505 = vmatpush1.bf16.msra.mxu0 0
  %3506 = vmatprep.subr.bf16.mxu0 0
  %3507 = vmatpush1.bf16.msra.mxu0 0
  %3508 = vmatprep.subr.bf16.mxu0 0
  %3509 = vmatpush1.bf16.msra.mxu0 0
  %3510 = vmatprep.subr.bf16.mxu0 0
  %3511 = vmatpush1.bf16.msra.mxu0 0
  %3512 = vmatprep.subr.bf16.mxu0 0
  %3513 = vmatpush1.bf16.msra.mxu0 %v3502
  %3514 = vmatprep.subr.bf16.mxu0 0
  %3515 = vmatpush1.bf16.msra.mxu0 %v3260
  %3516 = vmatprep.subr.bf16.mxu0 0
  %3517 = vmatpush1.bf16.msra.mxu0 %v3259
  %3518 = vmatprep.subr.bf16.mxu0 0
  %3519 = vmatpush1.bf16.msra.mxu0 %v3258
  %3520 = vmatprep.subr.bf16.mxu0 0
  %3521 = vmatpush2.bf16.msra.mxu0 0
  %3522 = vmatprep.subr.bf16.mxu0 0
  %3523 = vmatpush2.bf16.msra.mxu0 0
  %3524 = vmatprep.subr.bf16.mxu0 0
  %3525 = vmatpush2.bf16.msra.mxu0 0
  %3526 = vmatprep.subr.bf16.mxu0 0
  %3527 = vmatpush2.bf16.msra.mxu0 0
  %3528 = vmatprep.subr.bf16.mxu0 0
  %3529 = vmatpush2.bf16.msra.mxu0 0
  %3530 = vmatprep.subr.bf16.mxu0 0
  %3531 = vmatpush2.bf16.msra.mxu0 0
  %3532 = vmatprep.subr.bf16.mxu0 0
  %3533 = vmatpush2.bf16.msra.mxu0 0
  %3534 = vmatprep.subr.bf16.mxu0 0
  %3535 = vmatpush2.bf16.msra.mxu0 0
  %3536 = vmatprep.mubr.bf16.mxu0 0
  %3537 = vmatmul.mubr.bf16.gmra.mxu0 %v3491
  %v3538 = vpop.f32.mrf.mxu0
  %v3539 = vadd.f32 0.0, %v3538
  %v3540 = vpop.f32.mrf.mxu0
  %v3541 = vpop.f32.mrf.mxu0
  %v3542 = vadd.f32 0.0, %v3541
  %v3543 = vpop.f32.mrf.mxu0
  %3544 = vmatprep.mubr.bf16.mxu0 0
  %3545 = vmatmul.mubr.bf16.gmra.mxu0 %v3494
  %v3546 = vpop.f32.mrf.mxu0
  %v3547 = vadd.f32 0.0, %v3546
  %v3548 = vpop.f32.mrf.mxu0
  %v3549 = vpop.f32.mrf.mxu0
  %v3550 = vadd.f32 0.0, %v3549
  %v3551 = vpop.f32.mrf.mxu0
  %3552 = vmatprep.mubr.bf16.mxu0 0
  %3553 = vmatmul.mubr.bf16.gmra.mxu0 %v3497
  %v3554 = vpop.f32.mrf.mxu0
  %v3555 = vadd.f32 0.0, %v3554
  %v3556 = vpop.f32.mrf.mxu0
  %v3557 = vpop.f32.mrf.mxu0
  %v3558 = vadd.f32 0.0, %v3557
  %v3559 = vpop.f32.mrf.mxu0
  %3560 = vmatprep.mubr.bf16.mxu0 0
  %3561 = vmatmul.mubr.bf16.gmra.mxu0 %v3500
  %v3562 = vpop.f32.mrf.mxu0
  %v3563 = vadd.f32 0.0, %v3562
  %v3564 = vpop.f32.mrf.mxu0
  %v3565 = vpop.f32.mrf.mxu0
  %v3566 = vpop.f32.mrf.mxu0
  %3567 = vdwg.mxu0
  %v3568 = vpack.c.bf16 %v3542, %v3539
  %v3569 = vpack.c.bf16 %v3550, %v3547
  %v3570 = vpack.c.bf16 %v3558, %v3555
  %v3571 = vpack.c.bf16 %v3563, %v3563
  %3576 = vrot.lane.b32.xlu0 %v3258, 16
  %v3577 = vpop.permute.xlu0 %3576
  %3578 = vrot.lane.b32.xlu0 %v3259, 16
  %v3579 = vpop.permute.xlu0 %3578
  %3580 = vrot.lane.b32.xlu0 %v3260, 16
  %v3581 = vpop.permute.xlu0 %3580
  %3582 = vrot.lane.b32.xlu0 %v3261, 16
  %v3583 = vpop.permute.xlu0 %3582
  %v3586 = vsel %vm2562, %v3568, %v3577
  %v3589 = vsel %vm2562, %v3569, %v3579
  %v3592 = vsel %vm2562, %v3570, %v3581
  %v3595 = vsel %vm2562, %v3571, %v3583
  %v3596 = vld [vmem:[%s8] sm:$0xf]
  %v3597 = vld [vmem:[%s8 + $0x4] sm:$0xf]
  %v3598 = vld [vmem:[%s8 + $0x8] sm:$0xf]
  %v3599 = vld [vmem:[%s8 + $0xc] sm:$0xf]
  %v3600 = vld [vmem:[%s9] sm:$0x1]
  %v3602 = vlaneseq
  %v3603 = vshrl.u32 %v3602, 7
  %v3604 = vsub.s32 0, %v3603
  %v3605 = vrot.slane %v3600, %v3604
  %v3611 = vunpack.c.l.b16 %v3596
  %v3612 = vunpack.c.l.b16 %v3597
  %v3613 = vunpack.c.l.b16 %v3598
  %v3614 = vunpack.c.l.b16 %v3599
  %v3615 = vpack.c.b16 %v3612, %v3611
  %v3616 = vpack.c.b16 %v3614, %v3613
  %v3619 = vsel %vm2244, %v3586, 0
  %v3621 = vsel %vm2244, %v3589, 0
  %v3623 = vsel %vm2244, %v3592, 0
  %v3625 = vsel %vm2244, %v3595, 0
  %3627 = vmatprep.subr.bf16.mxu0 0
  %3628 = vmatpush1.bf16.msra.mxu0 0
  %3629 = vmatprep.subr.bf16.mxu0 0
  %3630 = vmatpush1.bf16.msra.mxu0 0
  %3631 = vmatprep.subr.bf16.mxu0 0
  %3632 = vmatpush1.bf16.msra.mxu0 0
  %3633 = vmatprep.subr.bf16.mxu0 0
  %3634 = vmatpush1.bf16.msra.mxu0 0
  %3635 = vmatprep.subr.bf16.mxu0 0
  %3636 = vmatpush1.bf16.msra.mxu0 0
  %3637 = vmatprep.subr.bf16.mxu0 0
  %3638 = vmatpush1.bf16.msra.mxu0 0
  %3639 = vmatprep.subr.bf16.mxu0 0
  %3640 = vmatpush1.bf16.msra.mxu0 %v3616
  %3641 = vmatprep.subr.bf16.mxu0 0
  %3642 = vmatpush1.bf16.msra.mxu0 %v3615
  %3643 = vmatprep.subr.bf16.mxu0 0
  %3644 = vmatpush2.bf16.msra.mxu0 0
  %3645 = vmatprep.subr.bf16.mxu0 0
  %3646 = vmatpush2.bf16.msra.mxu0 0
  %3647 = vmatprep.subr.bf16.mxu0 0
  %3648 = vmatpush2.bf16.msra.mxu0 0
  %3649 = vmatprep.subr.bf16.mxu0 0
  %3650 = vmatpush2.bf16.msra.mxu0 0
  %3651 = vmatprep.subr.bf16.mxu0 0
  %3652 = vmatpush2.bf16.msra.mxu0 0
  %3653 = vmatprep.subr.bf16.mxu0 0
  %3654 = vmatpush2.bf16.msra.mxu0 0
  %3655 = vmatprep.subr.bf16.mxu0 0
  %3656 = vmatpush2.bf16.msra.mxu0 0
  %3657 = vmatprep.subr.bf16.mxu0 0
  %3658 = vmatpush2.bf16.msra.mxu0 0
  %3659 = vmatprep.mubr.bf16.mxu0 0
  %3660 = vmatmul.mubr.bf16.gmra.mxu0 %v3619
  %v3661 = vpop.f32.mrf.mxu0
  %v3662 = vadd.f32 %v3605, %v3661
  %v3663 = vpop.f32.mrf.mxu0
  %v3664 = vpop.f32.mrf.mxu0
  %v3665 = vadd.f32 %v3605, %v3664
  %v3666 = vpop.f32.mrf.mxu0
  %3667 = vmatprep.mubr.bf16.mxu0 0
  %3668 = vmatmul.mubr.bf16.gmra.mxu0 %v3621
  %v3669 = vpop.f32.mrf.mxu0
  %v3670 = vadd.f32 %v3605, %v3669
  %v3671 = vpop.f32.mrf.mxu0
  %v3672 = vpop.f32.mrf.mxu0
  %v3673 = vadd.f32 %v3605, %v3672
  %v3674 = vpop.f32.mrf.mxu0
  %3675 = vmatprep.mubr.bf16.mxu0 0
  %3676 = vmatmul.mubr.bf16.gmra.mxu0 %v3623
  %v3677 = vpop.f32.mrf.mxu0
  %v3678 = vadd.f32 %v3605, %v3677
  %v3679 = vpop.f32.mrf.mxu0
  %v3680 = vpop.f32.mrf.mxu0
  %v3681 = vadd.f32 %v3605, %v3680
  %v3682 = vpop.f32.mrf.mxu0
  %3683 = vmatprep.mubr.bf16.mxu0 0
  %3684 = vmatmul.mubr.bf16.gmra.mxu0 %v3625
  %v3685 = vpop.f32.mrf.mxu0
  %v3686 = vadd.f32 %v3605, %v3685
  %v3687 = vpop.f32.mrf.mxu0
  %v3688 = vpop.f32.mrf.mxu0
  %v3689 = vpop.f32.mrf.mxu0
  %3690 = vdwg.mxu0
  %v3691 = vld [vmem:[%s10] sm:$0xff]
  %v3692 = vld [vmem:[%s10 + $0x8] sm:$0xff]
  %v3693 = vld [vmem:[%s10 + $0x10] sm:$0xff]
  %v3694 = vld [vmem:[%s10 + $0x18] sm:$0xff]
  %v3695 = vld [vmem:[%s10 + $0x20] sm:$0xff]
  %v3696 = vld [vmem:[%s10 + $0x28] sm:$0xff]
  %v3697 = vld [vmem:[%s10 + $0x30] sm:$0x3f]
  %v3698 = vadd.f32 %v3662, %v3691
  %v3699 = vadd.f32 %v3665, %v3692
  %v3700 = vadd.f32 %v3670, %v3693
  %v3701 = vadd.f32 %v3673, %v3694
  %v3702 = vadd.f32 %v3678, %v3695
  %v3703 = vadd.f32 %v3681, %v3696
  %v3704 = vadd.f32 %v3686, %v3697
  %s3705 = scalar_lea.vmem %s11, 56
  %3706 = vst [vmem:[%s3705] sm:$0xff] %v3698
  %3707 = vst [vmem:[%s3705 + $0x8] sm:$0xff] %v3699
  %3708 = vst [vmem:[%s3705 + $0x10] sm:$0xff] %v3700
  %3709 = vst [vmem:[%s3705 + $0x18] sm:$0xff] %v3701
  %3710 = vst [vmem:[%s3705 + $0x20] sm:$0xff] %v3702
  %3711 = vst [vmem:[%s3705 + $0x28] sm:$0xff] %v3703
  %3712 = vst [vmem:[%s3705 + $0x30] sm:$0x3f] %v3704
  // Predicated region
  $region46: #{forward_features.1} parent=0 // pred_check
    _
  $region47: #{forward_features.1} parent=0 // pred_check_branch
    %3714 = sbr.rel (0) target = $region49
  $region48: #{forward_features.1} parent=0 // pred_region
    _
  $region49: #{forward_features.1} parent=0 // pred_fallthru
    _
  // Predicated region
  $region50: #{forward_features.1} parent=0 // pred_check
    _
  $region51: #{forward_features.1} parent=0 // pred_check_branch
    %3716 = sbr.rel (0) target = $region53
  $region52: #{forward_features.1} parent=0 // pred_region
    _
  $region53: #{forward_features.1} parent=0 // pred_fallthru
    _

</llo_original>
